<compile_context>
chip_gen: v7x
topology: tpu7x:2x2x1
jax: 0.10.0
libtpu: 0.0.40
codegen_flags: <defaults>
</compile_context>

<pallas_src>
import math
from functools import partial

import jax
import jax.numpy as jnp
from jax import lax
from jax.experimental import pallas as pl
from jax.experimental.pallas import tpu as pltpu

GN_GROUPS = 32      # nn.GroupNorm(32, in_channels)
GN_EPS = 1e-5       # PyTorch GroupNorm default eps


def _mhsa_kernel(x_ref, g_ref, gt_ref, gamma_ref, beta_ref,
                 wqkv_ref, bqkv_ref, wout_ref, bout_ref,
                 o_ref, net_sc,
                 *, num_heads, head_dim, batch_block, q_tile):
    c = gamma_ref.shape[0]
    area = x_ref.shape[-1]
    gsize = c // GN_GROUPS
    n_per_group = gsize * area
    n_qt = area // q_tile

    for nb in range(batch_block):                       # static, small
        x = x_ref[nb]                                    # [C, AREA] f32

        # -------- GroupNorm(32, C): f32 stats, one fused tiny stat matmul ----
        row_sum = jnp.sum(x, axis=1, keepdims=True)                     # [C, 1]
        row_sumsq = jnp.sum(x * x, axis=1, keepdims=True)               # [C, 1]
        row_stats = jnp.concatenate([row_sum, row_sumsq], axis=1)       # [C, 2]
        g_stats = jnp.dot(g_ref[...], row_stats,
                          preferred_element_type=jnp.float32)           # [32, 2]
        mean_g = g_stats[:, 0:1] / n_per_group
        var_g = jnp.maximum(g_stats[:, 1:2] / n_per_group - mean_g * mean_g, 0.0)
        inv_g = lax.rsqrt(var_g + GN_EPS)                                # [32, 1]
        # Broadcast group stats back to channels with one tiny matmul, then
        # apply GN as a single fused affine pass over [C, AREA].
        stats_c = jnp.dot(gt_ref[...], jnp.concatenate([mean_g, inv_g], axis=1),
                          preferred_element_type=jnp.float32)            # [C, 2]
        a = gamma_ref[...] * stats_c[:, 1:2]                             # [C, 1]
        bshift = beta_ref[...] - stats_c[:, 0:1] * a                     # [C, 1]
        xn = (x * a + bshift).astype(jnp.bfloat16)                       # [C, AREA]

        # -------- to_qkv (1x1 conv): bf16 MXU, f32 accumulate ----------------
        qkv = jnp.dot(wqkv_ref[...], xn,
                      preferred_element_type=jnp.float32) + bqkv_ref[...]  # [3C, AREA]

        # -------- attention: per-head loop, q-tiled, deferred softmax norm ---
        for h in range(num_heads):
            base = h * 3 * head_dim
            # q rows of wqkv/bqkv were pre-scaled by 1/sqrt(head_dim) on host.
            k = qkv[base + head_dim: base + 2 * head_dim].astype(jnp.bfloat16)  # [hd, A]
            # Small-operand transposes only ([hd, AREA]); big tiles stay put.
            qT = jnp.transpose(qkv[base: base + head_dim]
                               ).astype(jnp.bfloat16)                           # [A, hd]
            vT = jnp.transpose(qkv[base + 2 * head_dim: base + 3 * head_dim]
                               ).astype(jnp.bfloat16)                           # [A, hd]
            for t in range(n_qt):
                q_blk = qT[t * q_tile:(t + 1) * q_tile]                 # [TQ, hd]
                s = jnp.dot(q_blk, k,
                            preferred_element_type=jnp.float32)         # [TQ, A]
                p = jnp.exp(s - jnp.max(s, axis=-1, keepdims=True))     # f32
                l = jnp.sum(p, axis=-1, keepdims=True)                  # [TQ, 1]
                o_t = jnp.dot(p.astype(jnp.bfloat16), vT,
                              preferred_element_type=jnp.float32)       # [TQ, hd]
                # Deferred normalization: scale the small PV output, not p.
                o_t = o_t * pl.reciprocal(l, approx=True)
                # Store transposed into channels-first scratch (lane-dense).
                net_sc[h * head_dim:(h + 1) * head_dim,
                       t * q_tile:(t + 1) * q_tile] = \
                    jnp.transpose(o_t).astype(jnp.bfloat16)

        # -------- to_out (1x1 conv) + residual -------------------------------
        out_net = jnp.dot(wout_ref[...], net_sc[...],
                          preferred_element_type=jnp.float32) + bout_ref[...]
        o_ref[nb] = (x + out_net).astype(o_ref.dtype)


def _pick_batch_block(b, c, area):
    """Pack batch elements per grid step, but keep >= 2 grid steps (megacore)."""
    if b < 2:
        return 1
    per_elem = c * area * 4 * 4          # x + out blocks, double buffered, f32
    cap = 8 << 20                        # <= 8 MiB of batch-block I/O per step
    nb = max(1, min(b // 2, max(1, cap // per_elem)))
    while b % nb:
        nb -= 1
    return max(nb, 1)


def multi_head_spatial_attention(x_nchw, params, *, num_heads,
                                 batch_block=None, q_tile=None):
    b, c, h, w = x_nchw.shape
    area = h * w
    assert c % GN_GROUPS == 0 and c % num_heads == 0, "channel count mismatch"
    head_dim = c // num_heads
    x = x_nchw.reshape(b, c, area).astype(jnp.float32)

    if batch_block is None:
        batch_block = _pick_batch_block(b, c, area)
    assert b % batch_block == 0
    if q_tile is None:
        q_tile = area if area <= 512 else 256
    assert area % q_tile == 0

    # Fold (q*scale)*(k*scale) = (q/sqrt(hd))*k into the q rows of to_qkv
    # weight/bias once on the host -> no per-head scaling inside the kernel.
    qk_scale = 1.0 / math.sqrt(head_dim)
    row_in_head = jnp.arange(3 * c) % (3 * head_dim)
    row_scale = jnp.where(row_in_head < head_dim, qk_scale, 1.0).astype(jnp.float32)

    wqkv = (params["wqkv"].astype(jnp.float32) * row_scale[:, None]).astype(jnp.bfloat16)
    bqkv = (params["bqkv"].astype(jnp.float32) * row_scale).reshape(3 * c, 1)
    wout = params["wout"].astype(jnp.bfloat16)
    bout = params["bout"].reshape(c, 1).astype(jnp.float32)
    gamma = params["gn_gamma"].reshape(c, 1).astype(jnp.float32)
    beta = params["gn_beta"].reshape(c, 1).astype(jnp.float32)

    # One-hot group-membership matrices (constant; passed in, not rebuilt).
    gsize = c // GN_GROUPS
    g_mat = (jnp.arange(c)[None, :] // gsize ==
             jnp.arange(GN_GROUPS)[:, None]).astype(jnp.float32)     # [32, C]
    gt_mat = g_mat.T                                                  # [C, 32]

    def full_spec(shape):
        nd = len(shape)
        return pl.BlockSpec(shape, lambda i, _nd=nd: (0,) * _nd)

    # ---- VMEM budget computed from actual block shapes (not a fixed 32 MiB).
    blk_io = batch_block * c * area * 4                 # one x (or out) block
    est = (2 * blk_io * 2                               # x + out, double buffered
           + (3 * c * c + c * c) * 2 * 2                # bf16 weights, 2 buffers
           + 4 * c * area * 4                           # xn + qkv temporaries
           + c * area * 2                               # net scratch (bf16)
           + 2 * q_tile * area * 4                      # score + prob tile
           + (1 << 20))                                 # small temps headroom
    vmem_limit = int(min(max(2 * est, 32 << 20), 64 << 20))

    flops = b * (8 * c * c * area + 4 * c * area * area)
    transcendentals = b * (num_heads * area * area + GN_GROUPS)
    bytes_accessed = (2 * b * c * area * 4                  # x in + out (f32)
                      + (3 * c * c + c * c) * 2             # bf16 weights
                      + 2 * GN_GROUPS * c * 4               # G / G^T
                      + (3 * c + c + 2 * c) * 4)            # biases / gamma / beta

    kernel = partial(_mhsa_kernel, num_heads=num_heads, head_dim=head_dim,
                     batch_block=batch_block, q_tile=q_tile)
    out = pl.pallas_call(
        kernel,
        out_shape=jax.ShapeDtypeStruct((b, c, area), jnp.float32),
        grid=(b // batch_block,),
        in_specs=[
            pl.BlockSpec((batch_block, c, area), lambda i: (i, 0, 0)),  # x
            full_spec((GN_GROUPS, c)),                                  # G
            full_spec((c, GN_GROUPS)),                                  # G^T
            full_spec((c, 1)),                                          # gn gamma
            full_spec((c, 1)),                                          # gn beta
            full_spec((3 * c, c)),                                      # to_qkv W (bf16)
            full_spec((3 * c, 1)),                                      # to_qkv b (q pre-scaled)
            full_spec((c, c)),                                          # to_out W (bf16)
            full_spec((c, 1)),                                          # to_out b
        ],
        out_specs=pl.BlockSpec((batch_block, c, area), lambda i: (i, 0, 0)),
        scratch_shapes=[pltpu.VMEM((c, area), jnp.bfloat16)],           # merged heads
        compiler_params=pltpu.CompilerParams(
            dimension_semantics=("parallel",),
            vmem_limit_bytes=vmem_limit),
        cost_estimate=pl.CostEstimate(
            flops=flops,
            transcendentals=transcendentals,
            bytes_accessed=bytes_accessed),
    )(x, g_mat, gt_mat, gamma, beta, wqkv, bqkv, wout, bout)
    return out.reshape(b, c, h, w)


def reference(x_nchw, params, *, num_heads):
    """Pure-JAX f32 mirror of the PyTorch forward (for verification)."""
    b, c, h, w = x_nchw.shape
    area = h * w
    hd = c // num_heads
    x = x_nchw.reshape(b, c, area).astype(jnp.float32)
    xg = x.reshape(b, GN_GROUPS, (c // GN_GROUPS) * area)
    mean = xg.mean(axis=-1, keepdims=True)
    var = ((xg - mean) ** 2).mean(axis=-1, keepdims=True)
    xn = ((xg - mean) / jnp.sqrt(var + GN_EPS)).reshape(b, c, area)
    xn = xn * params["gn_gamma"][None, :, None] + params["gn_beta"][None, :, None]
    qkv = jnp.einsum('oc,bca->boa', params["wqkv"], xn) + params["bqkv"][None, :, None]
    qkv = qkv.reshape(b * num_heads, 3 * hd, area)
    q, k, v = qkv[:, :hd], qkv[:, hd:2 * hd], qkv[:, 2 * hd:]
    scale = 1.0 / math.sqrt(math.sqrt(hd))
    attn = jnp.einsum('bct,bcs->bts', q * scale, k * scale)
    attn = jax.nn.softmax(attn, axis=-1)
    net = jnp.einsum('bts,bcs->bct', attn, v).reshape(b, c, area)
    net = jnp.einsum('oc,bca->boa', params["wout"], net) + params["bout"][None, :, None]
    return (x + net).reshape(b, c, h, w)


if __name__ == "__main__":
    # GroupNorm(32, C) requires C % 32 == 0; AREA = 16*16 = 256 keeps the
    # last block dim a multiple of 128 (lane-dense loads/stores).
    b, c, h, w = 2, 64, 16, 16
    num_head_channels = 32
    num_heads = c // num_head_channels        # = 2, head_dim = 32

    key = jax.random.PRNGKey(0)
    k1, k2, k3, k4, k5, k6, k7 = jax.random.split(key, 7)
    x = jax.random.normal(k1, (b, c, h, w), jnp.float32)
    params = {
        "gn_gamma": 1.0 + 0.1 * jax.random.normal(k2, (c,), jnp.float32),
        "gn_beta": 0.1 * jax.random.normal(k3, (c,), jnp.float32),
        "wqkv": 0.05 * jax.random.normal(k4, (3 * c, c), jnp.float32),
        "bqkv": 0.05 * jax.random.normal(k5, (3 * c,), jnp.float32),
        # module uses zero_module(to_out); random here to exercise the kernel.
        "wout": 0.05 * jax.random.normal(k6, (c, c), jnp.float32),
        "bout": 0.05 * jax.random.normal(k7, (c,), jnp.float32),
    }

    out = multi_head_spatial_attention(x, params, num_heads=num_heads)
    out = jax.block_until_ready(out)
    ref = reference(x, params, num_heads=num_heads)
    assert out.shape == (b, c, h, w)
    # bf16 MXU operands (f32 accumulation) + approx reciprocal -> loosened
    # tolerance vs the f32 reference.
    assert jnp.allclose(out, ref, atol=2e-2, rtol=2e-2), \
        float(jnp.max(jnp.abs(out - ref)))
    print("KERNEL_OK")
</pallas_src>

<mosaic_0001>
module attributes {stable_mosaic.version = 11 : i64} {
  func.func @_mhsa_kernel(%arg0: i32, %arg1: memref<1x64x256xf32, #tpu.memory_space<vmem>>, %arg2: memref<32x64xf32, #tpu.memory_space<vmem>>, %arg3: memref<64x32xf32, #tpu.memory_space<vmem>>, %arg4: memref<64x1xf32, #tpu.memory_space<vmem>>, %arg5: memref<64x1xf32, #tpu.memory_space<vmem>>, %arg6: memref<192x64xbf16, #tpu.memory_space<vmem>>, %arg7: memref<192x1xf32, #tpu.memory_space<vmem>>, %arg8: memref<64x64xbf16, #tpu.memory_space<vmem>>, %arg9: memref<64x1xf32, #tpu.memory_space<vmem>>, %arg10: memref<1x64x256xf32, #tpu.memory_space<vmem>>, %arg11: memref<64x256xbf16, #tpu.memory_space<vmem>>) attributes {dimension_semantics = [#tpu.dimension_semantics<parallel>], iteration_bounds = array<i64: 2>, scalar_prefetch = 0 : i64, scratch_operands = 1 : i64, tpu.core_type = #tpu.core_type<tc>, window_params = [{transform_indices = @transform_0, window_bounds = array<i64: 1, 64, 256>}, {pipeline_mode = #tpu.pipeline_mode<synchronous>, transform_indices = @transform_1, window_bounds = array<i64: 32, 64>}, {pipeline_mode = #tpu.pipeline_mode<synchronous>, transform_indices = @transform_2, window_bounds = array<i64: 64, 32>}, {pipeline_mode = #tpu.pipeline_mode<synchronous>, transform_indices = @transform_3, window_bounds = array<i64: 64, 1>}, {pipeline_mode = #tpu.pipeline_mode<synchronous>, transform_indices = @transform_4, window_bounds = array<i64: 64, 1>}, {pipeline_mode = #tpu.pipeline_mode<synchronous>, transform_indices = @transform_5, window_bounds = array<i64: 192, 64>}, {pipeline_mode = #tpu.pipeline_mode<synchronous>, transform_indices = @transform_6, window_bounds = array<i64: 192, 1>}, {pipeline_mode = #tpu.pipeline_mode<synchronous>, transform_indices = @transform_7, window_bounds = array<i64: 64, 64>}, {pipeline_mode = #tpu.pipeline_mode<synchronous>, transform_indices = @transform_8, window_bounds = array<i64: 64, 1>}, {transform_indices = @transform_9, window_bounds = array<i64: 1, 64, 256>}]} {
    %c0 = arith.constant 0 : index
    %c0_0 = arith.constant 0 : index
    %c0_1 = arith.constant 0 : index
    %0 = vector.load %arg1[%c0, %c0_0, %c0_1] : memref<1x64x256xf32, #tpu.memory_space<vmem>>, vector<1x64x256xf32>
    %1 = vector.shape_cast %0 : vector<1x64x256xf32> to vector<64x256xf32>
    %cst = arith.constant dense<0.000000e+00> : vector<64xf32>
    %2 = vector.multi_reduction <add>, %1, %cst [1] : vector<64x256xf32> to vector<64xf32>
    %3 = vector.shape_cast %2 : vector<64xf32> to vector<64x1xf32>
    %4 = arith.mulf %1, %1 : vector<64x256xf32>
    %cst_2 = arith.constant dense<0.000000e+00> : vector<64xf32>
    %5 = vector.multi_reduction <add>, %4, %cst_2 [1] : vector<64x256xf32> to vector<64xf32>
    %6 = vector.shape_cast %5 : vector<64xf32> to vector<64x1xf32>
    %7 = tpu.concatenate %3, %6 in 1 : vector<64x1xf32>, vector<64x1xf32> -> vector<64x2xf32>
    %c0_3 = arith.constant 0 : index
    %c0_4 = arith.constant 0 : index
    %8 = vector.load %arg2[%c0_3, %c0_4] : memref<32x64xf32, #tpu.memory_space<vmem>>, vector<32x64xf32>
    %cst_5 = arith.constant dense<0.000000e+00> : vector<32x2xf32>
    %9 = tpu.matmul %8, %7, %cst_5 {dimension_numbers = #tpu.dot_dimension_numbers<[1], [0], [0], [1], [0, 0, 1, 1], [], []>} : vector<32x64xf32>, vector<64x2xf32>, vector<32x2xf32> -> vector<32x2xf32>
    %10 = vector.extract_strided_slice %9 {offsets = [0, 0], sizes = [32, 1], strides = [1, 1]} : vector<32x2xf32> to vector<32x1xf32>
    %cst_6 = arith.constant 5.120000e+02 : f32
    %11 = vector.broadcast %cst_6 : f32 to vector<32x1xf32>
    %12 = arith.divf %10, %11 : vector<32x1xf32>
    %13 = vector.extract_strided_slice %9 {offsets = [0, 1], sizes = [32, 1], strides = [1, 1]} : vector<32x2xf32> to vector<32x1xf32>
    %cst_7 = arith.constant 5.120000e+02 : f32
    %14 = vector.broadcast %cst_7 : f32 to vector<32x1xf32>
    %15 = arith.divf %13, %14 : vector<32x1xf32>
    %16 = arith.mulf %12, %12 : vector<32x1xf32>
    %17 = arith.subf %15, %16 : vector<32x1xf32>
    %cst_8 = arith.constant 0.000000e+00 : f32
    %18 = vector.broadcast %cst_8 : f32 to vector<32x1xf32>
    %19 = arith.maximumf %17, %18 : vector<32x1xf32>
    %cst_9 = arith.constant 9.99999974E-6 : f32
    %20 = vector.broadcast %cst_9 : f32 to vector<32x1xf32>
    %21 = arith.addf %19, %20 : vector<32x1xf32>
    %22 = math.rsqrt %21 : vector<32x1xf32>
    %c0_10 = arith.constant 0 : index
    %c0_11 = arith.constant 0 : index
    %23 = vector.load %arg3[%c0_10, %c0_11] : memref<64x32xf32, #tpu.memory_space<vmem>>, vector<64x32xf32>
    %24 = tpu.concatenate %12, %22 in 1 : vector<32x1xf32>, vector<32x1xf32> -> vector<32x2xf32>
    %cst_12 = arith.constant dense<0.000000e+00> : vector<64x2xf32>
    %25 = tpu.matmul %23, %24, %cst_12 {dimension_numbers = #tpu.dot_dimension_numbers<[1], [0], [0], [1], [0, 0, 1, 1], [], []>} : vector<64x32xf32>, vector<32x2xf32>, vector<64x2xf32> -> vector<64x2xf32>
    %c0_13 = arith.constant 0 : index
    %c0_14 = arith.constant 0 : index
    %26 = vector.load %arg4[%c0_13, %c0_14] : memref<64x1xf32, #tpu.memory_space<vmem>>, vector<64x1xf32>
    %27 = vector.extract_strided_slice %25 {offsets = [0, 1], sizes = [64, 1], strides = [1, 1]} : vector<64x2xf32> to vector<64x1xf32>
    %28 = arith.mulf %26, %27 : vector<64x1xf32>
    %c0_15 = arith.constant 0 : index
    %c0_16 = arith.constant 0 : index
    %29 = vector.load %arg5[%c0_15, %c0_16] : memref<64x1xf32, #tpu.memory_space<vmem>>, vector<64x1xf32>
    %30 = vector.extract_strided_slice %25 {offsets = [0, 0], sizes = [64, 1], strides = [1, 1]} : vector<64x2xf32> to vector<64x1xf32>
    %31 = arith.mulf %30, %28 : vector<64x1xf32>
    %32 = arith.subf %29, %31 : vector<64x1xf32>
    %33 = vector.broadcast %28 : vector<64x1xf32> to vector<64x256xf32>
    %34 = arith.mulf %1, %33 : vector<64x256xf32>
    %35 = vector.broadcast %32 : vector<64x1xf32> to vector<64x256xf32>
    %36 = arith.addf %34, %35 : vector<64x256xf32>
    %37 = arith.truncf %36 : vector<64x256xf32> to vector<64x256xbf16>
    %c0_17 = arith.constant 0 : index
    %c0_18 = arith.constant 0 : index
    %38 = vector.load %arg6[%c0_17, %c0_18] : memref<192x64xbf16, #tpu.memory_space<vmem>>, vector<192x64xbf16>
    %cst_19 = arith.constant dense<0.000000e+00> : vector<192x256xf32>
    %39 = tpu.matmul %38, %37, %cst_19 {dimension_numbers = #tpu.dot_dimension_numbers<[1], [0], [0], [1], [0, 0, 1, 1], [], []>} : vector<192x64xbf16>, vector<64x256xbf16>, vector<192x256xf32> -> vector<192x256xf32>
    %c0_20 = arith.constant 0 : index
    %c0_21 = arith.constant 0 : index
    %40 = vector.load %arg7[%c0_20, %c0_21] : memref<192x1xf32, #tpu.memory_space<vmem>>, vector<192x1xf32>
    %41 = vector.broadcast %40 : vector<192x1xf32> to vector<192x256xf32>
    %42 = arith.addf %39, %41 : vector<192x256xf32>
    %43 = vector.extract_strided_slice %42 {offsets = [32, 0], sizes = [32, 256], strides = [1, 1]} : vector<192x256xf32> to vector<32x256xf32>
    %44 = arith.truncf %43 : vector<32x256xf32> to vector<32x256xbf16>
    %45 = vector.extract_strided_slice %42 {offsets = [0, 0], sizes = [32, 256], strides = [1, 1]} : vector<192x256xf32> to vector<32x256xf32>
    %46 = tpu.transpose %45, [1, 0] : vector<32x256xf32> -> vector<256x32xf32>
    %47 = arith.truncf %46 : vector<256x32xf32> to vector<256x32xbf16>
    %48 = vector.extract_strided_slice %42 {offsets = [64, 0], sizes = [32, 256], strides = [1, 1]} : vector<192x256xf32> to vector<32x256xf32>
    %49 = tpu.transpose %48, [1, 0] : vector<32x256xf32> -> vector<256x32xf32>
    %50 = arith.truncf %49 : vector<256x32xf32> to vector<256x32xbf16>
    %cst_22 = arith.constant dense<0.000000e+00> : vector<256x256xf32>
    %51 = tpu.matmul %47, %44, %cst_22 {dimension_numbers = #tpu.dot_dimension_numbers<[1], [0], [0], [1], [0, 0, 1, 1], [], []>} : vector<256x32xbf16>, vector<32x256xbf16>, vector<256x256xf32> -> vector<256x256xf32>
    %cst_23 = arith.constant dense<0xFF800000> : vector<256xf32>
    %52 = vector.multi_reduction <maximumf>, %51, %cst_23 [1] : vector<256x256xf32> to vector<256xf32>
    %53 = vector.shape_cast %52 : vector<256xf32> to vector<256x1xf32>
    %54 = vector.broadcast %53 : vector<256x1xf32> to vector<256x256xf32>
    %55 = arith.subf %51, %54 : vector<256x256xf32>
    %56 = math.exp %55 : vector<256x256xf32>
    %cst_24 = arith.constant dense<0.000000e+00> : vector<256xf32>
    %57 = vector.multi_reduction <add>, %56, %cst_24 [1] : vector<256x256xf32> to vector<256xf32>
    %58 = vector.shape_cast %57 : vector<256xf32> to vector<256x1xf32>
    %59 = arith.truncf %56 : vector<256x256xf32> to vector<256x256xbf16>
    %cst_25 = arith.constant dense<0.000000e+00> : vector<256x32xf32>
    %60 = tpu.matmul %59, %50, %cst_25 {dimension_numbers = #tpu.dot_dimension_numbers<[1], [0], [0], [1], [0, 0, 1, 1], [], []>} : vector<256x256xbf16>, vector<256x32xbf16>, vector<256x32xf32> -> vector<256x32xf32>
    %61 = tpu.reciprocal %58 {approx = true} : vector<256x1xf32> -> vector<256x1xf32>
    %62 = vector.broadcast %61 : vector<256x1xf32> to vector<256x32xf32>
    %63 = arith.mulf %60, %62 : vector<256x32xf32>
    %64 = tpu.transpose %63, [1, 0] : vector<256x32xf32> -> vector<32x256xf32>
    %65 = arith.truncf %64 : vector<32x256xf32> to vector<32x256xbf16>
    %c0_26 = arith.constant 0 : index
    %c0_27 = arith.constant 0 : index
    %66 = vector.load %arg11[%c0_26, %c0_27] : memref<64x256xbf16, #tpu.memory_space<vmem>>, vector<32x256xbf16>
    tpu.vector_store %arg11[%c0_26, %c0_27], %65 {strides = array<i32>} : memref<64x256xbf16, #tpu.memory_space<vmem>>, vector<32x256xbf16>,
    %67 = vector.extract_strided_slice %42 {offsets = [128, 0], sizes = [32, 256], strides = [1, 1]} : vector<192x256xf32> to vector<32x256xf32>
    %68 = arith.truncf %67 : vector<32x256xf32> to vector<32x256xbf16>
    %69 = vector.extract_strided_slice %42 {offsets = [96, 0], sizes = [32, 256], strides = [1, 1]} : vector<192x256xf32> to vector<32x256xf32>
    %70 = tpu.transpose %69, [1, 0] : vector<32x256xf32> -> vector<256x32xf32>
    %71 = arith.truncf %70 : vector<256x32xf32> to vector<256x32xbf16>
    %72 = vector.extract_strided_slice %42 {offsets = [160, 0], sizes = [32, 256], strides = [1, 1]} : vector<192x256xf32> to vector<32x256xf32>
    %73 = tpu.transpose %72, [1, 0] : vector<32x256xf32> -> vector<256x32xf32>
    %74 = arith.truncf %73 : vector<256x32xf32> to vector<256x32xbf16>
    %cst_28 = arith.constant dense<0.000000e+00> : vector<256x256xf32>
    %75 = tpu.matmul %71, %68, %cst_28 {dimension_numbers = #tpu.dot_dimension_numbers<[1], [0], [0], [1], [0, 0, 1, 1], [], []>} : vector<256x32xbf16>, vector<32x256xbf16>, vector<256x256xf32> -> vector<256x256xf32>
    %cst_29 = arith.constant dense<0xFF800000> : vector<256xf32>
    %76 = vector.multi_reduction <maximumf>, %75, %cst_29 [1] : vector<256x256xf32> to vector<256xf32>
    %77 = vector.shape_cast %76 : vector<256xf32> to vector<256x1xf32>
    %78 = vector.broadcast %77 : vector<256x1xf32> to vector<256x256xf32>
    %79 = arith.subf %75, %78 : vector<256x256xf32>
    %80 = math.exp %79 : vector<256x256xf32>
    %cst_30 = arith.constant dense<0.000000e+00> : vector<256xf32>
    %81 = vector.multi_reduction <add>, %80, %cst_30 [1] : vector<256x256xf32> to vector<256xf32>
    %82 = vector.shape_cast %81 : vector<256xf32> to vector<256x1xf32>
    %83 = arith.truncf %80 : vector<256x256xf32> to vector<256x256xbf16>
    %cst_31 = arith.constant dense<0.000000e+00> : vector<256x32xf32>
    %84 = tpu.matmul %83, %74, %cst_31 {dimension_numbers = #tpu.dot_dimension_numbers<[1], [0], [0], [1], [0, 0, 1, 1], [], []>} : vector<256x256xbf16>, vector<256x32xbf16>, vector<256x32xf32> -> vector<256x32xf32>
    %85 = tpu.reciprocal %82 {approx = true} : vector<256x1xf32> -> vector<256x1xf32>
    %86 = vector.broadcast %85 : vector<256x1xf32> to vector<256x32xf32>
    %87 = arith.mulf %84, %86 : vector<256x32xf32>
    %88 = tpu.transpose %87, [1, 0] : vector<256x32xf32> -> vector<32x256xf32>
    %89 = arith.truncf %88 : vector<32x256xf32> to vector<32x256xbf16>
    %c32 = arith.constant 32 : index
    %c0_32 = arith.constant 0 : index
    %90 = vector.load %arg11[%c32, %c0_32] : memref<64x256xbf16, #tpu.memory_space<vmem>>, vector<32x256xbf16>
    tpu.vector_store %arg11[%c32, %c0_32], %89 {strides = array<i32>} : memref<64x256xbf16, #tpu.memory_space<vmem>>, vector<32x256xbf16>,
    %c0_33 = arith.constant 0 : index
    %c0_34 = arith.constant 0 : index
    %91 = vector.load %arg8[%c0_33, %c0_34] : memref<64x64xbf16, #tpu.memory_space<vmem>>, vector<64x64xbf16>
    %c0_35 = arith.constant 0 : index
    %c0_36 = arith.constant 0 : index
    %92 = vector.load %arg11[%c0_35, %c0_36] : memref<64x256xbf16, #tpu.memory_space<vmem>>, vector<64x256xbf16>
    %cst_37 = arith.constant dense<0.000000e+00> : vector<64x256xf32>
    %93 = tpu.matmul %91, %92, %cst_37 {dimension_numbers = #tpu.dot_dimension_numbers<[1], [0], [0], [1], [0, 0, 1, 1], [], []>} : vector<64x64xbf16>, vector<64x256xbf16>, vector<64x256xf32> -> vector<64x256xf32>
    %c0_38 = arith.constant 0 : index
    %c0_39 = arith.constant 0 : index
    %94 = vector.load %arg9[%c0_38, %c0_39] : memref<64x1xf32, #tpu.memory_space<vmem>>, vector<64x1xf32>
    %95 = vector.broadcast %94 : vector<64x1xf32> to vector<64x256xf32>
    %96 = arith.addf %93, %95 : vector<64x256xf32>
    %97 = arith.addf %1, %96 : vector<64x256xf32>
    %c0_40 = arith.constant 0 : index
    %c0_41 = arith.constant 0 : index
    %c0_42 = arith.constant 0 : index
    %98 = vector.load %arg10[%c0_40, %c0_41, %c0_42] : memref<1x64x256xf32, #tpu.memory_space<vmem>>, vector<1x64x256xf32>
    %99 = vector.shape_cast %98 : vector<1x64x256xf32> to vector<64x256xf32>
    %100 = vector.shape_cast %97 : vector<64x256xf32> to vector<1x64x256xf32>
    tpu.vector_store %arg10[%c0_40, %c0_41, %c0_42], %100 {strides = array<i32>} : memref<1x64x256xf32, #tpu.memory_space<vmem>>, vector<1x64x256xf32>,
    return
  }
  func.func @transform_0(%arg0: i32) -> (i32, i32, i32) {
    %c0_i32 = arith.constant 0 : i32
    %c0_i32_0 = arith.constant 0 : i32
    %c0_i32_1 = arith.constant 0 : i32
    return %arg0, %c0_i32, %c0_i32_0 : i32, i32, i32
  }
  func.func @transform_1(%arg0: i32) -> (i32, i32) {
    %c0_i32 = arith.constant 0 : i32
    %c0_i32_0 = arith.constant 0 : i32
    %c0_i32_1 = arith.constant 0 : i32
    return %c0_i32, %c0_i32_0 : i32, i32
  }
  func.func @transform_2(%arg0: i32) -> (i32, i32) {
    %c0_i32 = arith.constant 0 : i32
    %c0_i32_0 = arith.constant 0 : i32
    %c0_i32_1 = arith.constant 0 : i32
    return %c0_i32, %c0_i32_0 : i32, i32
  }
  func.func @transform_3(%arg0: i32) -> (i32, i32) {
    %c0_i32 = arith.constant 0 : i32
    %c0_i32_0 = arith.constant 0 : i32
    %c0_i32_1 = arith.constant 0 : i32
    return %c0_i32, %c0_i32_0 : i32, i32
  }
  func.func @transform_4(%arg0: i32) -> (i32, i32) {
    %c0_i32 = arith.constant 0 : i32
    %c0_i32_0 = arith.constant 0 : i32
    %c0_i32_1 = arith.constant 0 : i32
    return %c0_i32, %c0_i32_0 : i32, i32
  }
  func.func @transform_5(%arg0: i32) -> (i32, i32) {
    %c0_i32 = arith.constant 0 : i32
    %c0_i32_0 = arith.constant 0 : i32
    %c0_i32_1 = arith.constant 0 : i32
    return %c0_i32, %c0_i32_0 : i32, i32
  }
  func.func @transform_6(%arg0: i32) -> (i32, i32) {
    %c0_i32 = arith.constant 0 : i32
    %c0_i32_0 = arith.constant 0 : i32
    %c0_i32_1 = arith.constant 0 : i32
    return %c0_i32, %c0_i32_0 : i32, i32
  }
  func.func @transform_7(%arg0: i32) -> (i32, i32) {
    %c0_i32 = arith.constant 0 : i32
    %c0_i32_0 = arith.constant 0 : i32
    %c0_i32_1 = arith.constant 0 : i32
    return %c0_i32, %c0_i32_0 : i32, i32
  }
  func.func @transform_8(%arg0: i32) -> (i32, i32) {
    %c0_i32 = arith.constant 0 : i32
    %c0_i32_0 = arith.constant 0 : i32
    %c0_i32_1 = arith.constant 0 : i32
    return %c0_i32, %c0_i32_0 : i32, i32
  }
  func.func @transform_9(%arg0: i32) -> (i32, i32, i32) {
    %c0_i32 = arith.constant 0 : i32
    %c0_i32_0 = arith.constant 0 : i32
    %c0_i32_1 = arith.constant 0 : i32
    return %arg0, %c0_i32, %c0_i32_0 : i32, i32, i32
  }
}

</mosaic_0001>

<llo_original>
// kernel: tpu_custom_call.1
$region0: #{tpu_custom_call.1}
  #allocation0 [shape = 'u32[]', space=smem, size = 0x4, offset = 0x4, fixed_abs, tag = 'smem constant byte address 0x4 - core index']
  #allocation1 [shape = 'u32[144,128]{1,0:T(1,128)}', space=vmem, size = 0x12000, scoped, tag = 'internal scratch']
  #allocation2 [shape = 'bf16[64,256]{1,0:T(16,128)(2,1)}', space=vmem, size = 0x8000, scoped, tag = 'scratch operand']
  %s0 = inlined_call_operand.vmem [shape: f32[2,64,256], index: 0, kind: input, shape index: {}]
  %s1 = inlined_call_operand.vmem [shape: f32[32,64], index: 1, kind: input, shape index: {}]
  %s2 = inlined_call_operand.vmem [shape: f32[64,32], index: 2, kind: input, shape index: {}]
  %s3 = inlined_call_operand.vmem [shape: f32[64,1], index: 3, kind: input, shape index: {}]
  %s4 = inlined_call_operand.vmem [shape: f32[64,1], index: 4, kind: input, shape index: {}]
  %s5 = inlined_call_operand.vmem [shape: bf16[192,64], index: 5, kind: input, shape index: {}]
  %s6 = inlined_call_operand.vmem [shape: f32[192,1], index: 6, kind: input, shape index: {}]
  %s7 = inlined_call_operand.vmem [shape: bf16[64,64], index: 7, kind: input, shape index: {}]
  %s8 = inlined_call_operand.vmem [shape: f32[64,1], index: 8, kind: input, shape index: {}]
  %s9 = inlined_call_operand.hbm [shape: f32[2,64,256], index: 9, kind: output, shape index: {}]
  %s10 = sld [smem:[#allocation0]]
  $region69: #{tpu_custom_call.1} parent=0
    _
  %s12 = ssub.s32 1, %s10
  %s13 = scalar_select 0, %s12, %s10
  $region1: #{tpu_custom_call.1} parent=0
    #allocation3 [shape = 'u8[131072]{0}', space=vmem, size = 0x20000, scoped, tag = 'output window, operand 0']
    #allocation4 [shape = 's32[2]{0}', space=sflag, size = 0x8, scoped, tag = 'scoped memory for tpu_custom_call.1']
    %14 = vsyncpa [#allocation4], 0
    %s15 = scalar_lea.sflag [#allocation4], 1
    %16 = vsyncpa %s15, 0
    loop: start=0, step=1, limit=4
    $region2: #{tpu_custom_call.1} parent=1 // loop_pre_header
      _
    $region3: #{tpu_custom_call.1} parent=1 // loop_header
      %s18 = sphi 0, %s22
      %p19 = scmp.ge.s32.totalorder %s18, 4
      %s28 = sphi 0, %s30
      %s31 = sphi 0, %s28
      %s32 = sphi 0, %s31
      %s48 = sphi 0, %s32
      %s52 = sphi 0, %s52
      %s54 = sphi 0, %s52
      %s55 = sphi 0, %s54
      %s69 = sphi 0, %s55
      %s73 = sphi 0, %s73
      %s75 = sphi 0, %s73
      %s76 = sphi 0, %s75
      %s90 = sphi 0, %s76
      %s94 = sphi 0, %s94
      %s96 = sphi 0, %s94
      %s97 = sphi 0, %s96
      %s111 = sphi 0, %s97
      %s115 = sphi 0, %s115
      %s117 = sphi 0, %s115
      %s118 = sphi 0, %s117
      %s132 = sphi 0, %s118
      %s136 = sphi 0, %s136
      %s138 = sphi 0, %s136
      %s139 = sphi 0, %s138
      %s153 = sphi 0, %s139
      %s157 = sphi 0, %s157
      %s159 = sphi 0, %s157
      %s160 = sphi 0, %s159
      %s174 = sphi 0, %s160
      %s178 = sphi 0, %s178
      %s180 = sphi 0, %s178
      %s181 = sphi 0, %s180
      %s195 = sphi 0, %s181
      %s199 = sphi 0, %s199
      %s201 = sphi 0, %s199
      %s202 = sphi 0, %s201
      %s216 = sphi 0, %s202
      %s222 = sphi 0, %s224
      %s225 = sphi 0, %s222
      %s226 = sphi 0, %s225
      %s242 = sphi 0, %s226
    $region4: #{tpu_custom_call.1} parent=1 // loop_header_branch
      %21 = sbr.rel (%p19) target = $region8
    $region5: #{tpu_custom_call.1} parent=1 // loop_body
      %s23 = ssub.s32 %s18, 1
      %s24 = ssub.s32 %s18, 2
      %s25 = sadd.s32 %s18, 1
      %s26 = ssub.s32 %s18, %s25
      %p27 = scmp.eq.s32.totalorder %s26, 0
      %s29 = sadd.s32 %s28, 1
      %s30 = scalar_select %p27, %s28, %s29
      %p33 = pneg %p27
      %p34 = scmp.eq.s32.totalorder %s18, 1
      %p35 = por %p33, %p34
      %p36 = scmp.ne.s32.totalorder %s28, %s31
      %p37 = scmp.eq.s32.totalorder %s18, 0
      %p38 = por %p36, %p37
      %p39 = scmp.ne.s32.totalorder %s28, %s31
      %p40 = scmp.eq.s32.totalorder %s23, 1
      %p41 = por %p39, %p40
      %p42 = scmp.ne.s32.totalorder %s31, %s32
      %p43 = scmp.eq.s32.totalorder %s23, 0
      %p44 = por %p42, %p43
      %p45 = scmp.ne.s32.totalorder %s31, %s32
      %p46 = scmp.eq.s32.totalorder %s24, 1
      %p47 = por %p45, %p46
      %p49 = scmp.ne.s32.totalorder %s32, %s48
      %p50 = scmp.eq.s32.totalorder %s24, 0
      %p51 = por %p49, %p50
      %s53 = sadd.s32 %s52, 1
      %p56 = scmp.eq.s32.totalorder %s18, 1
      %p57 = scmp.ne.s32.totalorder %s52, %s54
      %p58 = scmp.eq.s32.totalorder %s18, 0
      %p59 = por %p57, %p58
      %p60 = scmp.ne.s32.totalorder %s52, %s54
      %p61 = scmp.eq.s32.totalorder %s23, 1
      %p62 = por %p60, %p61
      %p63 = scmp.ne.s32.totalorder %s54, %s55
      %p64 = scmp.eq.s32.totalorder %s23, 0
      %p65 = por %p63, %p64
      %p66 = scmp.ne.s32.totalorder %s54, %s55
      %p67 = scmp.eq.s32.totalorder %s24, 1
      %p68 = por %p66, %p67
      %p70 = scmp.ne.s32.totalorder %s55, %s69
      %p71 = scmp.eq.s32.totalorder %s24, 0
      %p72 = por %p70, %p71
      %s74 = sadd.s32 %s73, 1
      %p77 = scmp.eq.s32.totalorder %s18, 1
      %p78 = scmp.ne.s32.totalorder %s73, %s75
      %p79 = scmp.eq.s32.totalorder %s18, 0
      %p80 = por %p78, %p79
      %p81 = scmp.ne.s32.totalorder %s73, %s75
      %p82 = scmp.eq.s32.totalorder %s23, 1
      %p83 = por %p81, %p82
      %p84 = scmp.ne.s32.totalorder %s75, %s76
      %p85 = scmp.eq.s32.totalorder %s23, 0
      %p86 = por %p84, %p85
      %p87 = scmp.ne.s32.totalorder %s75, %s76
      %p88 = scmp.eq.s32.totalorder %s24, 1
      %p89 = por %p87, %p88
      %p91 = scmp.ne.s32.totalorder %s76, %s90
      %p92 = scmp.eq.s32.totalorder %s24, 0
      %p93 = por %p91, %p92
      %s95 = sadd.s32 %s94, 1
      %p98 = scmp.eq.s32.totalorder %s18, 1
      %p99 = scmp.ne.s32.totalorder %s94, %s96
      %p100 = scmp.eq.s32.totalorder %s18, 0
      %p101 = por %p99, %p100
      %p102 = scmp.ne.s32.totalorder %s94, %s96
      %p103 = scmp.eq.s32.totalorder %s23, 1
      %p104 = por %p102, %p103
      %p105 = scmp.ne.s32.totalorder %s96, %s97
      %p106 = scmp.eq.s32.totalorder %s23, 0
      %p107 = por %p105, %p106
      %p108 = scmp.ne.s32.totalorder %s96, %s97
      %p109 = scmp.eq.s32.totalorder %s24, 1
      %p110 = por %p108, %p109
      %p112 = scmp.ne.s32.totalorder %s97, %s111
      %p113 = scmp.eq.s32.totalorder %s24, 0
      %p114 = por %p112, %p113
      %s116 = sadd.s32 %s115, 1
      %p119 = scmp.eq.s32.totalorder %s18, 1
      %p120 = scmp.ne.s32.totalorder %s115, %s117
      %p121 = scmp.eq.s32.totalorder %s18, 0
      %p122 = por %p120, %p121
      %p123 = scmp.ne.s32.totalorder %s115, %s117
      %p124 = scmp.eq.s32.totalorder %s23, 1
      %p125 = por %p123, %p124
      %p126 = scmp.ne.s32.totalorder %s117, %s118
      %p127 = scmp.eq.s32.totalorder %s23, 0
      %p128 = por %p126, %p127
      %p129 = scmp.ne.s32.totalorder %s117, %s118
      %p130 = scmp.eq.s32.totalorder %s24, 1
      %p131 = por %p129, %p130
      %p133 = scmp.ne.s32.totalorder %s118, %s132
      %p134 = scmp.eq.s32.totalorder %s24, 0
      %p135 = por %p133, %p134
      %s137 = sadd.s32 %s136, 1
      %p140 = scmp.eq.s32.totalorder %s18, 1
      %p141 = scmp.ne.s32.totalorder %s136, %s138
      %p142 = scmp.eq.s32.totalorder %s18, 0
      %p143 = por %p141, %p142
      %p144 = scmp.ne.s32.totalorder %s136, %s138
      %p145 = scmp.eq.s32.totalorder %s23, 1
      %p146 = por %p144, %p145
      %p147 = scmp.ne.s32.totalorder %s138, %s139
      %p148 = scmp.eq.s32.totalorder %s23, 0
      %p149 = por %p147, %p148
      %p150 = scmp.ne.s32.totalorder %s138, %s139
      %p151 = scmp.eq.s32.totalorder %s24, 1
      %p152 = por %p150, %p151
      %p154 = scmp.ne.s32.totalorder %s139, %s153
      %p155 = scmp.eq.s32.totalorder %s24, 0
      %p156 = por %p154, %p155
      %s158 = sadd.s32 %s157, 1
      %p161 = scmp.eq.s32.totalorder %s18, 1
      %p162 = scmp.ne.s32.totalorder %s157, %s159
      %p163 = scmp.eq.s32.totalorder %s18, 0
      %p164 = por %p162, %p163
      %p165 = scmp.ne.s32.totalorder %s157, %s159
      %p166 = scmp.eq.s32.totalorder %s23, 1
      %p167 = por %p165, %p166
      %p168 = scmp.ne.s32.totalorder %s159, %s160
      %p169 = scmp.eq.s32.totalorder %s23, 0
      %p170 = por %p168, %p169
      %p171 = scmp.ne.s32.totalorder %s159, %s160
      %p172 = scmp.eq.s32.totalorder %s24, 1
      %p173 = por %p171, %p172
      %p175 = scmp.ne.s32.totalorder %s160, %s174
      %p176 = scmp.eq.s32.totalorder %s24, 0
      %p177 = por %p175, %p176
      %s179 = sadd.s32 %s178, 1
      %p182 = scmp.eq.s32.totalorder %s18, 1
      %p183 = scmp.ne.s32.totalorder %s178, %s180
      %p184 = scmp.eq.s32.totalorder %s18, 0
      %p185 = por %p183, %p184
      %p186 = scmp.ne.s32.totalorder %s178, %s180
      %p187 = scmp.eq.s32.totalorder %s23, 1
      %p188 = por %p186, %p187
      %p189 = scmp.ne.s32.totalorder %s180, %s181
      %p190 = scmp.eq.s32.totalorder %s23, 0
      %p191 = por %p189, %p190
      %p192 = scmp.ne.s32.totalorder %s180, %s181
      %p193 = scmp.eq.s32.totalorder %s24, 1
      %p194 = por %p192, %p193
      %p196 = scmp.ne.s32.totalorder %s181, %s195
      %p197 = scmp.eq.s32.totalorder %s24, 0
      %p198 = por %p196, %p197
      %s200 = sadd.s32 %s199, 1
      %p203 = scmp.eq.s32.totalorder %s18, 1
      %p204 = scmp.ne.s32.totalorder %s199, %s201
      %p205 = scmp.eq.s32.totalorder %s18, 0
      %p206 = por %p204, %p205
      %p207 = scmp.ne.s32.totalorder %s199, %s201
      %p208 = scmp.eq.s32.totalorder %s23, 1
      %p209 = por %p207, %p208
      %p210 = scmp.ne.s32.totalorder %s201, %s202
      %p211 = scmp.eq.s32.totalorder %s23, 0
      %p212 = por %p210, %p211
      %p213 = scmp.ne.s32.totalorder %s201, %s202
      %p214 = scmp.eq.s32.totalorder %s24, 1
      %p215 = por %p213, %p214
      %p217 = scmp.ne.s32.totalorder %s202, %s216
      %p218 = scmp.eq.s32.totalorder %s24, 0
      %p219 = por %p217, %p218
      %s220 = ssub.s32 %s18, %s25
      %p221 = scmp.eq.s32.totalorder %s220, 0
      %s223 = sadd.s32 %s222, 1
      %s224 = scalar_select %p221, %s222, %s223
      %p227 = pneg %p221
      %p228 = scmp.eq.s32.totalorder %s18, 1
      %p229 = por %p227, %p228
      %p230 = scmp.ne.s32.totalorder %s222, %s225
      %p231 = scmp.eq.s32.totalorder %s18, 0
      %p232 = por %p230, %p231
      %p233 = scmp.ne.s32.totalorder %s222, %s225
      %p234 = scmp.eq.s32.totalorder %s23, 1
      %p235 = por %p233, %p234
      %p236 = scmp.ne.s32.totalorder %s225, %s226
      %p237 = scmp.eq.s32.totalorder %s23, 0
      %p238 = por %p236, %p237
      %p239 = scmp.ne.s32.totalorder %s225, %s226
      %p240 = scmp.eq.s32.totalorder %s24, 1
      %p241 = por %p239, %p240
      %p243 = scmp.ne.s32.totalorder %s226, %s242
      %p244 = scmp.eq.s32.totalorder %s24, 0
      %p245 = por %p243, %p244
      %p246 = scmp.le.s32.totalorder 1, %s18
      %p247 = scmp.lt.s32.totalorder %s18, 3
      %p248 = pnand %p246, %p247
      %p249 = pneg %p248
      // Predicated region
      $region9: #{tpu_custom_call.1} parent=5 // pred_check
        _
      $region10: #{tpu_custom_call.1} parent=5 // pred_check_branch
        %251 = sbr.rel (%p248) target = $region12
      $region11: #{tpu_custom_call.1} parent=5 // pred_region
        %s252 = ssub.s32 %s18, 1
        // Predicated region
        $region13: #{tpu_custom_call.1} parent=11 // pred_check
          %p253 = pneg %p65
        $region14: #{tpu_custom_call.1} parent=11 // pred_check_branch
          %255 = sbr.rel (%p253) target = $region16
        $region15: #{tpu_custom_call.1} parent=11 // pred_region
          _
        $region16: #{tpu_custom_call.1} parent=11 // pred_fallthru
          _
        // Predicated region
        $region17: #{tpu_custom_call.1} parent=11 // pred_check
          %p256 = pneg %p86
        $region18: #{tpu_custom_call.1} parent=11 // pred_check_branch
          %258 = sbr.rel (%p256) target = $region20
        $region19: #{tpu_custom_call.1} parent=11 // pred_region
          _
        $region20: #{tpu_custom_call.1} parent=11 // pred_fallthru
          _
        // Predicated region
        $region21: #{tpu_custom_call.1} parent=11 // pred_check
          %p259 = pneg %p107
        $region22: #{tpu_custom_call.1} parent=11 // pred_check_branch
          %261 = sbr.rel (%p259) target = $region24
        $region23: #{tpu_custom_call.1} parent=11 // pred_region
          _
        $region24: #{tpu_custom_call.1} parent=11 // pred_fallthru
          _
        // Predicated region
        $region25: #{tpu_custom_call.1} parent=11 // pred_check
          %p262 = pneg %p128
        $region26: #{tpu_custom_call.1} parent=11 // pred_check_branch
          %264 = sbr.rel (%p262) target = $region28
        $region27: #{tpu_custom_call.1} parent=11 // pred_region
          _
        $region28: #{tpu_custom_call.1} parent=11 // pred_fallthru
          _
        // Predicated region
        $region29: #{tpu_custom_call.1} parent=11 // pred_check
          %p265 = pneg %p149
        $region30: #{tpu_custom_call.1} parent=11 // pred_check_branch
          %267 = sbr.rel (%p265) target = $region32
        $region31: #{tpu_custom_call.1} parent=11 // pred_region
          _
        $region32: #{tpu_custom_call.1} parent=11 // pred_fallthru
          _
        // Predicated region
        $region33: #{tpu_custom_call.1} parent=11 // pred_check
          %p268 = pneg %p170
        $region34: #{tpu_custom_call.1} parent=11 // pred_check_branch
          %270 = sbr.rel (%p268) target = $region36
        $region35: #{tpu_custom_call.1} parent=11 // pred_region
          _
        $region36: #{tpu_custom_call.1} parent=11 // pred_fallthru
          _
        // Predicated region
        $region37: #{tpu_custom_call.1} parent=11 // pred_check
          %p271 = pneg %p191
        $region38: #{tpu_custom_call.1} parent=11 // pred_check_branch
          %273 = sbr.rel (%p271) target = $region40
        $region39: #{tpu_custom_call.1} parent=11 // pred_region
          _
        $region40: #{tpu_custom_call.1} parent=11 // pred_fallthru
          _
        // Predicated region
        $region41: #{tpu_custom_call.1} parent=11 // pred_check
          %p274 = pneg %p212
        $region42: #{tpu_custom_call.1} parent=11 // pred_check_branch
          %276 = sbr.rel (%p274) target = $region44
        $region43: #{tpu_custom_call.1} parent=11 // pred_region
          _
        $region44: #{tpu_custom_call.1} parent=11 // pred_fallthru
          _
      $region12: #{tpu_custom_call.1} parent=5 // pred_fallthru
        _
      %p277 = scmp.lt.s32.totalorder %s18, 2
      // Predicated region
      $region45: #{tpu_custom_call.1} parent=5 // pred_check
        %p278 = pneg %p277
      $region46: #{tpu_custom_call.1} parent=5 // pred_check_branch
        %280 = sbr.rel (%p278) target = $region48
      $region47: #{tpu_custom_call.1} parent=5 // pred_region
        // Predicated region
        $region49: #{tpu_custom_call.1} parent=47 // pred_check
          %p281 = pneg %p38
        $region50: #{tpu_custom_call.1} parent=47 // pred_check_branch
          %283 = sbr.rel (%p281) target = $region52
        $region51: #{tpu_custom_call.1} parent=47 // pred_region
          %p284 = scmp.lt.s32.totalorder %s18, 1
          %s285 = scalar_select %p284, %s18, 1
          %s286 = smul.addr %s285, 16
          %s287 = smul.addr %s286, 8
          %s288 = scalar_lea.vmem %s0, %s287
        $region52: #{tpu_custom_call.1} parent=47 // pred_fallthru
          _
      $region48: #{tpu_custom_call.1} parent=5 // pred_fallthru
        _
      %p289 = scmp.le.s32.totalorder 1, %s18
      %p290 = scmp.lt.s32.totalorder %s18, 3
      %p291 = pnand %p289, %p290
      %p292 = pneg %p291
      // Predicated region
      $region53: #{tpu_custom_call.1} parent=5 // pred_check
        _
      $region54: #{tpu_custom_call.1} parent=5 // pred_check_branch
        %294 = sbr.rel (%p291) target = $region56
      $region55: #{tpu_custom_call.1} parent=5 // pred_region
        %s295 = ssub.s32 %s18, 1
        %p296 = scmp.lt.s32.totalorder %s23, 1
        %s297 = scalar_select %p296, %s23, 1
        %s298 = smul.addr %s297, 16
        %s299 = smul.addr %s298, 8
        %s300 = scalar_lea.vmem %s0, %s299
        %p301 = pneg %p44
        %p302 = pneg %p41
        %p303 = pneg %p65
        %p304 = pneg %p62
        %p305 = pneg %p86
        %p306 = pneg %p83
        %p307 = pneg %p107
        %p308 = pneg %p104
        %p309 = pneg %p128
        %p310 = pneg %p125
        %p311 = pneg %p149
        %p312 = pneg %p146
        %p313 = pneg %p170
        %p314 = pneg %p167
        %p315 = pneg %p191
        %p316 = pneg %p188
        %p317 = pneg %p212
        %p318 = pneg %p209
        %p319 = pneg %p238
        %p320 = pneg %p235
        %s321 = sand.u32 %s225, 1
        %s322 = scalar_lea.sflag [#allocation4], %s321
        %s323 = sand.u32 %s225, 1
        %s324 = smul.addr %s323, 128
        %s325 = scalar_lea.vmem [#allocation3], %s324
        %p326 = scmp.lt.s32.totalorder %s23, 1
        %s327 = scalar_select %p326, %s23, 1
        %s328 = smul.addr %s327, 16
        %s329 = smul.addr %s328, 8
        %s330 = scalar_lea.vmem %s0, %s329
        %v332 = vld [vmem:[%s330] sm:$0xff]
        %v333 = vld [vmem:[%s330 + $0x8] sm:$0xff]
        %v334 = vld [vmem:[%s330 + $0x10] sm:$0xff]
        %v335 = vld [vmem:[%s330 + $0x18] sm:$0xff]
        %v336 = vld [vmem:[%s330 + $0x20] sm:$0xff]
        %v337 = vld [vmem:[%s330 + $0x28] sm:$0xff]
        %v338 = vld [vmem:[%s330 + $0x30] sm:$0xff]
        %v339 = vld [vmem:[%s330 + $0x38] sm:$0xff]
        %v340 = vld [vmem:[%s330 + $0x40] sm:$0xff]
        %v341 = vld [vmem:[%s330 + $0x48] sm:$0xff]
        %v342 = vld [vmem:[%s330 + $0x50] sm:$0xff]
        %v343 = vld [vmem:[%s330 + $0x58] sm:$0xff]
        %v344 = vld [vmem:[%s330 + $0x60] sm:$0xff]
        %v345 = vld [vmem:[%s330 + $0x68] sm:$0xff]
        %v346 = vld [vmem:[%s330 + $0x70] sm:$0xff]
        %v347 = vld [vmem:[%s330 + $0x78] sm:$0xff]
        %v348 = vadd.f32 %v332, %v333
        %349 = vadd.xlane.f32.xlu0 %v348
        %v350 = vpop.xlane.xlu0 %349
        %v351 = vadd.f32 %v334, %v335
        %352 = vadd.xlane.f32.xlu0 %v351
        %v353 = vpop.xlane.xlu0 %352
        %v354 = vadd.f32 %v336, %v337
        %355 = vadd.xlane.f32.xlu0 %v354
        %v356 = vpop.xlane.xlu0 %355
        %v357 = vadd.f32 %v338, %v339
        %358 = vadd.xlane.f32.xlu0 %v357
        %v359 = vpop.xlane.xlu0 %358
        %v360 = vadd.f32 %v340, %v341
        %361 = vadd.xlane.f32.xlu0 %v360
        %v362 = vpop.xlane.xlu0 %361
        %v363 = vadd.f32 %v342, %v343
        %364 = vadd.xlane.f32.xlu0 %v363
        %v365 = vpop.xlane.xlu0 %364
        %v366 = vadd.f32 %v344, %v345
        %367 = vadd.xlane.f32.xlu0 %v366
        %v368 = vpop.xlane.xlu0 %367
        %v369 = vadd.f32 %v346, %v347
        %370 = vadd.xlane.f32.xlu0 %v369
        %v371 = vpop.xlane.xlu0 %370
        %v372 = vmul.f32 %v332, %v332
        %v373 = vmul.f32 %v333, %v333
        %v374 = vmul.f32 %v334, %v334
        %v375 = vmul.f32 %v335, %v335
        %v376 = vmul.f32 %v336, %v336
        %v377 = vmul.f32 %v337, %v337
        %v378 = vmul.f32 %v338, %v338
        %v379 = vmul.f32 %v339, %v339
        %v380 = vmul.f32 %v340, %v340
        %v381 = vmul.f32 %v341, %v341
        %v382 = vmul.f32 %v342, %v342
        %v383 = vmul.f32 %v343, %v343
        %v384 = vmul.f32 %v344, %v344
        %v385 = vmul.f32 %v345, %v345
        %v386 = vmul.f32 %v346, %v346
        %v387 = vmul.f32 %v347, %v347
        %v388 = vadd.f32 %v372, %v373
        %389 = vadd.xlane.f32.xlu0 %v388
        %v390 = vpop.xlane.xlu0 %389
        %v391 = vadd.f32 %v374, %v375
        %392 = vadd.xlane.f32.xlu0 %v391
        %v393 = vpop.xlane.xlu0 %392
        %v394 = vadd.f32 %v376, %v377
        %395 = vadd.xlane.f32.xlu0 %v394
        %v396 = vpop.xlane.xlu0 %395
        %v397 = vadd.f32 %v378, %v379
        %398 = vadd.xlane.f32.xlu0 %v397
        %v399 = vpop.xlane.xlu0 %398
        %v400 = vadd.f32 %v380, %v381
        %401 = vadd.xlane.f32.xlu0 %v400
        %v402 = vpop.xlane.xlu0 %401
        %v403 = vadd.f32 %v382, %v383
        %404 = vadd.xlane.f32.xlu0 %v403
        %v405 = vpop.xlane.xlu0 %404
        %v406 = vadd.f32 %v384, %v385
        %407 = vadd.xlane.f32.xlu0 %v406
        %v408 = vpop.xlane.xlu0 %407
        %v409 = vadd.f32 %v386, %v387
        %410 = vadd.xlane.f32.xlu0 %v409
        %v411 = vpop.xlane.xlu0 %410
        %vm412 = vcmask 7168
        %v413 = vsel %vm412, %v350, %v390
        %v414 = vsel %vm412, %v353, %v393
        %v415 = vsel %vm412, %v356, %v396
        %v416 = vsel %vm412, %v359, %v399
        %v417 = vsel %vm412, %v362, %v402
        %v418 = vsel %vm412, %v365, %v405
        %v419 = vsel %vm412, %v368, %v408
        %v420 = vsel %vm412, %v371, %v411
        %v421 = vld [vmem:[%s1] sm:$0xff]
        %v422 = vld [vmem:[%s1 + $0x8] sm:$0xff]
        %v423 = vld [vmem:[%s1 + $0x10] sm:$0xff]
        %v424 = vld [vmem:[%s1 + $0x18] sm:$0xff]
        %vm425 = vcmask 523264
        %v427 = vsel %vm425, %v421, 0
        %v430 = vsel %vm425, %v422, 0
        %v433 = vsel %vm425, %v423, 0
        %v436 = vsel %vm425, %v424, 0
        %438 = vmatprep.subr.mxu0 0.0
        %439 = vmatpush1.msra.mxu0 %v413
        %440 = vmatprep.subr.mxu0 0.0
        %441 = vmatpush1.msra.mxu0 %v414
        %442 = vmatprep.subr.mxu0 0.0
        %443 = vmatpush1.msra.mxu0 %v415
        %444 = vmatprep.subr.mxu0 0.0
        %445 = vmatpush1.msra.mxu0 %v416
        %446 = vmatprep.subr.mxu0 0.0
        %447 = vmatpush1.msra.mxu0 %v417
        %448 = vmatprep.subr.mxu0 0.0
        %449 = vmatpush1.msra.mxu0 %v418
        %450 = vmatprep.subr.mxu0 0.0
        %451 = vmatpush1.msra.mxu0 %v419
        %452 = vmatprep.subr.mxu0 0.0
        %453 = vmatpush1.msra.mxu0 %v420
        %454 = vmatprep.subr.mxu0 0.0
        %455 = vmatpush1.msra.mxu0 0.0
        %456 = vmatprep.subr.mxu0 0.0
        %457 = vmatpush1.msra.mxu0 0.0
        %458 = vmatprep.subr.mxu0 0.0
        %459 = vmatpush1.msra.mxu0 0.0
        %460 = vmatprep.subr.mxu0 0.0
        %461 = vmatpush1.msra.mxu0 0.0
        %462 = vmatprep.subr.mxu0 0.0
        %463 = vmatpush1.msra.mxu0 0.0
        %464 = vmatprep.subr.mxu0 0.0
        %465 = vmatpush1.msra.mxu0 0.0
        %466 = vmatprep.subr.mxu0 0.0
        %467 = vmatpush1.msra.mxu0 0.0
        %468 = vmatprep.subr.mxu0 0.0
        %469 = vmatpush1.msra.mxu0 0.0
        %470 = vmatprep.subr.mxu0 0.0
        %471 = vmatpush1.msra.mxu0 0.0
        %472 = vmatprep.subr.mxu0 0.0
        %473 = vmatpush1.msra.mxu0 0.0
        %474 = vmatprep.subr.mxu0 0.0
        %475 = vmatpush1.msra.mxu0 0.0
        %476 = vmatprep.subr.mxu0 0.0
        %477 = vmatpush1.msra.mxu0 0.0
        %478 = vmatprep.subr.mxu0 0.0
        %479 = vmatpush1.msra.mxu0 0.0
        %480 = vmatprep.subr.mxu0 0.0
        %481 = vmatpush1.msra.mxu0 0.0
        %482 = vmatprep.subr.mxu0 0.0
        %483 = vmatpush1.msra.mxu0 0.0
        %484 = vmatprep.subr.mxu0 0.0
        %485 = vmatpush1.msra.mxu0 0.0
        %486 = vmatprep.subr.mxu0 0.0
        %487 = vmatpush1.msra.mxu0 0.0
        %488 = vmatprep.subr.mxu0 0.0
        %489 = vmatpush1.msra.mxu0 0.0
        %490 = vmatprep.subr.mxu0 0.0
        %491 = vmatpush1.msra.mxu0 0.0
        %492 = vmatprep.subr.mxu0 0.0
        %493 = vmatpush1.msra.mxu0 0.0
        %494 = vmatprep.subr.mxu0 0.0
        %495 = vmatpush1.msra.mxu0 0.0
        %496 = vmatprep.subr.mxu0 0.0
        %497 = vmatpush1.msra.mxu0 0.0
        %498 = vmatprep.subr.mxu0 0.0
        %499 = vmatpush1.msra.mxu0 0.0
        %500 = vmatprep.subr.mxu0 0.0
        %501 = vmatpush1.msra.mxu0 0.0
        %502 = vmatprep.mubr.f32.mxu0 0.0
        %503 = vmatmul.mubr.f32.gmra.mrb[0].mxu0 %v427
        %v504 = vpop.f32.mrb[0].mxu0
        %v505 = vadd.f32 0.0, %v504
        %v506 = vpop.f32.mrb[0].mxu0
        %507 = vmatprep.mubr.f32.mxu0 0.0
        %508 = vmatmul.mubr.f32.gmra.mrb[0].mxu0 %v430
        %v509 = vpop.f32.mrb[0].mxu0
        %v510 = vadd.f32 0.0, %v509
        %v511 = vpop.f32.mrb[0].mxu0
        %512 = vmatprep.mubr.f32.mxu0 0.0
        %513 = vmatmul.mubr.f32.gmra.mrb[0].mxu0 %v433
        %v514 = vpop.f32.mrb[0].mxu0
        %v515 = vadd.f32 0.0, %v514
        %v516 = vpop.f32.mrb[0].mxu0
        %517 = vmatprep.mubr.f32.mxu0 0.0
        %518 = vmatmul.mubr.f32.gmra.mrb[0].mxu0 %v436
        %v519 = vpop.f32.mrb[0].mxu0
        %v520 = vadd.f32 0.0, %v519
        %v521 = vpop.f32.mrb[0].mxu0
        %522 = vdwg.mxu0
        %v523 = vrcp.pop 512.0
        %v524 = vmul.f32 %v505, %v523
        %v525 = vmul.f32 %v510, %v523
        %v526 = vmul.f32 %v515, %v523
        %v527 = vmul.f32 %v520, %v523
        %v528 = vmul.f32 %v524, %v524
        %v529 = vmul.f32 %v525, %v525
        %v530 = vmul.f32 %v526, %v526
        %v531 = vmul.f32 %v527, %v527
        %536 = vrot.lane.b32.xlu0 %v528, 1
        %v537 = vpop.permute.xlu0 %536
        %538 = vrot.lane.b32.xlu0 %v529, 1
        %v539 = vpop.permute.xlu0 %538
        %540 = vrot.lane.b32.xlu0 %v530, 1
        %v541 = vpop.permute.xlu0 %540
        %542 = vrot.lane.b32.xlu0 %v531, 1
        %v543 = vpop.permute.xlu0 %542
        %v548 = vsub.f32 %v524, %v537
        %v549 = vsub.f32 %v525, %v539
        %v550 = vsub.f32 %v526, %v541
        %v551 = vsub.f32 %v527, %v543
        %v552 = vmax.f32 %v548, 0.0
        %v553 = vmax.f32 %v549, 0.0
        %v554 = vmax.f32 %v550, 0.0
        %v555 = vmax.f32 %v551, 0.0
        %v556 = vadd.f32 %v552, 1e-05
        %v557 = vadd.f32 %v553, 1e-05
        %v558 = vadd.f32 %v554, 1e-05
        %v559 = vadd.f32 %v555, 1e-05
        %v560 = vrsqrt.pop %v556
        %v561 = vrsqrt.pop %v557
        %v562 = vrsqrt.pop %v558
        %v563 = vrsqrt.pop %v559
        %v564 = vld [vmem:[%s2] sm:$0xff]
        %v565 = vld [vmem:[%s2 + $0x8] sm:$0xff]
        %v566 = vld [vmem:[%s2 + $0x10] sm:$0xff]
        %v567 = vld [vmem:[%s2 + $0x18] sm:$0xff]
        %v568 = vld [vmem:[%s2 + $0x20] sm:$0xff]
        %v569 = vld [vmem:[%s2 + $0x28] sm:$0xff]
        %v570 = vld [vmem:[%s2 + $0x30] sm:$0xff]
        %v571 = vld [vmem:[%s2 + $0x38] sm:$0xff]
        %v572 = vsel %vm412, %v524, %v560
        %v573 = vsel %vm412, %v525, %v561
        %v574 = vsel %vm412, %v526, %v562
        %v575 = vsel %vm412, %v527, %v563
        %vm576 = vcmask 261120
        %v578 = vsel %vm576, %v564, 0
        %v581 = vsel %vm576, %v565, 0
        %v584 = vsel %vm576, %v566, 0
        %v587 = vsel %vm576, %v567, 0
        %v590 = vsel %vm576, %v568, 0
        %v593 = vsel %vm576, %v569, 0
        %v596 = vsel %vm576, %v570, 0
        %v599 = vsel %vm576, %v571, 0
        %601 = vmatprep.subr.mxu0 0.0
        %602 = vmatpush1.msra.mxu0 %v572
        %603 = vmatprep.subr.mxu0 0.0
        %604 = vmatpush1.msra.mxu0 %v573
        %605 = vmatprep.subr.mxu0 0.0
        %606 = vmatpush1.msra.mxu0 %v574
        %607 = vmatprep.subr.mxu0 0.0
        %608 = vmatpush1.msra.mxu0 %v575
        %609 = vmatprep.subr.mxu0 0.0
        %610 = vmatpush1.msra.mxu0 0.0
        %611 = vmatprep.subr.mxu0 0.0
        %612 = vmatpush1.msra.mxu0 0.0
        %613 = vmatprep.subr.mxu0 0.0
        %614 = vmatpush1.msra.mxu0 0.0
        %615 = vmatprep.subr.mxu0 0.0
        %616 = vmatpush1.msra.mxu0 0.0
        %617 = vmatprep.subr.mxu0 0.0
        %618 = vmatpush1.msra.mxu0 0.0
        %619 = vmatprep.subr.mxu0 0.0
        %620 = vmatpush1.msra.mxu0 0.0
        %621 = vmatprep.subr.mxu0 0.0
        %622 = vmatpush1.msra.mxu0 0.0
        %623 = vmatprep.subr.mxu0 0.0
        %624 = vmatpush1.msra.mxu0 0.0
        %625 = vmatprep.subr.mxu0 0.0
        %626 = vmatpush1.msra.mxu0 0.0
        %627 = vmatprep.subr.mxu0 0.0
        %628 = vmatpush1.msra.mxu0 0.0
        %629 = vmatprep.subr.mxu0 0.0
        %630 = vmatpush1.msra.mxu0 0.0
        %631 = vmatprep.subr.mxu0 0.0
        %632 = vmatpush1.msra.mxu0 0.0
        %633 = vmatprep.subr.mxu0 0.0
        %634 = vmatpush1.msra.mxu0 0.0
        %635 = vmatprep.subr.mxu0 0.0
        %636 = vmatpush1.msra.mxu0 0.0
        %637 = vmatprep.subr.mxu0 0.0
        %638 = vmatpush1.msra.mxu0 0.0
        %639 = vmatprep.subr.mxu0 0.0
        %640 = vmatpush1.msra.mxu0 0.0
        %641 = vmatprep.subr.mxu0 0.0
        %642 = vmatpush1.msra.mxu0 0.0
        %643 = vmatprep.subr.mxu0 0.0
        %644 = vmatpush1.msra.mxu0 0.0
        %645 = vmatprep.subr.mxu0 0.0
        %646 = vmatpush1.msra.mxu0 0.0
        %647 = vmatprep.subr.mxu0 0.0
        %648 = vmatpush1.msra.mxu0 0.0
        %649 = vmatprep.subr.mxu0 0.0
        %650 = vmatpush1.msra.mxu0 0.0
        %651 = vmatprep.subr.mxu0 0.0
        %652 = vmatpush1.msra.mxu0 0.0
        %653 = vmatprep.subr.mxu0 0.0
        %654 = vmatpush1.msra.mxu0 0.0
        %655 = vmatprep.subr.mxu0 0.0
        %656 = vmatpush1.msra.mxu0 0.0
        %657 = vmatprep.subr.mxu0 0.0
        %658 = vmatpush1.msra.mxu0 0.0
        %659 = vmatprep.subr.mxu0 0.0
        %660 = vmatpush1.msra.mxu0 0.0
        %661 = vmatprep.subr.mxu0 0.0
        %662 = vmatpush1.msra.mxu0 0.0
        %663 = vmatprep.subr.mxu0 0.0
        %664 = vmatpush1.msra.mxu0 0.0
        %665 = vmatprep.mubr.f32.mxu0 0.0
        %666 = vmatmul.mubr.f32.gmra.mrb[0].mxu0 %v578
        %v667 = vpop.f32.mrb[0].mxu0
        %v668 = vadd.f32 0.0, %v667
        %v669 = vpop.f32.mrb[0].mxu0
        %670 = vmatprep.mubr.f32.mxu0 0.0
        %671 = vmatmul.mubr.f32.gmra.mrb[0].mxu0 %v581
        %v672 = vpop.f32.mrb[0].mxu0
        %v673 = vadd.f32 0.0, %v672
        %v674 = vpop.f32.mrb[0].mxu0
        %675 = vmatprep.mubr.f32.mxu0 0.0
        %676 = vmatmul.mubr.f32.gmra.mrb[0].mxu0 %v584
        %v677 = vpop.f32.mrb[0].mxu0
        %v678 = vadd.f32 0.0, %v677
        %v679 = vpop.f32.mrb[0].mxu0
        %680 = vmatprep.mubr.f32.mxu0 0.0
        %681 = vmatmul.mubr.f32.gmra.mrb[0].mxu0 %v587
        %v682 = vpop.f32.mrb[0].mxu0
        %v683 = vadd.f32 0.0, %v682
        %v684 = vpop.f32.mrb[0].mxu0
        %685 = vmatprep.mubr.f32.mxu0 0.0
        %686 = vmatmul.mubr.f32.gmra.mrb[0].mxu0 %v590
        %v687 = vpop.f32.mrb[0].mxu0
        %v688 = vadd.f32 0.0, %v687
        %v689 = vpop.f32.mrb[0].mxu0
        %690 = vmatprep.mubr.f32.mxu0 0.0
        %691 = vmatmul.mubr.f32.gmra.mrb[0].mxu0 %v593
        %v692 = vpop.f32.mrb[0].mxu0
        %v693 = vadd.f32 0.0, %v692
        %v694 = vpop.f32.mrb[0].mxu0
        %695 = vmatprep.mubr.f32.mxu0 0.0
        %696 = vmatmul.mubr.f32.gmra.mrb[0].mxu0 %v596
        %v697 = vpop.f32.mrb[0].mxu0
        %v698 = vadd.f32 0.0, %v697
        %v699 = vpop.f32.mrb[0].mxu0
        %700 = vmatprep.mubr.f32.mxu0 0.0
        %701 = vmatmul.mubr.f32.gmra.mrb[0].mxu0 %v599
        %v702 = vpop.f32.mrb[0].mxu0
        %v703 = vadd.f32 0.0, %v702
        %v704 = vpop.f32.mrb[0].mxu0
        %705 = vdwg.mxu0
        %v706 = vld [vmem:[%s3] sm:$0xff]
        %v707 = vld [vmem:[%s3 + $0x8] sm:$0xff]
        %v708 = vld [vmem:[%s3 + $0x10] sm:$0xff]
        %v709 = vld [vmem:[%s3 + $0x18] sm:$0xff]
        %v710 = vld [vmem:[%s3 + $0x20] sm:$0xff]
        %v711 = vld [vmem:[%s3 + $0x28] sm:$0xff]
        %v712 = vld [vmem:[%s3 + $0x30] sm:$0xff]
        %v713 = vld [vmem:[%s3 + $0x38] sm:$0xff]
        %722 = vrot.lane.b32.xlu0 %v668, 127
        %v723 = vpop.permute.xlu0 %722
        %724 = vrot.lane.b32.xlu0 %v673, 127
        %v725 = vpop.permute.xlu0 %724
        %726 = vrot.lane.b32.xlu0 %v678, 127
        %v727 = vpop.permute.xlu0 %726
        %728 = vrot.lane.b32.xlu0 %v683, 127
        %v729 = vpop.permute.xlu0 %728
        %730 = vrot.lane.b32.xlu0 %v688, 127
        %v731 = vpop.permute.xlu0 %730
        %732 = vrot.lane.b32.xlu0 %v693, 127
        %v733 = vpop.permute.xlu0 %732
        %734 = vrot.lane.b32.xlu0 %v698, 127
        %v735 = vpop.permute.xlu0 %734
        %736 = vrot.lane.b32.xlu0 %v703, 127
        %v737 = vpop.permute.xlu0 %736
        %v746 = vmul.f32 %v706, %v723
        %v747 = vmul.f32 %v707, %v725
        %v748 = vmul.f32 %v708, %v727
        %v749 = vmul.f32 %v709, %v729
        %v750 = vmul.f32 %v710, %v731
        %v751 = vmul.f32 %v711, %v733
        %v752 = vmul.f32 %v712, %v735
        %v753 = vmul.f32 %v713, %v737
        %v754 = vld [vmem:[%s4] sm:$0xff]
        %v755 = vld [vmem:[%s4 + $0x8] sm:$0xff]
        %v756 = vld [vmem:[%s4 + $0x10] sm:$0xff]
        %v757 = vld [vmem:[%s4 + $0x18] sm:$0xff]
        %v758 = vld [vmem:[%s4 + $0x20] sm:$0xff]
        %v759 = vld [vmem:[%s4 + $0x28] sm:$0xff]
        %v760 = vld [vmem:[%s4 + $0x30] sm:$0xff]
        %v761 = vld [vmem:[%s4 + $0x38] sm:$0xff]
        %v762 = vmul.f32 %v668, %v746
        %v763 = vmul.f32 %v673, %v747
        %v764 = vmul.f32 %v678, %v748
        %v765 = vmul.f32 %v683, %v749
        %v766 = vmul.f32 %v688, %v750
        %v767 = vmul.f32 %v693, %v751
        %v768 = vmul.f32 %v698, %v752
        %v769 = vmul.f32 %v703, %v753
        %v770 = vsub.f32 %v754, %v762
        %v771 = vsub.f32 %v755, %v763
        %v772 = vsub.f32 %v756, %v764
        %v773 = vsub.f32 %v757, %v765
        %v774 = vsub.f32 %v758, %v766
        %v775 = vsub.f32 %v759, %v767
        %v776 = vsub.f32 %v760, %v768
        %v777 = vsub.f32 %v761, %v769
        %779 = vset.pattern.permute.xlu0 0
        %780 = vperm.xlu0 %779, %v746
        %v781 = vpop.permute.xlu0 %780
        %784 = vset.pattern.permute.xlu0 0
        %785 = vperm.xlu0 %784, %v747
        %v786 = vpop.permute.xlu0 %785
        %789 = vset.pattern.permute.xlu0 0
        %790 = vperm.xlu0 %789, %v748
        %v791 = vpop.permute.xlu0 %790
        %794 = vset.pattern.permute.xlu0 0
        %795 = vperm.xlu0 %794, %v749
        %v796 = vpop.permute.xlu0 %795
        %799 = vset.pattern.permute.xlu0 0
        %800 = vperm.xlu0 %799, %v750
        %v801 = vpop.permute.xlu0 %800
        %804 = vset.pattern.permute.xlu0 0
        %805 = vperm.xlu0 %804, %v751
        %v806 = vpop.permute.xlu0 %805
        %809 = vset.pattern.permute.xlu0 0
        %810 = vperm.xlu0 %809, %v752
        %v811 = vpop.permute.xlu0 %810
        %814 = vset.pattern.permute.xlu0 0
        %815 = vperm.xlu0 %814, %v753
        %v816 = vpop.permute.xlu0 %815
        %v818 = vmul.f32 %v332, %v781
        %v819 = vmul.f32 %v333, %v781
        %v820 = vmul.f32 %v334, %v786
        %v821 = vmul.f32 %v335, %v786
        %v822 = vmul.f32 %v336, %v791
        %v823 = vmul.f32 %v337, %v791
        %v824 = vmul.f32 %v338, %v796
        %v825 = vmul.f32 %v339, %v796
        %v826 = vmul.f32 %v340, %v801
        %v827 = vmul.f32 %v341, %v801
        %v828 = vmul.f32 %v342, %v806
        %v829 = vmul.f32 %v343, %v806
        %v830 = vmul.f32 %v344, %v811
        %v831 = vmul.f32 %v345, %v811
        %v832 = vmul.f32 %v346, %v816
        %v833 = vmul.f32 %v347, %v816
        %835 = vset.pattern.permute.xlu0 0
        %836 = vperm.xlu0 %835, %v770
        %v837 = vpop.permute.xlu0 %836
        %840 = vset.pattern.permute.xlu0 0
        %841 = vperm.xlu0 %840, %v771
        %v842 = vpop.permute.xlu0 %841
        %845 = vset.pattern.permute.xlu0 0
        %846 = vperm.xlu0 %845, %v772
        %v847 = vpop.permute.xlu0 %846
        %850 = vset.pattern.permute.xlu0 0
        %851 = vperm.xlu0 %850, %v773
        %v852 = vpop.permute.xlu0 %851
        %855 = vset.pattern.permute.xlu0 0
        %856 = vperm.xlu0 %855, %v774
        %v857 = vpop.permute.xlu0 %856
        %860 = vset.pattern.permute.xlu0 0
        %861 = vperm.xlu0 %860, %v775
        %v862 = vpop.permute.xlu0 %861
        %865 = vset.pattern.permute.xlu0 0
        %866 = vperm.xlu0 %865, %v776
        %v867 = vpop.permute.xlu0 %866
        %870 = vset.pattern.permute.xlu0 0
        %871 = vperm.xlu0 %870, %v777
        %v872 = vpop.permute.xlu0 %871
        %v874 = vadd.f32 %v818, %v837
        %v875 = vadd.f32 %v819, %v837
        %v876 = vadd.f32 %v820, %v842
        %v877 = vadd.f32 %v821, %v842
        %v878 = vadd.f32 %v822, %v847
        %v879 = vadd.f32 %v823, %v847
        %v880 = vadd.f32 %v824, %v852
        %v881 = vadd.f32 %v825, %v852
        %v882 = vadd.f32 %v826, %v857
        %v883 = vadd.f32 %v827, %v857
        %v884 = vadd.f32 %v828, %v862
        %v885 = vadd.f32 %v829, %v862
        %v886 = vadd.f32 %v830, %v867
        %v887 = vadd.f32 %v831, %v867
        %v888 = vadd.f32 %v832, %v872
        %v889 = vadd.f32 %v833, %v872
        %v890 = vpack.c.bf16 %v876, %v874
        %v891 = vpack.c.bf16 %v877, %v875
        %v892 = vpack.c.bf16 %v880, %v878
        %v893 = vpack.c.bf16 %v881, %v879
        %v894 = vpack.c.bf16 %v884, %v882
        %v895 = vpack.c.bf16 %v885, %v883
        %v896 = vpack.c.bf16 %v888, %v886
        %v897 = vpack.c.bf16 %v889, %v887
        %v898 = vld [vmem:[%s5] sm:$0xf]
        %v899 = vld [vmem:[%s5 + $0x4] sm:$0xf]
        %v900 = vld [vmem:[%s5 + $0x8] sm:$0xf]
        %v901 = vld [vmem:[%s5 + $0xc] sm:$0xf]
        %v902 = vld [vmem:[%s5 + $0x10] sm:$0xf]
        %v903 = vld [vmem:[%s5 + $0x14] sm:$0xf]
        %v904 = vld [vmem:[%s5 + $0x18] sm:$0xf]
        %v905 = vld [vmem:[%s5 + $0x1c] sm:$0xf]
        %v906 = vld [vmem:[%s5 + $0x20] sm:$0xf]
        %v907 = vld [vmem:[%s5 + $0x24] sm:$0xf]
        %v908 = vld [vmem:[%s5 + $0x28] sm:$0xf]
        %v909 = vld [vmem:[%s5 + $0x2c] sm:$0xf]
        %v910 = vld [vmem:[%s5 + $0x30] sm:$0xf]
        %v911 = vld [vmem:[%s5 + $0x34] sm:$0xf]
        %v912 = vld [vmem:[%s5 + $0x38] sm:$0xf]
        %v913 = vld [vmem:[%s5 + $0x3c] sm:$0xf]
        %v914 = vld [vmem:[%s5 + $0x40] sm:$0xf]
        %v915 = vld [vmem:[%s5 + $0x44] sm:$0xf]
        %v916 = vld [vmem:[%s5 + $0x48] sm:$0xf]
        %v917 = vld [vmem:[%s5 + $0x4c] sm:$0xf]
        %v918 = vld [vmem:[%s5 + $0x50] sm:$0xf]
        %v919 = vld [vmem:[%s5 + $0x54] sm:$0xf]
        %v920 = vld [vmem:[%s5 + $0x58] sm:$0xf]
        %v921 = vld [vmem:[%s5 + $0x5c] sm:$0xf]
        %v922 = vld [vmem:[%s6] sm:$0xff]
        %v923 = vld [vmem:[%s6 + $0x8] sm:$0xff]
        %v924 = vld [vmem:[%s6 + $0x10] sm:$0xff]
        %v925 = vld [vmem:[%s6 + $0x18] sm:$0xff]
        %v926 = vld [vmem:[%s6 + $0x20] sm:$0xff]
        %v927 = vld [vmem:[%s6 + $0x28] sm:$0xff]
        %v928 = vld [vmem:[%s6 + $0x30] sm:$0xff]
        %v929 = vld [vmem:[%s6 + $0x38] sm:$0xff]
        %v930 = vld [vmem:[%s6 + $0x40] sm:$0xff]
        %v931 = vld [vmem:[%s6 + $0x48] sm:$0xff]
        %v932 = vld [vmem:[%s6 + $0x50] sm:$0xff]
        %v933 = vld [vmem:[%s6 + $0x58] sm:$0xff]
        %v934 = vld [vmem:[%s6 + $0x60] sm:$0xff]
        %v935 = vld [vmem:[%s6 + $0x68] sm:$0xff]
        %v936 = vld [vmem:[%s6 + $0x70] sm:$0xff]
        %v937 = vld [vmem:[%s6 + $0x78] sm:$0xff]
        %v938 = vld [vmem:[%s6 + $0x80] sm:$0xff]
        %v939 = vld [vmem:[%s6 + $0x88] sm:$0xff]
        %v940 = vld [vmem:[%s6 + $0x90] sm:$0xff]
        %v941 = vld [vmem:[%s6 + $0x98] sm:$0xff]
        %v942 = vld [vmem:[%s6 + $0xa0] sm:$0xff]
        %v943 = vld [vmem:[%s6 + $0xa8] sm:$0xff]
        %v944 = vld [vmem:[%s6 + $0xb0] sm:$0xff]
        %v945 = vld [vmem:[%s6 + $0xb8] sm:$0xff]
        %947 = vset.pattern.permute.xlu0 0
        %948 = vperm.xlu0 %947, %v922
        %v949 = vpop.permute.xlu0 %948
        %952 = vset.pattern.permute.xlu0 0
        %953 = vperm.xlu0 %952, %v923
        %v954 = vpop.permute.xlu0 %953
        %957 = vset.pattern.permute.xlu0 0
        %958 = vperm.xlu0 %957, %v924
        %v959 = vpop.permute.xlu0 %958
        %962 = vset.pattern.permute.xlu0 0
        %963 = vperm.xlu0 %962, %v925
        %v964 = vpop.permute.xlu0 %963
        %967 = vset.pattern.permute.xlu0 0
        %968 = vperm.xlu0 %967, %v926
        %v969 = vpop.permute.xlu0 %968
        %972 = vset.pattern.permute.xlu0 0
        %973 = vperm.xlu0 %972, %v927
        %v974 = vpop.permute.xlu0 %973
        %977 = vset.pattern.permute.xlu0 0
        %978 = vperm.xlu0 %977, %v928
        %v979 = vpop.permute.xlu0 %978
        %982 = vset.pattern.permute.xlu0 0
        %983 = vperm.xlu0 %982, %v929
        %v984 = vpop.permute.xlu0 %983
        %987 = vset.pattern.permute.xlu0 0
        %988 = vperm.xlu0 %987, %v930
        %v989 = vpop.permute.xlu0 %988
        %992 = vset.pattern.permute.xlu0 0
        %993 = vperm.xlu0 %992, %v931
        %v994 = vpop.permute.xlu0 %993
        %997 = vset.pattern.permute.xlu0 0
        %998 = vperm.xlu0 %997, %v932
        %v999 = vpop.permute.xlu0 %998
        %1002 = vset.pattern.permute.xlu0 0
        %1003 = vperm.xlu0 %1002, %v933
        %v1004 = vpop.permute.xlu0 %1003
        %1007 = vset.pattern.permute.xlu0 0
        %1008 = vperm.xlu0 %1007, %v934
        %v1009 = vpop.permute.xlu0 %1008
        %1012 = vset.pattern.permute.xlu0 0
        %1013 = vperm.xlu0 %1012, %v935
        %v1014 = vpop.permute.xlu0 %1013
        %1017 = vset.pattern.permute.xlu0 0
        %1018 = vperm.xlu0 %1017, %v936
        %v1019 = vpop.permute.xlu0 %1018
        %1022 = vset.pattern.permute.xlu0 0
        %1023 = vperm.xlu0 %1022, %v937
        %v1024 = vpop.permute.xlu0 %1023
        %1027 = vset.pattern.permute.xlu0 0
        %1028 = vperm.xlu0 %1027, %v938
        %v1029 = vpop.permute.xlu0 %1028
        %1032 = vset.pattern.permute.xlu0 0
        %1033 = vperm.xlu0 %1032, %v939
        %v1034 = vpop.permute.xlu0 %1033
        %1037 = vset.pattern.permute.xlu0 0
        %1038 = vperm.xlu0 %1037, %v940
        %v1039 = vpop.permute.xlu0 %1038
        %1042 = vset.pattern.permute.xlu0 0
        %1043 = vperm.xlu0 %1042, %v941
        %v1044 = vpop.permute.xlu0 %1043
        %1047 = vset.pattern.permute.xlu0 0
        %1048 = vperm.xlu0 %1047, %v942
        %v1049 = vpop.permute.xlu0 %1048
        %1052 = vset.pattern.permute.xlu0 0
        %1053 = vperm.xlu0 %1052, %v943
        %v1054 = vpop.permute.xlu0 %1053
        %1057 = vset.pattern.permute.xlu0 0
        %1058 = vperm.xlu0 %1057, %v944
        %v1059 = vpop.permute.xlu0 %1058
        %1062 = vset.pattern.permute.xlu0 0
        %1063 = vperm.xlu0 %1062, %v945
        %v1064 = vpop.permute.xlu0 %1063
        %v1090 = vunpack.c.l.b16 %v898
        %v1091 = vunpack.c.l.b16 %v899
        %v1092 = vunpack.c.l.b16 %v900
        %v1093 = vunpack.c.l.b16 %v901
        %v1094 = vunpack.c.l.b16 %v902
        %v1095 = vunpack.c.l.b16 %v903
        %v1096 = vunpack.c.l.b16 %v904
        %v1097 = vunpack.c.l.b16 %v905
        %v1098 = vunpack.c.l.b16 %v906
        %v1099 = vunpack.c.l.b16 %v907
        %v1100 = vunpack.c.l.b16 %v908
        %v1101 = vunpack.c.l.b16 %v909
        %v1102 = vunpack.c.l.b16 %v910
        %v1103 = vunpack.c.l.b16 %v911
        %v1104 = vunpack.c.l.b16 %v912
        %v1105 = vunpack.c.l.b16 %v913
        %v1106 = vunpack.c.l.b16 %v914
        %v1107 = vunpack.c.l.b16 %v915
        %v1108 = vunpack.c.l.b16 %v916
        %v1109 = vunpack.c.l.b16 %v917
        %v1110 = vunpack.c.l.b16 %v918
        %v1111 = vunpack.c.l.b16 %v919
        %v1112 = vunpack.c.l.b16 %v920
        %v1113 = vunpack.c.l.b16 %v921
        %v1114 = vpack.c.b16 %v1091, %v1090
        %v1115 = vpack.c.b16 %v1093, %v1092
        %v1116 = vpack.c.b16 %v1095, %v1094
        %v1117 = vpack.c.b16 %v1097, %v1096
        %v1118 = vpack.c.b16 %v1099, %v1098
        %v1119 = vpack.c.b16 %v1101, %v1100
        %v1120 = vpack.c.b16 %v1103, %v1102
        %v1121 = vpack.c.b16 %v1105, %v1104
        %v1122 = vpack.c.b16 %v1107, %v1106
        %v1123 = vpack.c.b16 %v1109, %v1108
        %v1124 = vpack.c.b16 %v1111, %v1110
        %v1125 = vpack.c.b16 %v1113, %v1112
        %v1127 = vsel %vm425, %v1114, 0
        %v1130 = vsel %vm425, %v1115, 0
        %v1133 = vsel %vm425, %v1116, 0
        %v1136 = vsel %vm425, %v1117, 0
        %v1139 = vsel %vm425, %v1118, 0
        %v1142 = vsel %vm425, %v1119, 0
        %v1145 = vsel %vm425, %v1120, 0
        %v1148 = vsel %vm425, %v1121, 0
        %v1151 = vsel %vm425, %v1122, 0
        %v1154 = vsel %vm425, %v1123, 0
        %v1157 = vsel %vm425, %v1124, 0
        %v1160 = vsel %vm425, %v1125, 0
        %1162 = vmatprep.subr.bf16.mxu0 %v891
        %1163 = vmatpush1.bf16.msra.mxu0 %v890
        %1164 = vmatprep.subr.bf16.mxu0 %v893
        %1165 = vmatpush1.bf16.msra.mxu0 %v892
        %1166 = vmatprep.subr.bf16.mxu0 %v895
        %1167 = vmatpush1.bf16.msra.mxu0 %v894
        %1168 = vmatprep.subr.bf16.mxu0 %v897
        %1169 = vmatpush1.bf16.msra.mxu0 %v896
        %1170 = vmatprep.subr.bf16.mxu0 0
        %1171 = vmatpush1.bf16.msra.mxu0 0
        %1172 = vmatprep.subr.bf16.mxu0 0
        %1173 = vmatpush1.bf16.msra.mxu0 0
        %1174 = vmatprep.subr.bf16.mxu0 0
        %1175 = vmatpush1.bf16.msra.mxu0 0
        %1176 = vmatprep.subr.bf16.mxu0 0
        %1177 = vmatpush1.bf16.msra.mxu0 0
        %1178 = vmatprep.subr.bf16.mxu0 0
        %1179 = vmatpush1.bf16.msra.mxu0 0
        %1180 = vmatprep.subr.bf16.mxu0 0
        %1181 = vmatpush1.bf16.msra.mxu0 0
        %1182 = vmatprep.subr.bf16.mxu0 0
        %1183 = vmatpush1.bf16.msra.mxu0 0
        %1184 = vmatprep.subr.bf16.mxu0 0
        %1185 = vmatpush1.bf16.msra.mxu0 0
        %1186 = vmatprep.subr.bf16.mxu0 0
        %1187 = vmatpush1.bf16.msra.mxu0 0
        %1188 = vmatprep.subr.bf16.mxu0 0
        %1189 = vmatpush1.bf16.msra.mxu0 0
        %1190 = vmatprep.subr.bf16.mxu0 0
        %1191 = vmatpush1.bf16.msra.mxu0 0
        %1192 = vmatprep.subr.bf16.mxu0 0
        %1193 = vmatpush1.bf16.msra.mxu0 0
        %1194 = vmatprep.mubr.bf16.mxu0 0
        %1195 = vmatmul.mubr.bf16.gmra.mrb[0].mxu0 %v1127
        %v1196 = vpop.f32.mrb[0].mxu0
        %v1197 = vadd.f32 %v949, %v1196
        %v1198 = vpop.f32.mrb[0].mxu0
        %v1199 = vadd.f32 %v949, %v1198
        %v1200 = vpop.f32.mrb[0].mxu0
        %v1201 = vadd.f32 %v954, %v1200
        %v1202 = vpop.f32.mrb[0].mxu0
        %v1203 = vadd.f32 %v954, %v1202
        %1204 = vmatprep.mubr.bf16.mxu0 0
        %1205 = vmatmul.mubr.bf16.gmra.mrb[0].mxu0 %v1130
        %v1206 = vpop.f32.mrb[0].mxu0
        %v1207 = vadd.f32 %v959, %v1206
        %v1208 = vpop.f32.mrb[0].mxu0
        %v1209 = vadd.f32 %v959, %v1208
        %v1210 = vpop.f32.mrb[0].mxu0
        %v1211 = vadd.f32 %v964, %v1210
        %v1212 = vpop.f32.mrb[0].mxu0
        %v1213 = vadd.f32 %v964, %v1212
        %1214 = vmatprep.mubr.bf16.mxu0 0
        %1215 = vmatmul.mubr.bf16.gmra.mrb[0].mxu0 %v1133
        %v1216 = vpop.f32.mrb[0].mxu0
        %v1217 = vadd.f32 %v969, %v1216
        %v1218 = vpop.f32.mrb[0].mxu0
        %v1219 = vadd.f32 %v969, %v1218
        %v1220 = vpop.f32.mrb[0].mxu0
        %v1221 = vadd.f32 %v974, %v1220
        %v1222 = vpop.f32.mrb[0].mxu0
        %v1223 = vadd.f32 %v974, %v1222
        %1224 = vmatprep.mubr.bf16.mxu0 0
        %1225 = vmatmul.mubr.bf16.gmra.mrb[0].mxu0 %v1136
        %v1226 = vpop.f32.mrb[0].mxu0
        %v1227 = vadd.f32 %v979, %v1226
        %v1228 = vpop.f32.mrb[0].mxu0
        %v1229 = vadd.f32 %v979, %v1228
        %v1230 = vpop.f32.mrb[0].mxu0
        %v1231 = vadd.f32 %v984, %v1230
        %v1232 = vpop.f32.mrb[0].mxu0
        %v1233 = vadd.f32 %v984, %v1232
        %1234 = vmatprep.mubr.bf16.mxu0 0
        %1235 = vmatmul.mubr.bf16.gmra.mrb[0].mxu0 %v1139
        %v1236 = vpop.f32.mrb[0].mxu0
        %v1237 = vadd.f32 %v989, %v1236
        %v1238 = vpop.f32.mrb[0].mxu0
        %v1239 = vadd.f32 %v989, %v1238
        %v1240 = vpop.f32.mrb[0].mxu0
        %v1241 = vadd.f32 %v994, %v1240
        %v1242 = vpop.f32.mrb[0].mxu0
        %v1243 = vadd.f32 %v994, %v1242
        %1244 = vmatprep.mubr.bf16.mxu0 0
        %1245 = vmatmul.mubr.bf16.gmra.mrb[0].mxu0 %v1142
        %v1246 = vpop.f32.mrb[0].mxu0
        %v1247 = vadd.f32 %v999, %v1246
        %v1248 = vpop.f32.mrb[0].mxu0
        %v1249 = vadd.f32 %v999, %v1248
        %v1250 = vpop.f32.mrb[0].mxu0
        %v1251 = vadd.f32 %v1004, %v1250
        %v1252 = vpop.f32.mrb[0].mxu0
        %v1253 = vadd.f32 %v1004, %v1252
        %1254 = vmatprep.mubr.bf16.mxu0 0
        %1255 = vmatmul.mubr.bf16.gmra.mrb[0].mxu0 %v1145
        %v1256 = vpop.f32.mrb[0].mxu0
        %v1257 = vadd.f32 %v1009, %v1256
        %v1258 = vpop.f32.mrb[0].mxu0
        %v1259 = vadd.f32 %v1009, %v1258
        %v1260 = vpop.f32.mrb[0].mxu0
        %v1261 = vadd.f32 %v1014, %v1260
        %v1262 = vpop.f32.mrb[0].mxu0
        %v1263 = vadd.f32 %v1014, %v1262
        %1264 = vmatprep.mubr.bf16.mxu0 0
        %1265 = vmatmul.mubr.bf16.gmra.mrb[0].mxu0 %v1148
        %v1266 = vpop.f32.mrb[0].mxu0
        %v1267 = vadd.f32 %v1019, %v1266
        %v1268 = vpop.f32.mrb[0].mxu0
        %v1269 = vadd.f32 %v1019, %v1268
        %v1270 = vpop.f32.mrb[0].mxu0
        %v1271 = vadd.f32 %v1024, %v1270
        %v1272 = vpop.f32.mrb[0].mxu0
        %v1273 = vadd.f32 %v1024, %v1272
        %1274 = vmatprep.mubr.bf16.mxu0 0
        %1275 = vmatmul.mubr.bf16.gmra.mrb[0].mxu0 %v1151
        %v1276 = vpop.f32.mrb[0].mxu0
        %v1277 = vadd.f32 %v1029, %v1276
        %v1278 = vpop.f32.mrb[0].mxu0
        %v1279 = vadd.f32 %v1029, %v1278
        %v1280 = vpop.f32.mrb[0].mxu0
        %v1281 = vadd.f32 %v1034, %v1280
        %v1282 = vpop.f32.mrb[0].mxu0
        %v1283 = vadd.f32 %v1034, %v1282
        %1284 = vmatprep.mubr.bf16.mxu0 0
        %1285 = vmatmul.mubr.bf16.gmra.mrb[0].mxu0 %v1154
        %v1286 = vpop.f32.mrb[0].mxu0
        %v1287 = vadd.f32 %v1039, %v1286
        %v1288 = vpop.f32.mrb[0].mxu0
        %v1289 = vadd.f32 %v1039, %v1288
        %v1290 = vpop.f32.mrb[0].mxu0
        %v1291 = vadd.f32 %v1044, %v1290
        %v1292 = vpop.f32.mrb[0].mxu0
        %v1293 = vadd.f32 %v1044, %v1292
        %1294 = vmatprep.mubr.bf16.mxu0 0
        %1295 = vmatmul.mubr.bf16.gmra.mrb[0].mxu0 %v1157
        %v1296 = vpop.f32.mrb[0].mxu0
        %v1297 = vadd.f32 %v1049, %v1296
        %v1298 = vpop.f32.mrb[0].mxu0
        %v1299 = vadd.f32 %v1049, %v1298
        %v1300 = vpop.f32.mrb[0].mxu0
        %v1301 = vadd.f32 %v1054, %v1300
        %v1302 = vpop.f32.mrb[0].mxu0
        %v1303 = vadd.f32 %v1054, %v1302
        %1304 = vmatprep.mubr.bf16.mxu0 0
        %1305 = vmatmul.mubr.bf16.gmra.mrb[0].mxu0 %v1160
        %v1306 = vpop.f32.mrb[0].mxu0
        %v1307 = vadd.f32 %v1059, %v1306
        %v1308 = vpop.f32.mrb[0].mxu0
        %v1309 = vadd.f32 %v1059, %v1308
        %v1310 = vpop.f32.mrb[0].mxu0
        %v1311 = vadd.f32 %v1064, %v1310
        %v1312 = vpop.f32.mrb[0].mxu0
        %v1313 = vadd.f32 %v1064, %v1312
        %1314 = vdwg.mxu0
        %v1315 = vpack.c.bf16 %v1221, %v1217
        %v1316 = vpack.c.bf16 %v1223, %v1219
        %v1317 = vpack.c.bf16 %v1231, %v1227
        %v1318 = vpack.c.bf16 %v1233, %v1229
        %1319 = vxpose.xlu0.b32.start [1/16] %v1197, 128
        %1320 = vxpose.xlu0.b32.cont [2/16] %v1201, 128
        %1321 = vxpose.xlu0.b32.cont [3/16] %v1207, 128
        %1322 = vxpose.xlu0.b32.cont [4/16] %v1211, 128
        %1323 = vxpose.xlu0.b32.cont [5/16] 0.0, 128
        %1324 = vxpose.xlu0.b32.cont [6/16] 0.0, 128
        %1325 = vxpose.xlu0.b32.cont [7/16] 0.0, 128
        %1326 = vxpose.xlu0.b32.cont [8/16] 0.0, 128
        %1327 = vxpose.xlu0.b32.cont [9/16] 0.0, 128
        %1328 = vxpose.xlu0.b32.cont [10/16] 0.0, 128
        %1329 = vxpose.xlu0.b32.cont [11/16] 0.0, 128
        %1330 = vxpose.xlu0.b32.cont [12/16] 0.0, 128
        %1331 = vxpose.xlu0.b32.cont [13/16] 0.0, 128
        %1332 = vxpose.xlu0.b32.cont [14/16] 0.0, 128
        %1333 = vxpose.xlu0.b32.cont [15/16] 0.0, 128
        %1334 = vxpose.xlu0.b32.end [16/16] 0.0, 128
        %v1335 = vpop.trf.xlu0
        %v1336 = vpop.trf.xlu0
        %v1337 = vpop.trf.xlu0
        %v1338 = vpop.trf.xlu0
        %v1339 = vpop.trf.xlu0
        %v1340 = vpop.trf.xlu0
        %v1341 = vpop.trf.xlu0
        %v1342 = vpop.trf.xlu0
        %v1343 = vpop.trf.xlu0
        %v1344 = vpop.trf.xlu0
        %v1345 = vpop.trf.xlu0
        %v1346 = vpop.trf.xlu0
        %v1347 = vpop.trf.xlu0
        %v1348 = vpop.trf.xlu0
        %v1349 = vpop.trf.xlu0
        %v1350 = vpop.trf.xlu0
        %1351 = vxpose.xlu0.b32.start [1/16] %v1199, 128
        %1352 = vxpose.xlu0.b32.cont [2/16] %v1203, 128
        %1353 = vxpose.xlu0.b32.cont [3/16] %v1209, 128
        %1354 = vxpose.xlu0.b32.cont [4/16] %v1213, 128
        %1355 = vxpose.xlu0.b32.cont [5/16] 0.0, 128
        %1356 = vxpose.xlu0.b32.cont [6/16] 0.0, 128
        %1357 = vxpose.xlu0.b32.cont [7/16] 0.0, 128
        %1358 = vxpose.xlu0.b32.cont [8/16] 0.0, 128
        %1359 = vxpose.xlu0.b32.cont [9/16] 0.0, 128
        %1360 = vxpose.xlu0.b32.cont [10/16] 0.0, 128
        %1361 = vxpose.xlu0.b32.cont [11/16] 0.0, 128
        %1362 = vxpose.xlu0.b32.cont [12/16] 0.0, 128
        %1363 = vxpose.xlu0.b32.cont [13/16] 0.0, 128
        %1364 = vxpose.xlu0.b32.cont [14/16] 0.0, 128
        %1365 = vxpose.xlu0.b32.cont [15/16] 0.0, 128
        %1366 = vxpose.xlu0.b32.end [16/16] 0.0, 128
        %v1367 = vpop.trf.xlu0
        %v1368 = vpop.trf.xlu0
        %v1369 = vpop.trf.xlu0
        %v1370 = vpop.trf.xlu0
        %v1371 = vpop.trf.xlu0
        %v1372 = vpop.trf.xlu0
        %v1373 = vpop.trf.xlu0
        %v1374 = vpop.trf.xlu0
        %v1375 = vpop.trf.xlu0
        %v1376 = vpop.trf.xlu0
        %v1377 = vpop.trf.xlu0
        %v1378 = vpop.trf.xlu0
        %v1379 = vpop.trf.xlu0
        %v1380 = vpop.trf.xlu0
        %v1381 = vpop.trf.xlu0
        %v1382 = vpop.trf.xlu0
        %v1383 = vpack.c.bf16 %v1336, %v1335
        %v1384 = vpack.c.bf16 %v1338, %v1337
        %v1385 = vpack.c.bf16 %v1340, %v1339
        %v1386 = vpack.c.bf16 %v1342, %v1341
        %v1387 = vpack.c.bf16 %v1344, %v1343
        %v1388 = vpack.c.bf16 %v1346, %v1345
        %v1389 = vpack.c.bf16 %v1348, %v1347
        %v1390 = vpack.c.bf16 %v1350, %v1349
        %v1391 = vpack.c.bf16 %v1368, %v1367
        %v1392 = vpack.c.bf16 %v1370, %v1369
        %v1393 = vpack.c.bf16 %v1372, %v1371
        %v1394 = vpack.c.bf16 %v1374, %v1373
        %v1395 = vpack.c.bf16 %v1376, %v1375
        %v1396 = vpack.c.bf16 %v1378, %v1377
        %v1397 = vpack.c.bf16 %v1380, %v1379
        %v1398 = vpack.c.bf16 %v1382, %v1381
        %1399 = vxpose.xlu0.b32.start [1/16] %v1237, 128
        %1400 = vxpose.xlu0.b32.cont [2/16] %v1241, 128
        %1401 = vxpose.xlu0.b32.cont [3/16] %v1247, 128
        %1402 = vxpose.xlu0.b32.cont [4/16] %v1251, 128
        %1403 = vxpose.xlu0.b32.cont [5/16] 0.0, 128
        %1404 = vxpose.xlu0.b32.cont [6/16] 0.0, 128
        %1405 = vxpose.xlu0.b32.cont [7/16] 0.0, 128
        %1406 = vxpose.xlu0.b32.cont [8/16] 0.0, 128
        %1407 = vxpose.xlu0.b32.cont [9/16] 0.0, 128
        %1408 = vxpose.xlu0.b32.cont [10/16] 0.0, 128
        %1409 = vxpose.xlu0.b32.cont [11/16] 0.0, 128
        %1410 = vxpose.xlu0.b32.cont [12/16] 0.0, 128
        %1411 = vxpose.xlu0.b32.cont [13/16] 0.0, 128
        %1412 = vxpose.xlu0.b32.cont [14/16] 0.0, 128
        %1413 = vxpose.xlu0.b32.cont [15/16] 0.0, 128
        %1414 = vxpose.xlu0.b32.end [16/16] 0.0, 128
        %v1415 = vpop.trf.xlu0
        %v1416 = vpop.trf.xlu0
        %v1417 = vpop.trf.xlu0
        %v1418 = vpop.trf.xlu0
        %v1419 = vpop.trf.xlu0
        %v1420 = vpop.trf.xlu0
        %v1421 = vpop.trf.xlu0
        %v1422 = vpop.trf.xlu0
        %v1423 = vpop.trf.xlu0
        %v1424 = vpop.trf.xlu0
        %v1425 = vpop.trf.xlu0
        %v1426 = vpop.trf.xlu0
        %v1427 = vpop.trf.xlu0
        %v1428 = vpop.trf.xlu0
        %v1429 = vpop.trf.xlu0
        %v1430 = vpop.trf.xlu0
        %1431 = vxpose.xlu0.b32.start [1/16] %v1239, 128
        %1432 = vxpose.xlu0.b32.cont [2/16] %v1243, 128
        %1433 = vxpose.xlu0.b32.cont [3/16] %v1249, 128
        %1434 = vxpose.xlu0.b32.cont [4/16] %v1253, 128
        %1435 = vxpose.xlu0.b32.cont [5/16] 0.0, 128
        %1436 = vxpose.xlu0.b32.cont [6/16] 0.0, 128
        %1437 = vxpose.xlu0.b32.cont [7/16] 0.0, 128
        %1438 = vxpose.xlu0.b32.cont [8/16] 0.0, 128
        %1439 = vxpose.xlu0.b32.cont [9/16] 0.0, 128
        %1440 = vxpose.xlu0.b32.cont [10/16] 0.0, 128
        %1441 = vxpose.xlu0.b32.cont [11/16] 0.0, 128
        %1442 = vxpose.xlu0.b32.cont [12/16] 0.0, 128
        %1443 = vxpose.xlu0.b32.cont [13/16] 0.0, 128
        %1444 = vxpose.xlu0.b32.cont [14/16] 0.0, 128
        %1445 = vxpose.xlu0.b32.cont [15/16] 0.0, 128
        %1446 = vxpose.xlu0.b32.end [16/16] 0.0, 128
        %v1447 = vpop.trf.xlu0
        %v1448 = vpop.trf.xlu0
        %v1449 = vpop.trf.xlu0
        %v1450 = vpop.trf.xlu0
        %v1451 = vpop.trf.xlu0
        %v1452 = vpop.trf.xlu0
        %v1453 = vpop.trf.xlu0
        %v1454 = vpop.trf.xlu0
        %v1455 = vpop.trf.xlu0
        %v1456 = vpop.trf.xlu0
        %v1457 = vpop.trf.xlu0
        %v1458 = vpop.trf.xlu0
        %v1459 = vpop.trf.xlu0
        %v1460 = vpop.trf.xlu0
        %v1461 = vpop.trf.xlu0
        %v1462 = vpop.trf.xlu0
        %v1463 = vpack.c.bf16 %v1416, %v1415
        %v1464 = vpack.c.bf16 %v1418, %v1417
        %v1465 = vpack.c.bf16 %v1420, %v1419
        %v1466 = vpack.c.bf16 %v1422, %v1421
        %v1467 = vpack.c.bf16 %v1424, %v1423
        %v1468 = vpack.c.bf16 %v1426, %v1425
        %v1469 = vpack.c.bf16 %v1428, %v1427
        %v1470 = vpack.c.bf16 %v1430, %v1429
        %v1471 = vpack.c.bf16 %v1448, %v1447
        %v1472 = vpack.c.bf16 %v1450, %v1449
        %v1473 = vpack.c.bf16 %v1452, %v1451
        %v1474 = vpack.c.bf16 %v1454, %v1453
        %v1475 = vpack.c.bf16 %v1456, %v1455
        %v1476 = vpack.c.bf16 %v1458, %v1457
        %v1477 = vpack.c.bf16 %v1460, %v1459
        %v1478 = vpack.c.bf16 %v1462, %v1461
        %v1480 = vsel %vm576, %v1383, 0
        %v1483 = vsel %vm576, %v1384, 0
        %v1486 = vsel %vm576, %v1385, 0
        %v1489 = vsel %vm576, %v1386, 0
        %v1492 = vsel %vm576, %v1387, 0
        %v1495 = vsel %vm576, %v1388, 0
        %v1498 = vsel %vm576, %v1389, 0
        %v1501 = vsel %vm576, %v1390, 0
        %v1504 = vsel %vm576, %v1391, 0
        %v1507 = vsel %vm576, %v1392, 0
        %v1510 = vsel %vm576, %v1393, 0
        %v1513 = vsel %vm576, %v1394, 0
        %v1516 = vsel %vm576, %v1395, 0
        %v1519 = vsel %vm576, %v1396, 0
        %v1522 = vsel %vm576, %v1397, 0
        %v1525 = vsel %vm576, %v1398, 0
        %1527 = vmatprep.subr.bf16.mxu0 %v1316
        %1528 = vmatpush1.bf16.msra.mxu0 %v1315
        %1529 = vmatprep.subr.bf16.mxu0 %v1318
        %1530 = vmatpush1.bf16.msra.mxu0 %v1317
        %1531 = vmatprep.subr.bf16.mxu0 0
        %1532 = vmatpush1.bf16.msra.mxu0 0
        %1533 = vmatprep.subr.bf16.mxu0 0
        %1534 = vmatpush1.bf16.msra.mxu0 0
        %1535 = vmatprep.subr.bf16.mxu0 0
        %1536 = vmatpush1.bf16.msra.mxu0 0
        %1537 = vmatprep.subr.bf16.mxu0 0
        %1538 = vmatpush1.bf16.msra.mxu0 0
        %1539 = vmatprep.subr.bf16.mxu0 0
        %1540 = vmatpush1.bf16.msra.mxu0 0
        %1541 = vmatprep.subr.bf16.mxu0 0
        %1542 = vmatpush1.bf16.msra.mxu0 0
        %1543 = vmatprep.subr.bf16.mxu0 0
        %1544 = vmatpush1.bf16.msra.mxu0 0
        %1545 = vmatprep.subr.bf16.mxu0 0
        %1546 = vmatpush1.bf16.msra.mxu0 0
        %1547 = vmatprep.subr.bf16.mxu0 0
        %1548 = vmatpush1.bf16.msra.mxu0 0
        %1549 = vmatprep.subr.bf16.mxu0 0
        %1550 = vmatpush1.bf16.msra.mxu0 0
        %1551 = vmatprep.subr.bf16.mxu0 0
        %1552 = vmatpush1.bf16.msra.mxu0 0
        %1553 = vmatprep.subr.bf16.mxu0 0
        %1554 = vmatpush1.bf16.msra.mxu0 0
        %1555 = vmatprep.subr.bf16.mxu0 0
        %1556 = vmatpush1.bf16.msra.mxu0 0
        %1557 = vmatprep.subr.bf16.mxu0 0
        %1558 = vmatpush1.bf16.msra.mxu0 0
        %1559 = vmatprep.mubr.bf16.mxu0 0
        %1560 = vmatmul.mubr.bf16.gmra.mrb[0].mxu0 %v1480
        %v1561 = vpop.f32.mrb[0].mxu0
        %v1562 = vadd.f32 0.0, %v1561
        %v1563 = vpop.f32.mrb[0].mxu0
        %v1564 = vadd.f32 0.0, %v1563
        %v1565 = vpop.f32.mrb[0].mxu0
        %v1566 = vadd.f32 0.0, %v1565
        %v1567 = vpop.f32.mrb[0].mxu0
        %v1568 = vadd.f32 0.0, %v1567
        %1569 = vmatprep.mubr.bf16.mxu0 0
        %1570 = vmatmul.mubr.bf16.gmra.mrb[0].mxu0 %v1483
        %v1571 = vpop.f32.mrb[0].mxu0
        %v1572 = vadd.f32 0.0, %v1571
        %v1573 = vpop.f32.mrb[0].mxu0
        %v1574 = vadd.f32 0.0, %v1573
        %v1575 = vpop.f32.mrb[0].mxu0
        %v1576 = vadd.f32 0.0, %v1575
        %v1577 = vpop.f32.mrb[0].mxu0
        %v1578 = vadd.f32 0.0, %v1577
        %1579 = vmatprep.mubr.bf16.mxu0 0
        %1580 = vmatmul.mubr.bf16.gmra.mrb[0].mxu0 %v1486
        %v1581 = vpop.f32.mrb[0].mxu0
        %v1582 = vadd.f32 0.0, %v1581
        %v1583 = vpop.f32.mrb[0].mxu0
        %v1584 = vadd.f32 0.0, %v1583
        %v1585 = vpop.f32.mrb[0].mxu0
        %v1586 = vadd.f32 0.0, %v1585
        %v1587 = vpop.f32.mrb[0].mxu0
        %v1588 = vadd.f32 0.0, %v1587
        %1589 = vmatprep.mubr.bf16.mxu0 0
        %1590 = vmatmul.mubr.bf16.gmra.mrb[0].mxu0 %v1489
        %v1591 = vpop.f32.mrb[0].mxu0
        %v1592 = vadd.f32 0.0, %v1591
        %v1593 = vpop.f32.mrb[0].mxu0
        %v1594 = vadd.f32 0.0, %v1593
        %v1595 = vpop.f32.mrb[0].mxu0
        %v1596 = vadd.f32 0.0, %v1595
        %v1597 = vpop.f32.mrb[0].mxu0
        %v1598 = vadd.f32 0.0, %v1597
        %1599 = vmatprep.mubr.bf16.mxu0 0
        %1600 = vmatmul.mubr.bf16.gmra.mrb[0].mxu0 %v1492
        %v1601 = vpop.f32.mrb[0].mxu0
        %v1602 = vadd.f32 0.0, %v1601
        %v1603 = vpop.f32.mrb[0].mxu0
        %v1604 = vadd.f32 0.0, %v1603
        %v1605 = vpop.f32.mrb[0].mxu0
        %v1606 = vadd.f32 0.0, %v1605
        %v1607 = vpop.f32.mrb[0].mxu0
        %v1608 = vadd.f32 0.0, %v1607
        %1609 = vmatprep.mubr.bf16.mxu0 0
        %1610 = vmatmul.mubr.bf16.gmra.mrb[0].mxu0 %v1495
        %v1611 = vpop.f32.mrb[0].mxu0
        %v1612 = vadd.f32 0.0, %v1611
        %v1613 = vpop.f32.mrb[0].mxu0
        %v1614 = vadd.f32 0.0, %v1613
        %v1615 = vpop.f32.mrb[0].mxu0
        %v1616 = vadd.f32 0.0, %v1615
        %v1617 = vpop.f32.mrb[0].mxu0
        %v1618 = vadd.f32 0.0, %v1617
        %1619 = vmatprep.mubr.bf16.mxu0 0
        %1620 = vmatmul.mubr.bf16.gmra.mrb[0].mxu0 %v1498
        %v1621 = vpop.f32.mrb[0].mxu0
        %v1622 = vadd.f32 0.0, %v1621
        %v1623 = vpop.f32.mrb[0].mxu0
        %v1624 = vadd.f32 0.0, %v1623
        %v1625 = vpop.f32.mrb[0].mxu0
        %v1626 = vadd.f32 0.0, %v1625
        %v1627 = vpop.f32.mrb[0].mxu0
        %v1628 = vadd.f32 0.0, %v1627
        %1629 = vmatprep.mubr.bf16.mxu0 0
        %1630 = vmatmul.mubr.bf16.gmra.mrb[0].mxu0 %v1501
        %v1631 = vpop.f32.mrb[0].mxu0
        %v1632 = vadd.f32 0.0, %v1631
        %v1633 = vpop.f32.mrb[0].mxu0
        %v1634 = vadd.f32 0.0, %v1633
        %v1635 = vpop.f32.mrb[0].mxu0
        %v1636 = vadd.f32 0.0, %v1635
        %v1637 = vpop.f32.mrb[0].mxu0
        %v1638 = vadd.f32 0.0, %v1637
        %1639 = vmatprep.mubr.bf16.mxu0 0
        %1640 = vmatmul.mubr.bf16.gmra.mrb[0].mxu0 %v1504
        %v1641 = vpop.f32.mrb[0].mxu0
        %v1642 = vadd.f32 0.0, %v1641
        %v1643 = vpop.f32.mrb[0].mxu0
        %v1644 = vadd.f32 0.0, %v1643
        %v1645 = vpop.f32.mrb[0].mxu0
        %v1646 = vadd.f32 0.0, %v1645
        %v1647 = vpop.f32.mrb[0].mxu0
        %v1648 = vadd.f32 0.0, %v1647
        %1649 = vmatprep.mubr.bf16.mxu0 0
        %1650 = vmatmul.mubr.bf16.gmra.mrb[0].mxu0 %v1507
        %v1651 = vpop.f32.mrb[0].mxu0
        %v1652 = vadd.f32 0.0, %v1651
        %v1653 = vpop.f32.mrb[0].mxu0
        %v1654 = vadd.f32 0.0, %v1653
        %v1655 = vpop.f32.mrb[0].mxu0
        %v1656 = vadd.f32 0.0, %v1655
        %v1657 = vpop.f32.mrb[0].mxu0
        %v1658 = vadd.f32 0.0, %v1657
        %1659 = vmatprep.mubr.bf16.mxu0 0
        %1660 = vmatmul.mubr.bf16.gmra.mrb[0].mxu0 %v1510
        %v1661 = vpop.f32.mrb[0].mxu0
        %v1662 = vadd.f32 0.0, %v1661
        %v1663 = vpop.f32.mrb[0].mxu0
        %v1664 = vadd.f32 0.0, %v1663
        %v1665 = vpop.f32.mrb[0].mxu0
        %v1666 = vadd.f32 0.0, %v1665
        %v1667 = vpop.f32.mrb[0].mxu0
        %v1668 = vadd.f32 0.0, %v1667
        %1669 = vmatprep.mubr.bf16.mxu0 0
        %1670 = vmatmul.mubr.bf16.gmra.mrb[0].mxu0 %v1513
        %v1671 = vpop.f32.mrb[0].mxu0
        %v1672 = vadd.f32 0.0, %v1671
        %v1673 = vpop.f32.mrb[0].mxu0
        %v1674 = vadd.f32 0.0, %v1673
        %v1675 = vpop.f32.mrb[0].mxu0
        %v1676 = vadd.f32 0.0, %v1675
        %v1677 = vpop.f32.mrb[0].mxu0
        %v1678 = vadd.f32 0.0, %v1677
        %1679 = vmatprep.mubr.bf16.mxu0 0
        %1680 = vmatmul.mubr.bf16.gmra.mrb[0].mxu0 %v1516
        %v1681 = vpop.f32.mrb[0].mxu0
        %v1682 = vadd.f32 0.0, %v1681
        %v1683 = vpop.f32.mrb[0].mxu0
        %v1684 = vadd.f32 0.0, %v1683
        %v1685 = vpop.f32.mrb[0].mxu0
        %v1686 = vadd.f32 0.0, %v1685
        %v1687 = vpop.f32.mrb[0].mxu0
        %v1688 = vadd.f32 0.0, %v1687
        %1689 = vmatprep.mubr.bf16.mxu0 0
        %1690 = vmatmul.mubr.bf16.gmra.mrb[0].mxu0 %v1519
        %v1691 = vpop.f32.mrb[0].mxu0
        %v1692 = vadd.f32 0.0, %v1691
        %v1693 = vpop.f32.mrb[0].mxu0
        %v1694 = vadd.f32 0.0, %v1693
        %v1695 = vpop.f32.mrb[0].mxu0
        %v1696 = vadd.f32 0.0, %v1695
        %v1697 = vpop.f32.mrb[0].mxu0
        %v1698 = vadd.f32 0.0, %v1697
        %1699 = vmatprep.mubr.bf16.mxu0 0
        %1700 = vmatmul.mubr.bf16.gmra.mrb[0].mxu0 %v1522
        %v1701 = vpop.f32.mrb[0].mxu0
        %v1702 = vadd.f32 0.0, %v1701
        %v1703 = vpop.f32.mrb[0].mxu0
        %v1704 = vadd.f32 0.0, %v1703
        %v1705 = vpop.f32.mrb[0].mxu0
        %v1706 = vadd.f32 0.0, %v1705
        %v1707 = vpop.f32.mrb[0].mxu0
        %v1708 = vadd.f32 0.0, %v1707
        %1709 = vmatprep.mubr.bf16.mxu0 0
        %1710 = vmatmul.mubr.bf16.gmra.mrb[0].mxu0 %v1525
        %v1711 = vpop.f32.mrb[0].mxu0
        %v1712 = vadd.f32 0.0, %v1711
        %v1713 = vpop.f32.mrb[0].mxu0
        %v1714 = vadd.f32 0.0, %v1713
        %v1715 = vpop.f32.mrb[0].mxu0
        %v1716 = vadd.f32 0.0, %v1715
        %v1717 = vpop.f32.mrb[0].mxu0
        %v1718 = vadd.f32 0.0, %v1717
        %1719 = vdwg.mxu0
        %v1720 = vmax.f32 %v1562, %v1564
        %1721 = vmax.xlane.f32.xlu0 %v1720
        %v1722 = vpop.xlane.xlu0 %1721
        %v1723 = vmax.f32 %v1566, %v1568
        %1724 = vmax.xlane.f32.xlu0 %v1723
        %v1725 = vpop.xlane.xlu0 %1724
        %v1726 = vmax.f32 %v1572, %v1574
        %1727 = vmax.xlane.f32.xlu0 %v1726
        %v1728 = vpop.xlane.xlu0 %1727
        %v1729 = vmax.f32 %v1576, %v1578
        %1730 = vmax.xlane.f32.xlu0 %v1729
        %v1731 = vpop.xlane.xlu0 %1730
        %v1732 = vmax.f32 %v1582, %v1584
        %1733 = vmax.xlane.f32.xlu0 %v1732
        %v1734 = vpop.xlane.xlu0 %1733
        %v1735 = vmax.f32 %v1586, %v1588
        %1736 = vmax.xlane.f32.xlu0 %v1735
        %v1737 = vpop.xlane.xlu0 %1736
        %v1738 = vmax.f32 %v1592, %v1594
        %1739 = vmax.xlane.f32.xlu0 %v1738
        %v1740 = vpop.xlane.xlu0 %1739
        %v1741 = vmax.f32 %v1596, %v1598
        %1742 = vmax.xlane.f32.xlu0 %v1741
        %v1743 = vpop.xlane.xlu0 %1742
        %v1744 = vmax.f32 %v1602, %v1604
        %1745 = vmax.xlane.f32.xlu0 %v1744
        %v1746 = vpop.xlane.xlu0 %1745
        %v1747 = vmax.f32 %v1606, %v1608
        %1748 = vmax.xlane.f32.xlu0 %v1747
        %v1749 = vpop.xlane.xlu0 %1748
        %v1750 = vmax.f32 %v1612, %v1614
        %1751 = vmax.xlane.f32.xlu0 %v1750
        %v1752 = vpop.xlane.xlu0 %1751
        %v1753 = vmax.f32 %v1616, %v1618
        %1754 = vmax.xlane.f32.xlu0 %v1753
        %v1755 = vpop.xlane.xlu0 %1754
        %v1756 = vmax.f32 %v1622, %v1624
        %1757 = vmax.xlane.f32.xlu0 %v1756
        %v1758 = vpop.xlane.xlu0 %1757
        %v1759 = vmax.f32 %v1626, %v1628
        %1760 = vmax.xlane.f32.xlu0 %v1759
        %v1761 = vpop.xlane.xlu0 %1760
        %v1762 = vmax.f32 %v1632, %v1634
        %1763 = vmax.xlane.f32.xlu0 %v1762
        %v1764 = vpop.xlane.xlu0 %1763
        %v1765 = vmax.f32 %v1636, %v1638
        %1766 = vmax.xlane.f32.xlu0 %v1765
        %v1767 = vpop.xlane.xlu0 %1766
        %v1768 = vmax.f32 %v1642, %v1644
        %1769 = vmax.xlane.f32.xlu0 %v1768
        %v1770 = vpop.xlane.xlu0 %1769
        %v1771 = vmax.f32 %v1646, %v1648
        %1772 = vmax.xlane.f32.xlu0 %v1771
        %v1773 = vpop.xlane.xlu0 %1772
        %v1774 = vmax.f32 %v1652, %v1654
        %1775 = vmax.xlane.f32.xlu0 %v1774
        %v1776 = vpop.xlane.xlu0 %1775
        %v1777 = vmax.f32 %v1656, %v1658
        %1778 = vmax.xlane.f32.xlu0 %v1777
        %v1779 = vpop.xlane.xlu0 %1778
        %v1780 = vmax.f32 %v1662, %v1664
        %1781 = vmax.xlane.f32.xlu0 %v1780
        %v1782 = vpop.xlane.xlu0 %1781
        %v1783 = vmax.f32 %v1666, %v1668
        %1784 = vmax.xlane.f32.xlu0 %v1783
        %v1785 = vpop.xlane.xlu0 %1784
        %v1786 = vmax.f32 %v1672, %v1674
        %1787 = vmax.xlane.f32.xlu0 %v1786
        %v1788 = vpop.xlane.xlu0 %1787
        %v1789 = vmax.f32 %v1676, %v1678
        %1790 = vmax.xlane.f32.xlu0 %v1789
        %v1791 = vpop.xlane.xlu0 %1790
        %v1792 = vmax.f32 %v1682, %v1684
        %1793 = vmax.xlane.f32.xlu0 %v1792
        %v1794 = vpop.xlane.xlu0 %1793
        %v1795 = vmax.f32 %v1686, %v1688
        %1796 = vmax.xlane.f32.xlu0 %v1795
        %v1797 = vpop.xlane.xlu0 %1796
        %v1798 = vmax.f32 %v1692, %v1694
        %1799 = vmax.xlane.f32.xlu0 %v1798
        %v1800 = vpop.xlane.xlu0 %1799
        %v1801 = vmax.f32 %v1696, %v1698
        %1802 = vmax.xlane.f32.xlu0 %v1801
        %v1803 = vpop.xlane.xlu0 %1802
        %v1804 = vmax.f32 %v1702, %v1704
        %1805 = vmax.xlane.f32.xlu0 %v1804
        %v1806 = vpop.xlane.xlu0 %1805
        %v1807 = vmax.f32 %v1706, %v1708
        %1808 = vmax.xlane.f32.xlu0 %v1807
        %v1809 = vpop.xlane.xlu0 %1808
        %v1810 = vmax.f32 %v1712, %v1714
        %1811 = vmax.xlane.f32.xlu0 %v1810
        %v1812 = vpop.xlane.xlu0 %1811
        %v1813 = vmax.f32 %v1716, %v1718
        %1814 = vmax.xlane.f32.xlu0 %v1813
        %v1815 = vpop.xlane.xlu0 %1814
        %v1816 = vsub.f32 %v1562, %v1722
        %v1817 = vsub.f32 %v1564, %v1722
        %v1818 = vsub.f32 %v1566, %v1725
        %v1819 = vsub.f32 %v1568, %v1725
        %v1820 = vsub.f32 %v1572, %v1728
        %v1821 = vsub.f32 %v1574, %v1728
        %v1822 = vsub.f32 %v1576, %v1731
        %v1823 = vsub.f32 %v1578, %v1731
        %v1824 = vsub.f32 %v1582, %v1734
        %v1825 = vsub.f32 %v1584, %v1734
        %v1826 = vsub.f32 %v1586, %v1737
        %v1827 = vsub.f32 %v1588, %v1737
        %v1828 = vsub.f32 %v1592, %v1740
        %v1829 = vsub.f32 %v1594, %v1740
        %v1830 = vsub.f32 %v1596, %v1743
        %v1831 = vsub.f32 %v1598, %v1743
        %v1832 = vsub.f32 %v1602, %v1746
        %v1833 = vsub.f32 %v1604, %v1746
        %v1834 = vsub.f32 %v1606, %v1749
        %v1835 = vsub.f32 %v1608, %v1749
        %v1836 = vsub.f32 %v1612, %v1752
        %v1837 = vsub.f32 %v1614, %v1752
        %v1838 = vsub.f32 %v1616, %v1755
        %v1839 = vsub.f32 %v1618, %v1755
        %v1840 = vsub.f32 %v1622, %v1758
        %v1841 = vsub.f32 %v1624, %v1758
        %v1842 = vsub.f32 %v1626, %v1761
        %v1843 = vsub.f32 %v1628, %v1761
        %v1844 = vsub.f32 %v1632, %v1764
        %v1845 = vsub.f32 %v1634, %v1764
        %v1846 = vsub.f32 %v1636, %v1767
        %v1847 = vsub.f32 %v1638, %v1767
        %v1848 = vsub.f32 %v1642, %v1770
        %v1849 = vsub.f32 %v1644, %v1770
        %v1850 = vsub.f32 %v1646, %v1773
        %v1851 = vsub.f32 %v1648, %v1773
        %v1852 = vsub.f32 %v1652, %v1776
        %v1853 = vsub.f32 %v1654, %v1776
        %v1854 = vsub.f32 %v1656, %v1779
        %v1855 = vsub.f32 %v1658, %v1779
        %v1856 = vsub.f32 %v1662, %v1782
        %v1857 = vsub.f32 %v1664, %v1782
        %v1858 = vsub.f32 %v1666, %v1785
        %v1859 = vsub.f32 %v1668, %v1785
        %v1860 = vsub.f32 %v1672, %v1788
        %v1861 = vsub.f32 %v1674, %v1788
        %v1862 = vsub.f32 %v1676, %v1791
        %v1863 = vsub.f32 %v1678, %v1791
        %v1864 = vsub.f32 %v1682, %v1794
        %v1865 = vsub.f32 %v1684, %v1794
        %v1866 = vsub.f32 %v1686, %v1797
        %v1867 = vsub.f32 %v1688, %v1797
        %v1868 = vsub.f32 %v1692, %v1800
        %v1869 = vsub.f32 %v1694, %v1800
        %v1870 = vsub.f32 %v1696, %v1803
        %v1871 = vsub.f32 %v1698, %v1803
        %v1872 = vsub.f32 %v1702, %v1806
        %v1873 = vsub.f32 %v1704, %v1806
        %v1874 = vsub.f32 %v1706, %v1809
        %v1875 = vsub.f32 %v1708, %v1809
        %v1876 = vsub.f32 %v1712, %v1812
        %v1877 = vsub.f32 %v1714, %v1812
        %v1878 = vsub.f32 %v1716, %v1815
        %v1879 = vsub.f32 %v1718, %v1815
        %v1880 = vmul.f32 %v1816, 1.442695
        %v1881 = vpow.pop %v1880
        %v1882 = vmul.f32 %v1817, 1.442695
        %v1883 = vpow.pop %v1882
        %v1884 = vmul.f32 %v1818, 1.442695
        %v1885 = vpow.pop %v1884
        %v1886 = vmul.f32 %v1819, 1.442695
        %v1887 = vpow.pop %v1886
        %v1888 = vmul.f32 %v1820, 1.442695
        %v1889 = vpow.pop %v1888
        %v1890 = vmul.f32 %v1821, 1.442695
        %v1891 = vpow.pop %v1890
        %v1892 = vmul.f32 %v1822, 1.442695
        %v1893 = vpow.pop %v1892
        %v1894 = vmul.f32 %v1823, 1.442695
        %v1895 = vpow.pop %v1894
        %v1896 = vmul.f32 %v1824, 1.442695
        %v1897 = vpow.pop %v1896
        %v1898 = vmul.f32 %v1825, 1.442695
        %v1899 = vpow.pop %v1898
        %v1900 = vmul.f32 %v1826, 1.442695
        %v1901 = vpow.pop %v1900
        %v1902 = vmul.f32 %v1827, 1.442695
        %v1903 = vpow.pop %v1902
        %v1904 = vmul.f32 %v1828, 1.442695
        %v1905 = vpow.pop %v1904
        %v1906 = vmul.f32 %v1829, 1.442695
        %v1907 = vpow.pop %v1906
        %v1908 = vmul.f32 %v1830, 1.442695
        %v1909 = vpow.pop %v1908
        %v1910 = vmul.f32 %v1831, 1.442695
        %v1911 = vpow.pop %v1910
        %v1912 = vmul.f32 %v1832, 1.442695
        %v1913 = vpow.pop %v1912
        %v1914 = vmul.f32 %v1833, 1.442695
        %v1915 = vpow.pop %v1914
        %v1916 = vmul.f32 %v1834, 1.442695
        %v1917 = vpow.pop %v1916
        %v1918 = vmul.f32 %v1835, 1.442695
        %v1919 = vpow.pop %v1918
        %v1920 = vmul.f32 %v1836, 1.442695
        %v1921 = vpow.pop %v1920
        %v1922 = vmul.f32 %v1837, 1.442695
        %v1923 = vpow.pop %v1922
        %v1924 = vmul.f32 %v1838, 1.442695
        %v1925 = vpow.pop %v1924
        %v1926 = vmul.f32 %v1839, 1.442695
        %v1927 = vpow.pop %v1926
        %v1928 = vmul.f32 %v1840, 1.442695
        %v1929 = vpow.pop %v1928
        %v1930 = vmul.f32 %v1841, 1.442695
        %v1931 = vpow.pop %v1930
        %v1932 = vmul.f32 %v1842, 1.442695
        %v1933 = vpow.pop %v1932
        %v1934 = vmul.f32 %v1843, 1.442695
        %v1935 = vpow.pop %v1934
        %v1936 = vmul.f32 %v1844, 1.442695
        %v1937 = vpow.pop %v1936
        %v1938 = vmul.f32 %v1845, 1.442695
        %v1939 = vpow.pop %v1938
        %v1940 = vmul.f32 %v1846, 1.442695
        %v1941 = vpow.pop %v1940
        %v1942 = vmul.f32 %v1847, 1.442695
        %v1943 = vpow.pop %v1942
        %v1944 = vmul.f32 %v1848, 1.442695
        %v1945 = vpow.pop %v1944
        %v1946 = vmul.f32 %v1849, 1.442695
        %v1947 = vpow.pop %v1946
        %v1948 = vmul.f32 %v1850, 1.442695
        %v1949 = vpow.pop %v1948
        %v1950 = vmul.f32 %v1851, 1.442695
        %v1951 = vpow.pop %v1950
        %v1952 = vmul.f32 %v1852, 1.442695
        %v1953 = vpow.pop %v1952
        %v1954 = vmul.f32 %v1853, 1.442695
        %v1955 = vpow.pop %v1954
        %v1956 = vmul.f32 %v1854, 1.442695
        %v1957 = vpow.pop %v1956
        %v1958 = vmul.f32 %v1855, 1.442695
        %v1959 = vpow.pop %v1958
        %v1960 = vmul.f32 %v1856, 1.442695
        %v1961 = vpow.pop %v1960
        %v1962 = vmul.f32 %v1857, 1.442695
        %v1963 = vpow.pop %v1962
        %v1964 = vmul.f32 %v1858, 1.442695
        %v1965 = vpow.pop %v1964
        %v1966 = vmul.f32 %v1859, 1.442695
        %v1967 = vpow.pop %v1966
        %v1968 = vmul.f32 %v1860, 1.442695
        %v1969 = vpow.pop %v1968
        %v1970 = vmul.f32 %v1861, 1.442695
        %v1971 = vpow.pop %v1970
        %v1972 = vmul.f32 %v1862, 1.442695
        %v1973 = vpow.pop %v1972
        %v1974 = vmul.f32 %v1863, 1.442695
        %v1975 = vpow.pop %v1974
        %v1976 = vmul.f32 %v1864, 1.442695
        %v1977 = vpow.pop %v1976
        %v1978 = vmul.f32 %v1865, 1.442695
        %v1979 = vpow.pop %v1978
        %v1980 = vmul.f32 %v1866, 1.442695
        %v1981 = vpow.pop %v1980
        %v1982 = vmul.f32 %v1867, 1.442695
        %v1983 = vpow.pop %v1982
        %v1984 = vmul.f32 %v1868, 1.442695
        %v1985 = vpow.pop %v1984
        %v1986 = vmul.f32 %v1869, 1.442695
        %v1987 = vpow.pop %v1986
        %v1988 = vmul.f32 %v1870, 1.442695
        %v1989 = vpow.pop %v1988
        %v1990 = vmul.f32 %v1871, 1.442695
        %v1991 = vpow.pop %v1990
        %v1992 = vmul.f32 %v1872, 1.442695
        %v1993 = vpow.pop %v1992
        %v1994 = vmul.f32 %v1873, 1.442695
        %v1995 = vpow.pop %v1994
        %v1996 = vmul.f32 %v1874, 1.442695
        %v1997 = vpow.pop %v1996
        %v1998 = vmul.f32 %v1875, 1.442695
        %v1999 = vpow.pop %v1998
        %v2000 = vmul.f32 %v1876, 1.442695
        %v2001 = vpow.pop %v2000
        %v2002 = vmul.f32 %v1877, 1.442695
        %v2003 = vpow.pop %v2002
        %v2004 = vmul.f32 %v1878, 1.442695
        %v2005 = vpow.pop %v2004
        %v2006 = vmul.f32 %v1879, 1.442695
        %v2007 = vpow.pop %v2006
        %v2008 = vadd.f32 %v1881, %v1883
        %2009 = vadd.xlane.f32.xlu0 %v2008
        %v2010 = vpop.xlane.xlu0 %2009
        %v2011 = vadd.f32 %v1885, %v1887
        %2012 = vadd.xlane.f32.xlu0 %v2011
        %v2013 = vpop.xlane.xlu0 %2012
        %v2014 = vadd.f32 %v1889, %v1891
        %2015 = vadd.xlane.f32.xlu0 %v2014
        %v2016 = vpop.xlane.xlu0 %2015
        %v2017 = vadd.f32 %v1893, %v1895
        %2018 = vadd.xlane.f32.xlu0 %v2017
        %v2019 = vpop.xlane.xlu0 %2018
        %v2020 = vadd.f32 %v1897, %v1899
        %2021 = vadd.xlane.f32.xlu0 %v2020
        %v2022 = vpop.xlane.xlu0 %2021
        %v2023 = vadd.f32 %v1901, %v1903
        %2024 = vadd.xlane.f32.xlu0 %v2023
        %v2025 = vpop.xlane.xlu0 %2024
        %v2026 = vadd.f32 %v1905, %v1907
        %2027 = vadd.xlane.f32.xlu0 %v2026
        %v2028 = vpop.xlane.xlu0 %2027
        %v2029 = vadd.f32 %v1909, %v1911
        %2030 = vadd.xlane.f32.xlu0 %v2029
        %v2031 = vpop.xlane.xlu0 %2030
        %v2032 = vadd.f32 %v1913, %v1915
        %2033 = vadd.xlane.f32.xlu0 %v2032
        %v2034 = vpop.xlane.xlu0 %2033
        %v2035 = vadd.f32 %v1917, %v1919
        %2036 = vadd.xlane.f32.xlu0 %v2035
        %v2037 = vpop.xlane.xlu0 %2036
        %v2038 = vadd.f32 %v1921, %v1923
        %2039 = vadd.xlane.f32.xlu0 %v2038
        %v2040 = vpop.xlane.xlu0 %2039
        %v2041 = vadd.f32 %v1925, %v1927
        %2042 = vadd.xlane.f32.xlu0 %v2041
        %v2043 = vpop.xlane.xlu0 %2042
        %v2044 = vadd.f32 %v1929, %v1931
        %2045 = vadd.xlane.f32.xlu0 %v2044
        %v2046 = vpop.xlane.xlu0 %2045
        %v2047 = vadd.f32 %v1933, %v1935
        %2048 = vadd.xlane.f32.xlu0 %v2047
        %v2049 = vpop.xlane.xlu0 %2048
        %v2050 = vadd.f32 %v1937, %v1939
        %2051 = vadd.xlane.f32.xlu0 %v2050
        %v2052 = vpop.xlane.xlu0 %2051
        %v2053 = vadd.f32 %v1941, %v1943
        %2054 = vadd.xlane.f32.xlu0 %v2053
        %v2055 = vpop.xlane.xlu0 %2054
        %v2056 = vadd.f32 %v1945, %v1947
        %2057 = vadd.xlane.f32.xlu0 %v2056
        %v2058 = vpop.xlane.xlu0 %2057
        %v2059 = vadd.f32 %v1949, %v1951
        %2060 = vadd.xlane.f32.xlu0 %v2059
        %v2061 = vpop.xlane.xlu0 %2060
        %v2062 = vadd.f32 %v1953, %v1955
        %2063 = vadd.xlane.f32.xlu0 %v2062
        %v2064 = vpop.xlane.xlu0 %2063
        %v2065 = vadd.f32 %v1957, %v1959
        %2066 = vadd.xlane.f32.xlu0 %v2065
        %v2067 = vpop.xlane.xlu0 %2066
        %v2068 = vadd.f32 %v1961, %v1963
        %2069 = vadd.xlane.f32.xlu0 %v2068
        %v2070 = vpop.xlane.xlu0 %2069
        %v2071 = vadd.f32 %v1965, %v1967
        %2072 = vadd.xlane.f32.xlu0 %v2071
        %v2073 = vpop.xlane.xlu0 %2072
        %v2074 = vadd.f32 %v1969, %v1971
        %2075 = vadd.xlane.f32.xlu0 %v2074
        %v2076 = vpop.xlane.xlu0 %2075
        %v2077 = vadd.f32 %v1973, %v1975
        %2078 = vadd.xlane.f32.xlu0 %v2077
        %v2079 = vpop.xlane.xlu0 %2078
        %v2080 = vadd.f32 %v1977, %v1979
        %2081 = vadd.xlane.f32.xlu0 %v2080
        %v2082 = vpop.xlane.xlu0 %2081
        %v2083 = vadd.f32 %v1981, %v1983
        %2084 = vadd.xlane.f32.xlu0 %v2083
        %v2085 = vpop.xlane.xlu0 %2084
        %v2086 = vadd.f32 %v1985, %v1987
        %2087 = vadd.xlane.f32.xlu0 %v2086
        %v2088 = vpop.xlane.xlu0 %2087
        %v2089 = vadd.f32 %v1989, %v1991
        %2090 = vadd.xlane.f32.xlu0 %v2089
        %v2091 = vpop.xlane.xlu0 %2090
        %v2092 = vadd.f32 %v1993, %v1995
        %2093 = vadd.xlane.f32.xlu0 %v2092
        %v2094 = vpop.xlane.xlu0 %2093
        %v2095 = vadd.f32 %v1997, %v1999
        %2096 = vadd.xlane.f32.xlu0 %v2095
        %v2097 = vpop.xlane.xlu0 %2096
        %v2098 = vadd.f32 %v2001, %v2003
        %2099 = vadd.xlane.f32.xlu0 %v2098
        %v2100 = vpop.xlane.xlu0 %2099
        %v2101 = vadd.f32 %v2005, %v2007
        %2102 = vadd.xlane.f32.xlu0 %v2101
        %v2103 = vpop.xlane.xlu0 %2102
        %v2104 = vpack.c.bf16 %v1885, %v1881
        %v2105 = vpack.c.bf16 %v1887, %v1883
        %v2106 = vpack.c.bf16 %v1893, %v1889
        %v2107 = vpack.c.bf16 %v1895, %v1891
        %v2108 = vpack.c.bf16 %v1901, %v1897
        %v2109 = vpack.c.bf16 %v1903, %v1899
        %v2110 = vpack.c.bf16 %v1909, %v1905
        %v2111 = vpack.c.bf16 %v1911, %v1907
        %v2112 = vpack.c.bf16 %v1917, %v1913
        %v2113 = vpack.c.bf16 %v1919, %v1915
        %v2114 = vpack.c.bf16 %v1925, %v1921
        %v2115 = vpack.c.bf16 %v1927, %v1923
        %v2116 = vpack.c.bf16 %v1933, %v1929
        %v2117 = vpack.c.bf16 %v1935, %v1931
        %v2118 = vpack.c.bf16 %v1941, %v1937
        %v2119 = vpack.c.bf16 %v1943, %v1939
        %v2120 = vpack.c.bf16 %v1949, %v1945
        %v2121 = vpack.c.bf16 %v1951, %v1947
        %v2122 = vpack.c.bf16 %v1957, %v1953
        %v2123 = vpack.c.bf16 %v1959, %v1955
        %v2124 = vpack.c.bf16 %v1965, %v1961
        %v2125 = vpack.c.bf16 %v1967, %v1963
        %v2126 = vpack.c.bf16 %v1973, %v1969
        %v2127 = vpack.c.bf16 %v1975, %v1971
        %v2128 = vpack.c.bf16 %v1981, %v1977
        %v2129 = vpack.c.bf16 %v1983, %v1979
        %v2130 = vpack.c.bf16 %v1989, %v1985
        %v2131 = vpack.c.bf16 %v1991, %v1987
        %v2132 = vpack.c.bf16 %v1997, %v1993
        %v2133 = vpack.c.bf16 %v1999, %v1995
        %v2134 = vpack.c.bf16 %v2005, %v2001
        %v2135 = vpack.c.bf16 %v2007, %v2003
        %2136 = vmatprep.subr.bf16.mxu0 0
        %2137 = vmatpush1.bf16.msra.mxu0 %v1463
        %2138 = vmatprep.subr.bf16.mxu0 0
        %2139 = vmatpush1.bf16.msra.mxu0 %v1464
        %2140 = vmatprep.subr.bf16.mxu0 0
        %2141 = vmatpush1.bf16.msra.mxu0 %v1465
        %2142 = vmatprep.subr.bf16.mxu0 0
        %2143 = vmatpush1.bf16.msra.mxu0 %v1466
        %2144 = vmatprep.subr.bf16.mxu0 0
        %2145 = vmatpush1.bf16.msra.mxu0 %v1467
        %2146 = vmatprep.subr.bf16.mxu0 0
        %2147 = vmatpush1.bf16.msra.mxu0 %v1468
        %2148 = vmatprep.subr.bf16.mxu0 0
        %2149 = vmatpush1.bf16.msra.mxu0 %v1469
        %2150 = vmatprep.subr.bf16.mxu0 0
        %2151 = vmatpush1.bf16.msra.mxu0 %v1470
        %2152 = vmatprep.subr.bf16.mxu0 0
        %2153 = vmatpush1.bf16.msra.mxu0 %v1471
        %2154 = vmatprep.subr.bf16.mxu0 0
        %2155 = vmatpush1.bf16.msra.mxu0 %v1472
        %2156 = vmatprep.subr.bf16.mxu0 0
        %2157 = vmatpush1.bf16.msra.mxu0 %v1473
        %2158 = vmatprep.subr.bf16.mxu0 0
        %2159 = vmatpush1.bf16.msra.mxu0 %v1474
        %2160 = vmatprep.subr.bf16.mxu0 0
        %2161 = vmatpush1.bf16.msra.mxu0 %v1475
        %2162 = vmatprep.subr.bf16.mxu0 0
        %2163 = vmatpush1.bf16.msra.mxu0 %v1476
        %2164 = vmatprep.subr.bf16.mxu0 0
        %2165 = vmatpush1.bf16.msra.mxu0 %v1477
        %2166 = vmatprep.subr.bf16.mxu0 0
        %2167 = vmatpush1.bf16.msra.mxu0 %v1478
        %2168 = vmatprep.mubr.bf16.mxu0 %v2105
        %2169 = vmatmul.mubr.bf16.gmra.mrb[0].mxu0 %v2104
        %v2170 = vpop.f32.mrb[0].mxu0
        %v2171 = vadd.f32 0.0, %v2170
        %v2172 = vpop.f32.mrb[0].mxu0
        %v2173 = vpop.f32.mrb[0].mxu0
        %v2174 = vadd.f32 0.0, %v2173
        %v2175 = vpop.f32.mrb[0].mxu0
        %2176 = vmatprep.mubr.bf16.mxu0 %v2107
        %2177 = vmatmul.mubr.bf16.gmra.mrb[0].mxu0 %v2106
        %v2178 = vpop.f32.mrb[0].mxu0
        %v2179 = vadd.f32 0.0, %v2178
        %v2180 = vpop.f32.mrb[0].mxu0
        %v2181 = vpop.f32.mrb[0].mxu0
        %v2182 = vadd.f32 0.0, %v2181
        %v2183 = vpop.f32.mrb[0].mxu0
        %2184 = vmatprep.mubr.bf16.mxu0 %v2109
        %2185 = vmatmul.mubr.bf16.gmra.mrb[0].mxu0 %v2108
        %v2186 = vpop.f32.mrb[0].mxu0
        %v2187 = vadd.f32 0.0, %v2186
        %v2188 = vpop.f32.mrb[0].mxu0
        %v2189 = vpop.f32.mrb[0].mxu0
        %v2190 = vadd.f32 0.0, %v2189
        %v2191 = vpop.f32.mrb[0].mxu0
        %2192 = vmatprep.mubr.bf16.mxu0 %v2111
        %2193 = vmatmul.mubr.bf16.gmra.mrb[0].mxu0 %v2110
        %v2194 = vpop.f32.mrb[0].mxu0
        %v2195 = vadd.f32 0.0, %v2194
        %v2196 = vpop.f32.mrb[0].mxu0
        %v2197 = vpop.f32.mrb[0].mxu0
        %v2198 = vadd.f32 0.0, %v2197
        %v2199 = vpop.f32.mrb[0].mxu0
        %2200 = vmatprep.mubr.bf16.mxu0 %v2113
        %2201 = vmatmul.mubr.bf16.gmra.mrb[0].mxu0 %v2112
        %v2202 = vpop.f32.mrb[0].mxu0
        %v2203 = vadd.f32 0.0, %v2202
        %v2204 = vpop.f32.mrb[0].mxu0
        %v2205 = vpop.f32.mrb[0].mxu0
        %v2206 = vadd.f32 0.0, %v2205
        %v2207 = vpop.f32.mrb[0].mxu0
        %2208 = vmatprep.mubr.bf16.mxu0 %v2115
        %2209 = vmatmul.mubr.bf16.gmra.mrb[0].mxu0 %v2114
        %v2210 = vpop.f32.mrb[0].mxu0
        %v2211 = vadd.f32 0.0, %v2210
        %v2212 = vpop.f32.mrb[0].mxu0
        %v2213 = vpop.f32.mrb[0].mxu0
        %v2214 = vadd.f32 0.0, %v2213
        %v2215 = vpop.f32.mrb[0].mxu0
        %2216 = vmatprep.mubr.bf16.mxu0 %v2117
        %2217 = vmatmul.mubr.bf16.gmra.mrb[0].mxu0 %v2116
        %v2218 = vpop.f32.mrb[0].mxu0
        %v2219 = vadd.f32 0.0, %v2218
        %v2220 = vpop.f32.mrb[0].mxu0
        %v2221 = vpop.f32.mrb[0].mxu0
        %v2222 = vadd.f32 0.0, %v2221
        %v2223 = vpop.f32.mrb[0].mxu0
        %2224 = vmatprep.mubr.bf16.mxu0 %v2119
        %2225 = vmatmul.mubr.bf16.gmra.mrb[0].mxu0 %v2118
        %v2226 = vpop.f32.mrb[0].mxu0
        %v2227 = vadd.f32 0.0, %v2226
        %v2228 = vpop.f32.mrb[0].mxu0
        %v2229 = vpop.f32.mrb[0].mxu0
        %v2230 = vadd.f32 0.0, %v2229
        %v2231 = vpop.f32.mrb[0].mxu0
        %2232 = vmatprep.mubr.bf16.mxu0 %v2121
        %2233 = vmatmul.mubr.bf16.gmra.mrb[0].mxu0 %v2120
        %v2234 = vpop.f32.mrb[0].mxu0
        %v2235 = vadd.f32 0.0, %v2234
        %v2236 = vpop.f32.mrb[0].mxu0
        %v2237 = vpop.f32.mrb[0].mxu0
        %v2238 = vadd.f32 0.0, %v2237
        %v2239 = vpop.f32.mrb[0].mxu0
        %2240 = vmatprep.mubr.bf16.mxu0 %v2123
        %2241 = vmatmul.mubr.bf16.gmra.mrb[0].mxu0 %v2122
        %v2242 = vpop.f32.mrb[0].mxu0
        %v2243 = vadd.f32 0.0, %v2242
        %v2244 = vpop.f32.mrb[0].mxu0
        %v2245 = vpop.f32.mrb[0].mxu0
        %v2246 = vadd.f32 0.0, %v2245
        %v2247 = vpop.f32.mrb[0].mxu0
        %2248 = vmatprep.mubr.bf16.mxu0 %v2125
        %2249 = vmatmul.mubr.bf16.gmra.mrb[0].mxu0 %v2124
        %v2250 = vpop.f32.mrb[0].mxu0
        %v2251 = vadd.f32 0.0, %v2250
        %v2252 = vpop.f32.mrb[0].mxu0
        %v2253 = vpop.f32.mrb[0].mxu0
        %v2254 = vadd.f32 0.0, %v2253
        %v2255 = vpop.f32.mrb[0].mxu0
        %2256 = vmatprep.mubr.bf16.mxu0 %v2127
        %2257 = vmatmul.mubr.bf16.gmra.mrb[0].mxu0 %v2126
        %v2258 = vpop.f32.mrb[0].mxu0
        %v2259 = vadd.f32 0.0, %v2258
        %v2260 = vpop.f32.mrb[0].mxu0
        %v2261 = vpop.f32.mrb[0].mxu0
        %v2262 = vadd.f32 0.0, %v2261
        %v2263 = vpop.f32.mrb[0].mxu0
        %2264 = vmatprep.mubr.bf16.mxu0 %v2129
        %2265 = vmatmul.mubr.bf16.gmra.mrb[0].mxu0 %v2128
        %v2266 = vpop.f32.mrb[0].mxu0
        %v2267 = vadd.f32 0.0, %v2266
        %v2268 = vpop.f32.mrb[0].mxu0
        %v2269 = vpop.f32.mrb[0].mxu0
        %v2270 = vadd.f32 0.0, %v2269
        %v2271 = vpop.f32.mrb[0].mxu0
        %2272 = vmatprep.mubr.bf16.mxu0 %v2131
        %2273 = vmatmul.mubr.bf16.gmra.mrb[0].mxu0 %v2130
        %v2274 = vpop.f32.mrb[0].mxu0
        %v2275 = vadd.f32 0.0, %v2274
        %v2276 = vpop.f32.mrb[0].mxu0
        %v2277 = vpop.f32.mrb[0].mxu0
        %v2278 = vadd.f32 0.0, %v2277
        %v2279 = vpop.f32.mrb[0].mxu0
        %2280 = vmatprep.mubr.bf16.mxu0 %v2133
        %2281 = vmatmul.mubr.bf16.gmra.mrb[0].mxu0 %v2132
        %v2282 = vpop.f32.mrb[0].mxu0
        %v2283 = vadd.f32 0.0, %v2282
        %v2284 = vpop.f32.mrb[0].mxu0
        %v2285 = vpop.f32.mrb[0].mxu0
        %v2286 = vadd.f32 0.0, %v2285
        %v2287 = vpop.f32.mrb[0].mxu0
        %2288 = vmatprep.mubr.bf16.mxu0 %v2135
        %2289 = vmatmul.mubr.bf16.gmra.mrb[0].mxu0 %v2134
        %v2290 = vpop.f32.mrb[0].mxu0
        %v2291 = vadd.f32 0.0, %v2290
        %v2292 = vpop.f32.mrb[0].mxu0
        %v2293 = vpop.f32.mrb[0].mxu0
        %v2294 = vadd.f32 0.0, %v2293
        %v2295 = vpop.f32.mrb[0].mxu0
        %2296 = vdwg.mxu0
        %v2297 = vrcp.pop %v2010
        %v2298 = vrcp.pop %v2013
        %v2299 = vrcp.pop %v2016
        %v2300 = vrcp.pop %v2019
        %v2301 = vrcp.pop %v2022
        %v2302 = vrcp.pop %v2025
        %v2303 = vrcp.pop %v2028
        %v2304 = vrcp.pop %v2031
        %v2305 = vrcp.pop %v2034
        %v2306 = vrcp.pop %v2037
        %v2307 = vrcp.pop %v2040
        %v2308 = vrcp.pop %v2043
        %v2309 = vrcp.pop %v2046
        %v2310 = vrcp.pop %v2049
        %v2311 = vrcp.pop %v2052
        %v2312 = vrcp.pop %v2055
        %v2313 = vrcp.pop %v2058
        %v2314 = vrcp.pop %v2061
        %v2315 = vrcp.pop %v2064
        %v2316 = vrcp.pop %v2067
        %v2317 = vrcp.pop %v2070
        %v2318 = vrcp.pop %v2073
        %v2319 = vrcp.pop %v2076
        %v2320 = vrcp.pop %v2079
        %v2321 = vrcp.pop %v2082
        %v2322 = vrcp.pop %v2085
        %v2323 = vrcp.pop %v2088
        %v2324 = vrcp.pop %v2091
        %v2325 = vrcp.pop %v2094
        %v2326 = vrcp.pop %v2097
        %v2327 = vrcp.pop %v2100
        %v2328 = vrcp.pop %v2103
        %v2329 = vmul.f32 %v2171, %v2297
        %v2330 = vmul.f32 %v2174, %v2298
        %v2331 = vmul.f32 %v2179, %v2299
        %v2332 = vmul.f32 %v2182, %v2300
        %v2333 = vmul.f32 %v2187, %v2301
        %v2334 = vmul.f32 %v2190, %v2302
        %v2335 = vmul.f32 %v2195, %v2303
        %v2336 = vmul.f32 %v2198, %v2304
        %v2337 = vmul.f32 %v2203, %v2305
        %v2338 = vmul.f32 %v2206, %v2306
        %v2339 = vmul.f32 %v2211, %v2307
        %v2340 = vmul.f32 %v2214, %v2308
        %v2341 = vmul.f32 %v2219, %v2309
        %v2342 = vmul.f32 %v2222, %v2310
        %v2343 = vmul.f32 %v2227, %v2311
        %v2344 = vmul.f32 %v2230, %v2312
        %v2345 = vmul.f32 %v2235, %v2313
        %v2346 = vmul.f32 %v2238, %v2314
        %v2347 = vmul.f32 %v2243, %v2315
        %v2348 = vmul.f32 %v2246, %v2316
        %v2349 = vmul.f32 %v2251, %v2317
        %v2350 = vmul.f32 %v2254, %v2318
        %v2351 = vmul.f32 %v2259, %v2319
        %v2352 = vmul.f32 %v2262, %v2320
        %v2353 = vmul.f32 %v2267, %v2321
        %v2354 = vmul.f32 %v2270, %v2322
        %v2355 = vmul.f32 %v2275, %v2323
        %v2356 = vmul.f32 %v2278, %v2324
        %v2357 = vmul.f32 %v2283, %v2325
        %v2358 = vmul.f32 %v2286, %v2326
        %v2359 = vmul.f32 %v2291, %v2327
        %v2360 = vmul.f32 %v2294, %v2328
        %2361 = vxpose.xlu0.b32.start [1/16] %v2329, 128
        %2362 = vxpose.xlu0.b32.cont [2/16] %v2330, 128
        %2363 = vxpose.xlu0.b32.cont [3/16] %v2331, 128
        %2364 = vxpose.xlu0.b32.cont [4/16] %v2332, 128
        %2365 = vxpose.xlu0.b32.cont [5/16] %v2333, 128
        %2366 = vxpose.xlu0.b32.cont [6/16] %v2334, 128
        %2367 = vxpose.xlu0.b32.cont [7/16] %v2335, 128
        %2368 = vxpose.xlu0.b32.cont [8/16] %v2336, 128
        %2369 = vxpose.xlu0.b32.cont [9/16] %v2337, 128
        %2370 = vxpose.xlu0.b32.cont [10/16] %v2338, 128
        %2371 = vxpose.xlu0.b32.cont [11/16] %v2339, 128
        %2372 = vxpose.xlu0.b32.cont [12/16] %v2340, 128
        %2373 = vxpose.xlu0.b32.cont [13/16] %v2341, 128
        %2374 = vxpose.xlu0.b32.cont [14/16] %v2342, 128
        %2375 = vxpose.xlu0.b32.cont [15/16] %v2343, 128
        %2376 = vxpose.xlu0.b32.end [16/16] %v2344, 128
        %v2377 = vpop.trf.xlu0
        %v2378 = vpop.trf.xlu0
        %v2379 = vpop.trf.xlu0
        %v2380 = vpop.trf.xlu0
        %v2381 = vpop.trf.xlu0
        %v2382 = vpop.trf.xlu0
        %v2383 = vpop.trf.xlu0
        %v2384 = vpop.trf.xlu0
        %v2385 = vpop.trf.xlu0
        %v2386 = vpop.trf.xlu0
        %v2387 = vpop.trf.xlu0
        %v2388 = vpop.trf.xlu0
        %v2389 = vpop.trf.xlu0
        %v2390 = vpop.trf.xlu0
        %v2391 = vpop.trf.xlu0
        %v2392 = vpop.trf.xlu0
        %2393 = vxpose.xlu0.b32.start [1/16] %v2345, 128
        %2394 = vxpose.xlu0.b32.cont [2/16] %v2346, 128
        %2395 = vxpose.xlu0.b32.cont [3/16] %v2347, 128
        %2396 = vxpose.xlu0.b32.cont [4/16] %v2348, 128
        %2397 = vxpose.xlu0.b32.cont [5/16] %v2349, 128
        %2398 = vxpose.xlu0.b32.cont [6/16] %v2350, 128
        %2399 = vxpose.xlu0.b32.cont [7/16] %v2351, 128
        %2400 = vxpose.xlu0.b32.cont [8/16] %v2352, 128
        %2401 = vxpose.xlu0.b32.cont [9/16] %v2353, 128
        %2402 = vxpose.xlu0.b32.cont [10/16] %v2354, 128
        %2403 = vxpose.xlu0.b32.cont [11/16] %v2355, 128
        %2404 = vxpose.xlu0.b32.cont [12/16] %v2356, 128
        %2405 = vxpose.xlu0.b32.cont [13/16] %v2357, 128
        %2406 = vxpose.xlu0.b32.cont [14/16] %v2358, 128
        %2407 = vxpose.xlu0.b32.cont [15/16] %v2359, 128
        %2408 = vxpose.xlu0.b32.end [16/16] %v2360, 128
        %v2409 = vpop.trf.xlu0
        %v2410 = vpop.trf.xlu0
        %v2411 = vpop.trf.xlu0
        %v2412 = vpop.trf.xlu0
        %v2413 = vpop.trf.xlu0
        %v2414 = vpop.trf.xlu0
        %v2415 = vpop.trf.xlu0
        %v2416 = vpop.trf.xlu0
        %v2417 = vpop.trf.xlu0
        %v2418 = vpop.trf.xlu0
        %v2419 = vpop.trf.xlu0
        %v2420 = vpop.trf.xlu0
        %v2421 = vpop.trf.xlu0
        %v2422 = vpop.trf.xlu0
        %v2423 = vpop.trf.xlu0
        %v2424 = vpop.trf.xlu0
        %v2425 = vpack.c.bf16 %v2378, %v2377
        %v2426 = vpack.c.bf16 %v2410, %v2409
        %v2427 = vpack.c.bf16 %v2380, %v2379
        %v2428 = vpack.c.bf16 %v2412, %v2411
        %2429 = vst [vmem:[#allocation2] sm:$0xff] %v2425
        %2430 = vst [vmem:[#allocation2 + $0x8] sm:$0xff] %v2426
        %2431 = vst [vmem:[#allocation2 + $0x10] sm:$0xff] %v2427
        %2432 = vst [vmem:[#allocation2 + $0x18] sm:$0xff] %v2428
        %v2433 = vpack.c.bf16 %v1281, %v1277
        %v2434 = vpack.c.bf16 %v1283, %v1279
        %v2435 = vpack.c.bf16 %v1291, %v1287
        %v2436 = vpack.c.bf16 %v1293, %v1289
        %2437 = vxpose.xlu0.b32.start [1/16] %v1257, 128
        %2438 = vxpose.xlu0.b32.cont [2/16] %v1261, 128
        %2439 = vxpose.xlu0.b32.cont [3/16] %v1267, 128
        %2440 = vxpose.xlu0.b32.cont [4/16] %v1271, 128
        %2441 = vxpose.xlu0.b32.cont [5/16] 0.0, 128
        %2442 = vxpose.xlu0.b32.cont [6/16] 0.0, 128
        %2443 = vxpose.xlu0.b32.cont [7/16] 0.0, 128
        %2444 = vxpose.xlu0.b32.cont [8/16] 0.0, 128
        %2445 = vxpose.xlu0.b32.cont [9/16] 0.0, 128
        %2446 = vxpose.xlu0.b32.cont [10/16] 0.0, 128
        %2447 = vxpose.xlu0.b32.cont [11/16] 0.0, 128
        %2448 = vxpose.xlu0.b32.cont [12/16] 0.0, 128
        %2449 = vxpose.xlu0.b32.cont [13/16] 0.0, 128
        %2450 = vxpose.xlu0.b32.cont [14/16] 0.0, 128
        %2451 = vxpose.xlu0.b32.cont [15/16] 0.0, 128
        %2452 = vxpose.xlu0.b32.end [16/16] 0.0, 128
        %v2453 = vpop.trf.xlu0
        %v2454 = vpop.trf.xlu0
        %v2455 = vpop.trf.xlu0
        %v2456 = vpop.trf.xlu0
        %v2457 = vpop.trf.xlu0
        %v2458 = vpop.trf.xlu0
        %v2459 = vpop.trf.xlu0
        %v2460 = vpop.trf.xlu0
        %v2461 = vpop.trf.xlu0
        %v2462 = vpop.trf.xlu0
        %v2463 = vpop.trf.xlu0
        %v2464 = vpop.trf.xlu0
        %v2465 = vpop.trf.xlu0
        %v2466 = vpop.trf.xlu0
        %v2467 = vpop.trf.xlu0
        %v2468 = vpop.trf.xlu0
        %2469 = vxpose.xlu0.b32.start [1/16] %v1259, 128
        %2470 = vxpose.xlu0.b32.cont [2/16] %v1263, 128
        %2471 = vxpose.xlu0.b32.cont [3/16] %v1269, 128
        %2472 = vxpose.xlu0.b32.cont [4/16] %v1273, 128
        %2473 = vxpose.xlu0.b32.cont [5/16] 0.0, 128
        %2474 = vxpose.xlu0.b32.cont [6/16] 0.0, 128
        %2475 = vxpose.xlu0.b32.cont [7/16] 0.0, 128
        %2476 = vxpose.xlu0.b32.cont [8/16] 0.0, 128
        %2477 = vxpose.xlu0.b32.cont [9/16] 0.0, 128
        %2478 = vxpose.xlu0.b32.cont [10/16] 0.0, 128
        %2479 = vxpose.xlu0.b32.cont [11/16] 0.0, 128
        %2480 = vxpose.xlu0.b32.cont [12/16] 0.0, 128
        %2481 = vxpose.xlu0.b32.cont [13/16] 0.0, 128
        %2482 = vxpose.xlu0.b32.cont [14/16] 0.0, 128
        %2483 = vxpose.xlu0.b32.cont [15/16] 0.0, 128
        %2484 = vxpose.xlu0.b32.end [16/16] 0.0, 128
        %v2485 = vpop.trf.xlu0
        %v2486 = vpop.trf.xlu0
        %v2487 = vpop.trf.xlu0
        %v2488 = vpop.trf.xlu0
        %v2489 = vpop.trf.xlu0
        %v2490 = vpop.trf.xlu0
        %v2491 = vpop.trf.xlu0
        %v2492 = vpop.trf.xlu0
        %v2493 = vpop.trf.xlu0
        %v2494 = vpop.trf.xlu0
        %v2495 = vpop.trf.xlu0
        %v2496 = vpop.trf.xlu0
        %v2497 = vpop.trf.xlu0
        %v2498 = vpop.trf.xlu0
        %v2499 = vpop.trf.xlu0
        %v2500 = vpop.trf.xlu0
        %v2501 = vpack.c.bf16 %v2454, %v2453
        %v2502 = vpack.c.bf16 %v2456, %v2455
        %v2503 = vpack.c.bf16 %v2458, %v2457
        %v2504 = vpack.c.bf16 %v2460, %v2459
        %v2505 = vpack.c.bf16 %v2462, %v2461
        %v2506 = vpack.c.bf16 %v2464, %v2463
        %v2507 = vpack.c.bf16 %v2466, %v2465
        %v2508 = vpack.c.bf16 %v2468, %v2467
        %v2509 = vpack.c.bf16 %v2486, %v2485
        %v2510 = vpack.c.bf16 %v2488, %v2487
        %v2511 = vpack.c.bf16 %v2490, %v2489
        %v2512 = vpack.c.bf16 %v2492, %v2491
        %v2513 = vpack.c.bf16 %v2494, %v2493
        %v2514 = vpack.c.bf16 %v2496, %v2495
        %v2515 = vpack.c.bf16 %v2498, %v2497
        %v2516 = vpack.c.bf16 %v2500, %v2499
        %2517 = vxpose.xlu0.b32.start [1/16] %v1297, 128
        %2518 = vxpose.xlu0.b32.cont [2/16] %v1301, 128
        %2519 = vxpose.xlu0.b32.cont [3/16] %v1307, 128
        %2520 = vxpose.xlu0.b32.cont [4/16] %v1311, 128
        %2521 = vxpose.xlu0.b32.cont [5/16] 0.0, 128
        %2522 = vxpose.xlu0.b32.cont [6/16] 0.0, 128
        %2523 = vxpose.xlu0.b32.cont [7/16] 0.0, 128
        %2524 = vxpose.xlu0.b32.cont [8/16] 0.0, 128
        %2525 = vxpose.xlu0.b32.cont [9/16] 0.0, 128
        %2526 = vxpose.xlu0.b32.cont [10/16] 0.0, 128
        %2527 = vxpose.xlu0.b32.cont [11/16] 0.0, 128
        %2528 = vxpose.xlu0.b32.cont [12/16] 0.0, 128
        %2529 = vxpose.xlu0.b32.cont [13/16] 0.0, 128
        %2530 = vxpose.xlu0.b32.cont [14/16] 0.0, 128
        %2531 = vxpose.xlu0.b32.cont [15/16] 0.0, 128
        %2532 = vxpose.xlu0.b32.end [16/16] 0.0, 128
        %v2533 = vpop.trf.xlu0
        %v2534 = vpop.trf.xlu0
        %v2535 = vpop.trf.xlu0
        %v2536 = vpop.trf.xlu0
        %v2537 = vpop.trf.xlu0
        %v2538 = vpop.trf.xlu0
        %v2539 = vpop.trf.xlu0
        %v2540 = vpop.trf.xlu0
        %v2541 = vpop.trf.xlu0
        %v2542 = vpop.trf.xlu0
        %v2543 = vpop.trf.xlu0
        %v2544 = vpop.trf.xlu0
        %v2545 = vpop.trf.xlu0
        %v2546 = vpop.trf.xlu0
        %v2547 = vpop.trf.xlu0
        %v2548 = vpop.trf.xlu0
        %2549 = vxpose.xlu0.b32.start [1/16] %v1299, 128
        %2550 = vxpose.xlu0.b32.cont [2/16] %v1303, 128
        %2551 = vxpose.xlu0.b32.cont [3/16] %v1309, 128
        %2552 = vxpose.xlu0.b32.cont [4/16] %v1313, 128
        %2553 = vxpose.xlu0.b32.cont [5/16] 0.0, 128
        %2554 = vxpose.xlu0.b32.cont [6/16] 0.0, 128
        %2555 = vxpose.xlu0.b32.cont [7/16] 0.0, 128
        %2556 = vxpose.xlu0.b32.cont [8/16] 0.0, 128
        %2557 = vxpose.xlu0.b32.cont [9/16] 0.0, 128
        %2558 = vxpose.xlu0.b32.cont [10/16] 0.0, 128
        %2559 = vxpose.xlu0.b32.cont [11/16] 0.0, 128
        %2560 = vxpose.xlu0.b32.cont [12/16] 0.0, 128
        %2561 = vxpose.xlu0.b32.cont [13/16] 0.0, 128
        %2562 = vxpose.xlu0.b32.cont [14/16] 0.0, 128
        %2563 = vxpose.xlu0.b32.cont [15/16] 0.0, 128
        %2564 = vxpose.xlu0.b32.end [16/16] 0.0, 128
        %v2565 = vpop.trf.xlu0
        %v2566 = vpop.trf.xlu0
        %v2567 = vpop.trf.xlu0
        %v2568 = vpop.trf.xlu0
        %v2569 = vpop.trf.xlu0
        %v2570 = vpop.trf.xlu0
        %v2571 = vpop.trf.xlu0
        %v2572 = vpop.trf.xlu0
        %v2573 = vpop.trf.xlu0
        %v2574 = vpop.trf.xlu0
        %v2575 = vpop.trf.xlu0
        %v2576 = vpop.trf.xlu0
        %v2577 = vpop.trf.xlu0
        %v2578 = vpop.trf.xlu0
        %v2579 = vpop.trf.xlu0
        %v2580 = vpop.trf.xlu0
        %v2581 = vpack.c.bf16 %v2534, %v2533
        %v2582 = vpack.c.bf16 %v2536, %v2535
        %v2583 = vpack.c.bf16 %v2538, %v2537
        %v2584 = vpack.c.bf16 %v2540, %v2539
        %v2585 = vpack.c.bf16 %v2542, %v2541
        %v2586 = vpack.c.bf16 %v2544, %v2543
        %v2587 = vpack.c.bf16 %v2546, %v2545
        %v2588 = vpack.c.bf16 %v2548, %v2547
        %v2589 = vpack.c.bf16 %v2566, %v2565
        %v2590 = vpack.c.bf16 %v2568, %v2567
        %v2591 = vpack.c.bf16 %v2570, %v2569
        %v2592 = vpack.c.bf16 %v2572, %v2571
        %v2593 = vpack.c.bf16 %v2574, %v2573
        %v2594 = vpack.c.bf16 %v2576, %v2575
        %v2595 = vpack.c.bf16 %v2578, %v2577
        %v2596 = vpack.c.bf16 %v2580, %v2579
        %v2598 = vsel %vm576, %v2501, 0
        %v2601 = vsel %vm576, %v2502, 0
        %v2604 = vsel %vm576, %v2503, 0
        %v2607 = vsel %vm576, %v2504, 0
        %v2610 = vsel %vm576, %v2505, 0
        %v2613 = vsel %vm576, %v2506, 0
        %v2616 = vsel %vm576, %v2507, 0
        %v2619 = vsel %vm576, %v2508, 0
        %v2622 = vsel %vm576, %v2509, 0
        %v2625 = vsel %vm576, %v2510, 0
        %v2628 = vsel %vm576, %v2511, 0
        %v2631 = vsel %vm576, %v2512, 0
        %v2634 = vsel %vm576, %v2513, 0
        %v2637 = vsel %vm576, %v2514, 0
        %v2640 = vsel %vm576, %v2515, 0
        %v2643 = vsel %vm576, %v2516, 0
        %2645 = vmatprep.subr.bf16.mxu0 %v2434
        %2646 = vmatpush1.bf16.msra.mxu0 %v2433
        %2647 = vmatprep.subr.bf16.mxu0 %v2436
        %2648 = vmatpush1.bf16.msra.mxu0 %v2435
        %2649 = vmatprep.subr.bf16.mxu0 0
        %2650 = vmatpush1.bf16.msra.mxu0 0
        %2651 = vmatprep.subr.bf16.mxu0 0
        %2652 = vmatpush1.bf16.msra.mxu0 0
        %2653 = vmatprep.subr.bf16.mxu0 0
        %2654 = vmatpush1.bf16.msra.mxu0 0
        %2655 = vmatprep.subr.bf16.mxu0 0
        %2656 = vmatpush1.bf16.msra.mxu0 0
        %2657 = vmatprep.subr.bf16.mxu0 0
        %2658 = vmatpush1.bf16.msra.mxu0 0
        %2659 = vmatprep.subr.bf16.mxu0 0
        %2660 = vmatpush1.bf16.msra.mxu0 0
        %2661 = vmatprep.subr.bf16.mxu0 0
        %2662 = vmatpush1.bf16.msra.mxu0 0
        %2663 = vmatprep.subr.bf16.mxu0 0
        %2664 = vmatpush1.bf16.msra.mxu0 0
        %2665 = vmatprep.subr.bf16.mxu0 0
        %2666 = vmatpush1.bf16.msra.mxu0 0
        %2667 = vmatprep.subr.bf16.mxu0 0
        %2668 = vmatpush1.bf16.msra.mxu0 0
        %2669 = vmatprep.subr.bf16.mxu0 0
        %2670 = vmatpush1.bf16.msra.mxu0 0
        %2671 = vmatprep.subr.bf16.mxu0 0
        %2672 = vmatpush1.bf16.msra.mxu0 0
        %2673 = vmatprep.subr.bf16.mxu0 0
        %2674 = vmatpush1.bf16.msra.mxu0 0
        %2675 = vmatprep.subr.bf16.mxu0 0
        %2676 = vmatpush1.bf16.msra.mxu0 0
        %2677 = vmatprep.mubr.bf16.mxu0 0
        %2678 = vmatmul.mubr.bf16.gmra.mrb[0].mxu0 %v2598
        %v2679 = vpop.f32.mrb[0].mxu0
        %v2680 = vadd.f32 0.0, %v2679
        %v2681 = vpop.f32.mrb[0].mxu0
        %v2682 = vadd.f32 0.0, %v2681
        %v2683 = vpop.f32.mrb[0].mxu0
        %v2684 = vadd.f32 0.0, %v2683
        %v2685 = vpop.f32.mrb[0].mxu0
        %v2686 = vadd.f32 0.0, %v2685
        %2687 = vmatprep.mubr.bf16.mxu0 0
        %2688 = vmatmul.mubr.bf16.gmra.mrb[0].mxu0 %v2601
        %v2689 = vpop.f32.mrb[0].mxu0
        %v2690 = vadd.f32 0.0, %v2689
        %v2691 = vpop.f32.mrb[0].mxu0
        %v2692 = vadd.f32 0.0, %v2691
        %v2693 = vpop.f32.mrb[0].mxu0
        %v2694 = vadd.f32 0.0, %v2693
        %v2695 = vpop.f32.mrb[0].mxu0
        %v2696 = vadd.f32 0.0, %v2695
        %2697 = vmatprep.mubr.bf16.mxu0 0
        %2698 = vmatmul.mubr.bf16.gmra.mrb[0].mxu0 %v2604
        %v2699 = vpop.f32.mrb[0].mxu0
        %v2700 = vadd.f32 0.0, %v2699
        %v2701 = vpop.f32.mrb[0].mxu0
        %v2702 = vadd.f32 0.0, %v2701
        %v2703 = vpop.f32.mrb[0].mxu0
        %v2704 = vadd.f32 0.0, %v2703
        %v2705 = vpop.f32.mrb[0].mxu0
        %v2706 = vadd.f32 0.0, %v2705
        %2707 = vmatprep.mubr.bf16.mxu0 0
        %2708 = vmatmul.mubr.bf16.gmra.mrb[0].mxu0 %v2607
        %v2709 = vpop.f32.mrb[0].mxu0
        %v2710 = vadd.f32 0.0, %v2709
        %v2711 = vpop.f32.mrb[0].mxu0
        %v2712 = vadd.f32 0.0, %v2711
        %v2713 = vpop.f32.mrb[0].mxu0
        %v2714 = vadd.f32 0.0, %v2713
        %v2715 = vpop.f32.mrb[0].mxu0
        %v2716 = vadd.f32 0.0, %v2715
        %2717 = vmatprep.mubr.bf16.mxu0 0
        %2718 = vmatmul.mubr.bf16.gmra.mrb[0].mxu0 %v2610
        %v2719 = vpop.f32.mrb[0].mxu0
        %v2720 = vadd.f32 0.0, %v2719
        %v2721 = vpop.f32.mrb[0].mxu0
        %v2722 = vadd.f32 0.0, %v2721
        %v2723 = vpop.f32.mrb[0].mxu0
        %v2724 = vadd.f32 0.0, %v2723
        %v2725 = vpop.f32.mrb[0].mxu0
        %v2726 = vadd.f32 0.0, %v2725
        %2727 = vmatprep.mubr.bf16.mxu0 0
        %2728 = vmatmul.mubr.bf16.gmra.mrb[0].mxu0 %v2613
        %v2729 = vpop.f32.mrb[0].mxu0
        %v2730 = vadd.f32 0.0, %v2729
        %v2731 = vpop.f32.mrb[0].mxu0
        %v2732 = vadd.f32 0.0, %v2731
        %v2733 = vpop.f32.mrb[0].mxu0
        %v2734 = vadd.f32 0.0, %v2733
        %v2735 = vpop.f32.mrb[0].mxu0
        %v2736 = vadd.f32 0.0, %v2735
        %2737 = vmatprep.mubr.bf16.mxu0 0
        %2738 = vmatmul.mubr.bf16.gmra.mrb[0].mxu0 %v2616
        %v2739 = vpop.f32.mrb[0].mxu0
        %v2740 = vadd.f32 0.0, %v2739
        %v2741 = vpop.f32.mrb[0].mxu0
        %v2742 = vadd.f32 0.0, %v2741
        %v2743 = vpop.f32.mrb[0].mxu0
        %v2744 = vadd.f32 0.0, %v2743
        %v2745 = vpop.f32.mrb[0].mxu0
        %v2746 = vadd.f32 0.0, %v2745
        %2747 = vmatprep.mubr.bf16.mxu0 0
        %2748 = vmatmul.mubr.bf16.gmra.mrb[0].mxu0 %v2619
        %v2749 = vpop.f32.mrb[0].mxu0
        %v2750 = vadd.f32 0.0, %v2749
        %v2751 = vpop.f32.mrb[0].mxu0
        %v2752 = vadd.f32 0.0, %v2751
        %v2753 = vpop.f32.mrb[0].mxu0
        %v2754 = vadd.f32 0.0, %v2753
        %v2755 = vpop.f32.mrb[0].mxu0
        %v2756 = vadd.f32 0.0, %v2755
        %2757 = vmatprep.mubr.bf16.mxu0 0
        %2758 = vmatmul.mubr.bf16.gmra.mrb[0].mxu0 %v2622
        %v2759 = vpop.f32.mrb[0].mxu0
        %v2760 = vadd.f32 0.0, %v2759
        %v2761 = vpop.f32.mrb[0].mxu0
        %v2762 = vadd.f32 0.0, %v2761
        %v2763 = vpop.f32.mrb[0].mxu0
        %v2764 = vadd.f32 0.0, %v2763
        %v2765 = vpop.f32.mrb[0].mxu0
        %v2766 = vadd.f32 0.0, %v2765
        %2767 = vmatprep.mubr.bf16.mxu0 0
        %2768 = vmatmul.mubr.bf16.gmra.mrb[0].mxu0 %v2625
        %v2769 = vpop.f32.mrb[0].mxu0
        %v2770 = vadd.f32 0.0, %v2769
        %v2771 = vpop.f32.mrb[0].mxu0
        %v2772 = vadd.f32 0.0, %v2771
        %v2773 = vpop.f32.mrb[0].mxu0
        %v2774 = vadd.f32 0.0, %v2773
        %v2775 = vpop.f32.mrb[0].mxu0
        %v2776 = vadd.f32 0.0, %v2775
        %2777 = vmatprep.mubr.bf16.mxu0 0
        %2778 = vmatmul.mubr.bf16.gmra.mrb[0].mxu0 %v2628
        %v2779 = vpop.f32.mrb[0].mxu0
        %v2780 = vadd.f32 0.0, %v2779
        %v2781 = vpop.f32.mrb[0].mxu0
        %v2782 = vadd.f32 0.0, %v2781
        %v2783 = vpop.f32.mrb[0].mxu0
        %v2784 = vadd.f32 0.0, %v2783
        %v2785 = vpop.f32.mrb[0].mxu0
        %v2786 = vadd.f32 0.0, %v2785
        %2787 = vmatprep.mubr.bf16.mxu0 0
        %2788 = vmatmul.mubr.bf16.gmra.mrb[0].mxu0 %v2631
        %v2789 = vpop.f32.mrb[0].mxu0
        %v2790 = vadd.f32 0.0, %v2789
        %v2791 = vpop.f32.mrb[0].mxu0
        %v2792 = vadd.f32 0.0, %v2791
        %v2793 = vpop.f32.mrb[0].mxu0
        %v2794 = vadd.f32 0.0, %v2793
        %v2795 = vpop.f32.mrb[0].mxu0
        %v2796 = vadd.f32 0.0, %v2795
        %2797 = vmatprep.mubr.bf16.mxu0 0
        %2798 = vmatmul.mubr.bf16.gmra.mrb[0].mxu0 %v2634
        %v2799 = vpop.f32.mrb[0].mxu0
        %v2800 = vadd.f32 0.0, %v2799
        %v2801 = vpop.f32.mrb[0].mxu0
        %v2802 = vadd.f32 0.0, %v2801
        %v2803 = vpop.f32.mrb[0].mxu0
        %v2804 = vadd.f32 0.0, %v2803
        %v2805 = vpop.f32.mrb[0].mxu0
        %v2806 = vadd.f32 0.0, %v2805
        %2807 = vmatprep.mubr.bf16.mxu0 0
        %2808 = vmatmul.mubr.bf16.gmra.mrb[0].mxu0 %v2637
        %v2809 = vpop.f32.mrb[0].mxu0
        %v2810 = vadd.f32 0.0, %v2809
        %v2811 = vpop.f32.mrb[0].mxu0
        %v2812 = vadd.f32 0.0, %v2811
        %v2813 = vpop.f32.mrb[0].mxu0
        %v2814 = vadd.f32 0.0, %v2813
        %v2815 = vpop.f32.mrb[0].mxu0
        %v2816 = vadd.f32 0.0, %v2815
        %2817 = vmatprep.mubr.bf16.mxu0 0
        %2818 = vmatmul.mubr.bf16.gmra.mrb[0].mxu0 %v2640
        %v2819 = vpop.f32.mrb[0].mxu0
        %v2820 = vadd.f32 0.0, %v2819
        %v2821 = vpop.f32.mrb[0].mxu0
        %v2822 = vadd.f32 0.0, %v2821
        %v2823 = vpop.f32.mrb[0].mxu0
        %v2824 = vadd.f32 0.0, %v2823
        %v2825 = vpop.f32.mrb[0].mxu0
        %v2826 = vadd.f32 0.0, %v2825
        %2827 = vmatprep.mubr.bf16.mxu0 0
        %2828 = vmatmul.mubr.bf16.gmra.mrb[0].mxu0 %v2643
        %v2829 = vpop.f32.mrb[0].mxu0
        %v2830 = vadd.f32 0.0, %v2829
        %v2831 = vpop.f32.mrb[0].mxu0
        %v2832 = vadd.f32 0.0, %v2831
        %v2833 = vpop.f32.mrb[0].mxu0
        %v2834 = vadd.f32 0.0, %v2833
        %v2835 = vpop.f32.mrb[0].mxu0
        %v2836 = vadd.f32 0.0, %v2835
        %2837 = vdwg.mxu0
        %v2838 = vmax.f32 %v2680, %v2682
        %2839 = vmax.xlane.f32.xlu0 %v2838
        %v2840 = vpop.xlane.xlu0 %2839
        %v2841 = vmax.f32 %v2684, %v2686
        %2842 = vmax.xlane.f32.xlu0 %v2841
        %v2843 = vpop.xlane.xlu0 %2842
        %v2844 = vmax.f32 %v2690, %v2692
        %2845 = vmax.xlane.f32.xlu0 %v2844
        %v2846 = vpop.xlane.xlu0 %2845
        %v2847 = vmax.f32 %v2694, %v2696
        %2848 = vmax.xlane.f32.xlu0 %v2847
        %v2849 = vpop.xlane.xlu0 %2848
        %v2850 = vmax.f32 %v2700, %v2702
        %2851 = vmax.xlane.f32.xlu0 %v2850
        %v2852 = vpop.xlane.xlu0 %2851
        %v2853 = vmax.f32 %v2704, %v2706
        %2854 = vmax.xlane.f32.xlu0 %v2853
        %v2855 = vpop.xlane.xlu0 %2854
        %v2856 = vmax.f32 %v2710, %v2712
        %2857 = vmax.xlane.f32.xlu0 %v2856
        %v2858 = vpop.xlane.xlu0 %2857
        %v2859 = vmax.f32 %v2714, %v2716
        %2860 = vmax.xlane.f32.xlu0 %v2859
        %v2861 = vpop.xlane.xlu0 %2860
        %v2862 = vmax.f32 %v2720, %v2722
        %2863 = vmax.xlane.f32.xlu0 %v2862
        %v2864 = vpop.xlane.xlu0 %2863
        %v2865 = vmax.f32 %v2724, %v2726
        %2866 = vmax.xlane.f32.xlu0 %v2865
        %v2867 = vpop.xlane.xlu0 %2866
        %v2868 = vmax.f32 %v2730, %v2732
        %2869 = vmax.xlane.f32.xlu0 %v2868
        %v2870 = vpop.xlane.xlu0 %2869
        %v2871 = vmax.f32 %v2734, %v2736
        %2872 = vmax.xlane.f32.xlu0 %v2871
        %v2873 = vpop.xlane.xlu0 %2872
        %v2874 = vmax.f32 %v2740, %v2742
        %2875 = vmax.xlane.f32.xlu0 %v2874
        %v2876 = vpop.xlane.xlu0 %2875
        %v2877 = vmax.f32 %v2744, %v2746
        %2878 = vmax.xlane.f32.xlu0 %v2877
        %v2879 = vpop.xlane.xlu0 %2878
        %v2880 = vmax.f32 %v2750, %v2752
        %2881 = vmax.xlane.f32.xlu0 %v2880
        %v2882 = vpop.xlane.xlu0 %2881
        %v2883 = vmax.f32 %v2754, %v2756
        %2884 = vmax.xlane.f32.xlu0 %v2883
        %v2885 = vpop.xlane.xlu0 %2884
        %v2886 = vmax.f32 %v2760, %v2762
        %2887 = vmax.xlane.f32.xlu0 %v2886
        %v2888 = vpop.xlane.xlu0 %2887
        %v2889 = vmax.f32 %v2764, %v2766
        %2890 = vmax.xlane.f32.xlu0 %v2889
        %v2891 = vpop.xlane.xlu0 %2890
        %v2892 = vmax.f32 %v2770, %v2772
        %2893 = vmax.xlane.f32.xlu0 %v2892
        %v2894 = vpop.xlane.xlu0 %2893
        %v2895 = vmax.f32 %v2774, %v2776
        %2896 = vmax.xlane.f32.xlu0 %v2895
        %v2897 = vpop.xlane.xlu0 %2896
        %v2898 = vmax.f32 %v2780, %v2782
        %2899 = vmax.xlane.f32.xlu0 %v2898
        %v2900 = vpop.xlane.xlu0 %2899
        %v2901 = vmax.f32 %v2784, %v2786
        %2902 = vmax.xlane.f32.xlu0 %v2901
        %v2903 = vpop.xlane.xlu0 %2902
        %v2904 = vmax.f32 %v2790, %v2792
        %2905 = vmax.xlane.f32.xlu0 %v2904
        %v2906 = vpop.xlane.xlu0 %2905
        %v2907 = vmax.f32 %v2794, %v2796
        %2908 = vmax.xlane.f32.xlu0 %v2907
        %v2909 = vpop.xlane.xlu0 %2908
        %v2910 = vmax.f32 %v2800, %v2802
        %2911 = vmax.xlane.f32.xlu0 %v2910
        %v2912 = vpop.xlane.xlu0 %2911
        %v2913 = vmax.f32 %v2804, %v2806
        %2914 = vmax.xlane.f32.xlu0 %v2913
        %v2915 = vpop.xlane.xlu0 %2914
        %v2916 = vmax.f32 %v2810, %v2812
        %2917 = vmax.xlane.f32.xlu0 %v2916
        %v2918 = vpop.xlane.xlu0 %2917
        %v2919 = vmax.f32 %v2814, %v2816
        %2920 = vmax.xlane.f32.xlu0 %v2919
        %v2921 = vpop.xlane.xlu0 %2920
        %v2922 = vmax.f32 %v2820, %v2822
        %2923 = vmax.xlane.f32.xlu0 %v2922
        %v2924 = vpop.xlane.xlu0 %2923
        %v2925 = vmax.f32 %v2824, %v2826
        %2926 = vmax.xlane.f32.xlu0 %v2925
        %v2927 = vpop.xlane.xlu0 %2926
        %v2928 = vmax.f32 %v2830, %v2832
        %2929 = vmax.xlane.f32.xlu0 %v2928
        %v2930 = vpop.xlane.xlu0 %2929
        %v2931 = vmax.f32 %v2834, %v2836
        %2932 = vmax.xlane.f32.xlu0 %v2931
        %v2933 = vpop.xlane.xlu0 %2932
        %v2934 = vsub.f32 %v2680, %v2840
        %v2935 = vsub.f32 %v2682, %v2840
        %v2936 = vsub.f32 %v2684, %v2843
        %v2937 = vsub.f32 %v2686, %v2843
        %v2938 = vsub.f32 %v2690, %v2846
        %v2939 = vsub.f32 %v2692, %v2846
        %v2940 = vsub.f32 %v2694, %v2849
        %v2941 = vsub.f32 %v2696, %v2849
        %v2942 = vsub.f32 %v2700, %v2852
        %v2943 = vsub.f32 %v2702, %v2852
        %v2944 = vsub.f32 %v2704, %v2855
        %v2945 = vsub.f32 %v2706, %v2855
        %v2946 = vsub.f32 %v2710, %v2858
        %v2947 = vsub.f32 %v2712, %v2858
        %v2948 = vsub.f32 %v2714, %v2861
        %v2949 = vsub.f32 %v2716, %v2861
        %v2950 = vsub.f32 %v2720, %v2864
        %v2951 = vsub.f32 %v2722, %v2864
        %v2952 = vsub.f32 %v2724, %v2867
        %v2953 = vsub.f32 %v2726, %v2867
        %v2954 = vsub.f32 %v2730, %v2870
        %v2955 = vsub.f32 %v2732, %v2870
        %v2956 = vsub.f32 %v2734, %v2873
        %v2957 = vsub.f32 %v2736, %v2873
        %v2958 = vsub.f32 %v2740, %v2876
        %v2959 = vsub.f32 %v2742, %v2876
        %v2960 = vsub.f32 %v2744, %v2879
        %v2961 = vsub.f32 %v2746, %v2879
        %v2962 = vsub.f32 %v2750, %v2882
        %v2963 = vsub.f32 %v2752, %v2882
        %v2964 = vsub.f32 %v2754, %v2885
        %v2965 = vsub.f32 %v2756, %v2885
        %v2966 = vsub.f32 %v2760, %v2888
        %v2967 = vsub.f32 %v2762, %v2888
        %v2968 = vsub.f32 %v2764, %v2891
        %v2969 = vsub.f32 %v2766, %v2891
        %v2970 = vsub.f32 %v2770, %v2894
        %v2971 = vsub.f32 %v2772, %v2894
        %v2972 = vsub.f32 %v2774, %v2897
        %v2973 = vsub.f32 %v2776, %v2897
        %v2974 = vsub.f32 %v2780, %v2900
        %v2975 = vsub.f32 %v2782, %v2900
        %v2976 = vsub.f32 %v2784, %v2903
        %v2977 = vsub.f32 %v2786, %v2903
        %v2978 = vsub.f32 %v2790, %v2906
        %v2979 = vsub.f32 %v2792, %v2906
        %v2980 = vsub.f32 %v2794, %v2909
        %v2981 = vsub.f32 %v2796, %v2909
        %v2982 = vsub.f32 %v2800, %v2912
        %v2983 = vsub.f32 %v2802, %v2912
        %v2984 = vsub.f32 %v2804, %v2915
        %v2985 = vsub.f32 %v2806, %v2915
        %v2986 = vsub.f32 %v2810, %v2918
        %v2987 = vsub.f32 %v2812, %v2918
        %v2988 = vsub.f32 %v2814, %v2921
        %v2989 = vsub.f32 %v2816, %v2921
        %v2990 = vsub.f32 %v2820, %v2924
        %v2991 = vsub.f32 %v2822, %v2924
        %v2992 = vsub.f32 %v2824, %v2927
        %v2993 = vsub.f32 %v2826, %v2927
        %v2994 = vsub.f32 %v2830, %v2930
        %v2995 = vsub.f32 %v2832, %v2930
        %v2996 = vsub.f32 %v2834, %v2933
        %v2997 = vsub.f32 %v2836, %v2933
        %v2998 = vmul.f32 %v2934, 1.442695
        %v2999 = vpow.pop %v2998
        %v3000 = vmul.f32 %v2935, 1.442695
        %v3001 = vpow.pop %v3000
        %v3002 = vmul.f32 %v2936, 1.442695
        %v3003 = vpow.pop %v3002
        %v3004 = vmul.f32 %v2937, 1.442695
        %v3005 = vpow.pop %v3004
        %v3006 = vmul.f32 %v2938, 1.442695
        %v3007 = vpow.pop %v3006
        %v3008 = vmul.f32 %v2939, 1.442695
        %v3009 = vpow.pop %v3008
        %v3010 = vmul.f32 %v2940, 1.442695
        %v3011 = vpow.pop %v3010
        %v3012 = vmul.f32 %v2941, 1.442695
        %v3013 = vpow.pop %v3012
        %v3014 = vmul.f32 %v2942, 1.442695
        %v3015 = vpow.pop %v3014
        %v3016 = vmul.f32 %v2943, 1.442695
        %v3017 = vpow.pop %v3016
        %v3018 = vmul.f32 %v2944, 1.442695
        %v3019 = vpow.pop %v3018
        %v3020 = vmul.f32 %v2945, 1.442695
        %v3021 = vpow.pop %v3020
        %v3022 = vmul.f32 %v2946, 1.442695
        %v3023 = vpow.pop %v3022
        %v3024 = vmul.f32 %v2947, 1.442695
        %v3025 = vpow.pop %v3024
        %v3026 = vmul.f32 %v2948, 1.442695
        %v3027 = vpow.pop %v3026
        %v3028 = vmul.f32 %v2949, 1.442695
        %v3029 = vpow.pop %v3028
        %v3030 = vmul.f32 %v2950, 1.442695
        %v3031 = vpow.pop %v3030
        %v3032 = vmul.f32 %v2951, 1.442695
        %v3033 = vpow.pop %v3032
        %v3034 = vmul.f32 %v2952, 1.442695
        %v3035 = vpow.pop %v3034
        %v3036 = vmul.f32 %v2953, 1.442695
        %v3037 = vpow.pop %v3036
        %v3038 = vmul.f32 %v2954, 1.442695
        %v3039 = vpow.pop %v3038
        %v3040 = vmul.f32 %v2955, 1.442695
        %v3041 = vpow.pop %v3040
        %v3042 = vmul.f32 %v2956, 1.442695
        %v3043 = vpow.pop %v3042
        %v3044 = vmul.f32 %v2957, 1.442695
        %v3045 = vpow.pop %v3044
        %v3046 = vmul.f32 %v2958, 1.442695
        %v3047 = vpow.pop %v3046
        %v3048 = vmul.f32 %v2959, 1.442695
        %v3049 = vpow.pop %v3048
        %v3050 = vmul.f32 %v2960, 1.442695
        %v3051 = vpow.pop %v3050
        %v3052 = vmul.f32 %v2961, 1.442695
        %v3053 = vpow.pop %v3052
        %v3054 = vmul.f32 %v2962, 1.442695
        %v3055 = vpow.pop %v3054
        %v3056 = vmul.f32 %v2963, 1.442695
        %v3057 = vpow.pop %v3056
        %v3058 = vmul.f32 %v2964, 1.442695
        %v3059 = vpow.pop %v3058
        %v3060 = vmul.f32 %v2965, 1.442695
        %v3061 = vpow.pop %v3060
        %v3062 = vmul.f32 %v2966, 1.442695
        %v3063 = vpow.pop %v3062
        %v3064 = vmul.f32 %v2967, 1.442695
        %v3065 = vpow.pop %v3064
        %v3066 = vmul.f32 %v2968, 1.442695
        %v3067 = vpow.pop %v3066
        %v3068 = vmul.f32 %v2969, 1.442695
        %v3069 = vpow.pop %v3068
        %v3070 = vmul.f32 %v2970, 1.442695
        %v3071 = vpow.pop %v3070
        %v3072 = vmul.f32 %v2971, 1.442695
        %v3073 = vpow.pop %v3072
        %v3074 = vmul.f32 %v2972, 1.442695
        %v3075 = vpow.pop %v3074
        %v3076 = vmul.f32 %v2973, 1.442695
        %v3077 = vpow.pop %v3076
        %v3078 = vmul.f32 %v2974, 1.442695
        %v3079 = vpow.pop %v3078
        %v3080 = vmul.f32 %v2975, 1.442695
        %v3081 = vpow.pop %v3080
        %v3082 = vmul.f32 %v2976, 1.442695
        %v3083 = vpow.pop %v3082
        %v3084 = vmul.f32 %v2977, 1.442695
        %v3085 = vpow.pop %v3084
        %v3086 = vmul.f32 %v2978, 1.442695
        %v3087 = vpow.pop %v3086
        %v3088 = vmul.f32 %v2979, 1.442695
        %v3089 = vpow.pop %v3088
        %v3090 = vmul.f32 %v2980, 1.442695
        %v3091 = vpow.pop %v3090
        %v3092 = vmul.f32 %v2981, 1.442695
        %v3093 = vpow.pop %v3092
        %v3094 = vmul.f32 %v2982, 1.442695
        %v3095 = vpow.pop %v3094
        %v3096 = vmul.f32 %v2983, 1.442695
        %v3097 = vpow.pop %v3096
        %v3098 = vmul.f32 %v2984, 1.442695
        %v3099 = vpow.pop %v3098
        %v3100 = vmul.f32 %v2985, 1.442695
        %v3101 = vpow.pop %v3100
        %v3102 = vmul.f32 %v2986, 1.442695
        %v3103 = vpow.pop %v3102
        %v3104 = vmul.f32 %v2987, 1.442695
        %v3105 = vpow.pop %v3104
        %v3106 = vmul.f32 %v2988, 1.442695
        %v3107 = vpow.pop %v3106
        %v3108 = vmul.f32 %v2989, 1.442695
        %v3109 = vpow.pop %v3108
        %v3110 = vmul.f32 %v2990, 1.442695
        %v3111 = vpow.pop %v3110
        %v3112 = vmul.f32 %v2991, 1.442695
        %v3113 = vpow.pop %v3112
        %v3114 = vmul.f32 %v2992, 1.442695
        %v3115 = vpow.pop %v3114
        %v3116 = vmul.f32 %v2993, 1.442695
        %v3117 = vpow.pop %v3116
        %v3118 = vmul.f32 %v2994, 1.442695
        %v3119 = vpow.pop %v3118
        %v3120 = vmul.f32 %v2995, 1.442695
        %v3121 = vpow.pop %v3120
        %v3122 = vmul.f32 %v2996, 1.442695
        %v3123 = vpow.pop %v3122
        %v3124 = vmul.f32 %v2997, 1.442695
        %v3125 = vpow.pop %v3124
        %v3126 = vadd.f32 %v2999, %v3001
        %3127 = vadd.xlane.f32.xlu0 %v3126
        %v3128 = vpop.xlane.xlu0 %3127
        %v3129 = vadd.f32 %v3003, %v3005
        %3130 = vadd.xlane.f32.xlu0 %v3129
        %v3131 = vpop.xlane.xlu0 %3130
        %v3132 = vadd.f32 %v3007, %v3009
        %3133 = vadd.xlane.f32.xlu0 %v3132
        %v3134 = vpop.xlane.xlu0 %3133
        %v3135 = vadd.f32 %v3011, %v3013
        %3136 = vadd.xlane.f32.xlu0 %v3135
        %v3137 = vpop.xlane.xlu0 %3136
        %v3138 = vadd.f32 %v3015, %v3017
        %3139 = vadd.xlane.f32.xlu0 %v3138
        %v3140 = vpop.xlane.xlu0 %3139
        %v3141 = vadd.f32 %v3019, %v3021
        %3142 = vadd.xlane.f32.xlu0 %v3141
        %v3143 = vpop.xlane.xlu0 %3142
        %v3144 = vadd.f32 %v3023, %v3025
        %3145 = vadd.xlane.f32.xlu0 %v3144
        %v3146 = vpop.xlane.xlu0 %3145
        %v3147 = vadd.f32 %v3027, %v3029
        %3148 = vadd.xlane.f32.xlu0 %v3147
        %v3149 = vpop.xlane.xlu0 %3148
        %v3150 = vadd.f32 %v3031, %v3033
        %3151 = vadd.xlane.f32.xlu0 %v3150
        %v3152 = vpop.xlane.xlu0 %3151
        %v3153 = vadd.f32 %v3035, %v3037
        %3154 = vadd.xlane.f32.xlu0 %v3153
        %v3155 = vpop.xlane.xlu0 %3154
        %v3156 = vadd.f32 %v3039, %v3041
        %3157 = vadd.xlane.f32.xlu0 %v3156
        %v3158 = vpop.xlane.xlu0 %3157
        %v3159 = vadd.f32 %v3043, %v3045
        %3160 = vadd.xlane.f32.xlu0 %v3159
        %v3161 = vpop.xlane.xlu0 %3160
        %v3162 = vadd.f32 %v3047, %v3049
        %3163 = vadd.xlane.f32.xlu0 %v3162
        %v3164 = vpop.xlane.xlu0 %3163
        %v3165 = vadd.f32 %v3051, %v3053
        %3166 = vadd.xlane.f32.xlu0 %v3165
        %v3167 = vpop.xlane.xlu0 %3166
        %v3168 = vadd.f32 %v3055, %v3057
        %3169 = vadd.xlane.f32.xlu0 %v3168
        %v3170 = vpop.xlane.xlu0 %3169
        %v3171 = vadd.f32 %v3059, %v3061
        %3172 = vadd.xlane.f32.xlu0 %v3171
        %v3173 = vpop.xlane.xlu0 %3172
        %v3174 = vadd.f32 %v3063, %v3065
        %3175 = vadd.xlane.f32.xlu0 %v3174
        %v3176 = vpop.xlane.xlu0 %3175
        %v3177 = vadd.f32 %v3067, %v3069
        %3178 = vadd.xlane.f32.xlu0 %v3177
        %v3179 = vpop.xlane.xlu0 %3178
        %v3180 = vadd.f32 %v3071, %v3073
        %3181 = vadd.xlane.f32.xlu0 %v3180
        %v3182 = vpop.xlane.xlu0 %3181
        %v3183 = vadd.f32 %v3075, %v3077
        %3184 = vadd.xlane.f32.xlu0 %v3183
        %v3185 = vpop.xlane.xlu0 %3184
        %v3186 = vadd.f32 %v3079, %v3081
        %3187 = vadd.xlane.f32.xlu0 %v3186
        %v3188 = vpop.xlane.xlu0 %3187
        %v3189 = vadd.f32 %v3083, %v3085
        %3190 = vadd.xlane.f32.xlu0 %v3189
        %v3191 = vpop.xlane.xlu0 %3190
        %v3192 = vadd.f32 %v3087, %v3089
        %3193 = vadd.xlane.f32.xlu0 %v3192
        %v3194 = vpop.xlane.xlu0 %3193
        %v3195 = vadd.f32 %v3091, %v3093
        %3196 = vadd.xlane.f32.xlu0 %v3195
        %v3197 = vpop.xlane.xlu0 %3196
        %v3198 = vadd.f32 %v3095, %v3097
        %3199 = vadd.xlane.f32.xlu0 %v3198
        %v3200 = vpop.xlane.xlu0 %3199
        %v3201 = vadd.f32 %v3099, %v3101
        %3202 = vadd.xlane.f32.xlu0 %v3201
        %v3203 = vpop.xlane.xlu0 %3202
        %v3204 = vadd.f32 %v3103, %v3105
        %3205 = vadd.xlane.f32.xlu0 %v3204
        %v3206 = vpop.xlane.xlu0 %3205
        %v3207 = vadd.f32 %v3107, %v3109
        %3208 = vadd.xlane.f32.xlu0 %v3207
        %v3209 = vpop.xlane.xlu0 %3208
        %v3210 = vadd.f32 %v3111, %v3113
        %3211 = vadd.xlane.f32.xlu0 %v3210
        %v3212 = vpop.xlane.xlu0 %3211
        %v3213 = vadd.f32 %v3115, %v3117
        %3214 = vadd.xlane.f32.xlu0 %v3213
        %v3215 = vpop.xlane.xlu0 %3214
        %v3216 = vadd.f32 %v3119, %v3121
        %3217 = vadd.xlane.f32.xlu0 %v3216
        %v3218 = vpop.xlane.xlu0 %3217
        %v3219 = vadd.f32 %v3123, %v3125
        %3220 = vadd.xlane.f32.xlu0 %v3219
        %v3221 = vpop.xlane.xlu0 %3220
        %v3222 = vpack.c.bf16 %v3003, %v2999
        %v3223 = vpack.c.bf16 %v3005, %v3001
        %v3224 = vpack.c.bf16 %v3011, %v3007
        %v3225 = vpack.c.bf16 %v3013, %v3009
        %v3226 = vpack.c.bf16 %v3019, %v3015
        %v3227 = vpack.c.bf16 %v3021, %v3017
        %v3228 = vpack.c.bf16 %v3027, %v3023
        %v3229 = vpack.c.bf16 %v3029, %v3025
        %v3230 = vpack.c.bf16 %v3035, %v3031
        %v3231 = vpack.c.bf16 %v3037, %v3033
        %v3232 = vpack.c.bf16 %v3043, %v3039
        %v3233 = vpack.c.bf16 %v3045, %v3041
        %v3234 = vpack.c.bf16 %v3051, %v3047
        %v3235 = vpack.c.bf16 %v3053, %v3049
        %v3236 = vpack.c.bf16 %v3059, %v3055
        %v3237 = vpack.c.bf16 %v3061, %v3057
        %v3238 = vpack.c.bf16 %v3067, %v3063
        %v3239 = vpack.c.bf16 %v3069, %v3065
        %v3240 = vpack.c.bf16 %v3075, %v3071
        %v3241 = vpack.c.bf16 %v3077, %v3073
        %v3242 = vpack.c.bf16 %v3083, %v3079
        %v3243 = vpack.c.bf16 %v3085, %v3081
        %v3244 = vpack.c.bf16 %v3091, %v3087
        %v3245 = vpack.c.bf16 %v3093, %v3089
        %v3246 = vpack.c.bf16 %v3099, %v3095
        %v3247 = vpack.c.bf16 %v3101, %v3097
        %v3248 = vpack.c.bf16 %v3107, %v3103
        %v3249 = vpack.c.bf16 %v3109, %v3105
        %v3250 = vpack.c.bf16 %v3115, %v3111
        %v3251 = vpack.c.bf16 %v3117, %v3113
        %v3252 = vpack.c.bf16 %v3123, %v3119
        %v3253 = vpack.c.bf16 %v3125, %v3121
        %3254 = vmatprep.subr.bf16.mxu0 0
        %3255 = vmatpush1.bf16.msra.mxu0 %v2581
        %3256 = vmatprep.subr.bf16.mxu0 0
        %3257 = vmatpush1.bf16.msra.mxu0 %v2582
        %3258 = vmatprep.subr.bf16.mxu0 0
        %3259 = vmatpush1.bf16.msra.mxu0 %v2583
        %3260 = vmatprep.subr.bf16.mxu0 0
        %3261 = vmatpush1.bf16.msra.mxu0 %v2584
        %3262 = vmatprep.subr.bf16.mxu0 0
        %3263 = vmatpush1.bf16.msra.mxu0 %v2585
        %3264 = vmatprep.subr.bf16.mxu0 0
        %3265 = vmatpush1.bf16.msra.mxu0 %v2586
        %3266 = vmatprep.subr.bf16.mxu0 0
        %3267 = vmatpush1.bf16.msra.mxu0 %v2587
        %3268 = vmatprep.subr.bf16.mxu0 0
        %3269 = vmatpush1.bf16.msra.mxu0 %v2588
        %3270 = vmatprep.subr.bf16.mxu0 0
        %3271 = vmatpush1.bf16.msra.mxu0 %v2589
        %3272 = vmatprep.subr.bf16.mxu0 0
        %3273 = vmatpush1.bf16.msra.mxu0 %v2590
        %3274 = vmatprep.subr.bf16.mxu0 0
        %3275 = vmatpush1.bf16.msra.mxu0 %v2591
        %3276 = vmatprep.subr.bf16.mxu0 0
        %3277 = vmatpush1.bf16.msra.mxu0 %v2592
        %3278 = vmatprep.subr.bf16.mxu0 0
        %3279 = vmatpush1.bf16.msra.mxu0 %v2593
        %3280 = vmatprep.subr.bf16.mxu0 0
        %3281 = vmatpush1.bf16.msra.mxu0 %v2594
        %3282 = vmatprep.subr.bf16.mxu0 0
        %3283 = vmatpush1.bf16.msra.mxu0 %v2595
        %3284 = vmatprep.subr.bf16.mxu0 0
        %3285 = vmatpush1.bf16.msra.mxu0 %v2596
        %3286 = vmatprep.mubr.bf16.mxu0 %v3223
        %3287 = vmatmul.mubr.bf16.gmra.mrb[0].mxu0 %v3222
        %v3288 = vpop.f32.mrb[0].mxu0
        %v3289 = vadd.f32 0.0, %v3288
        %v3290 = vpop.f32.mrb[0].mxu0
        %v3291 = vpop.f32.mrb[0].mxu0
        %v3292 = vadd.f32 0.0, %v3291
        %v3293 = vpop.f32.mrb[0].mxu0
        %3294 = vmatprep.mubr.bf16.mxu0 %v3225
        %3295 = vmatmul.mubr.bf16.gmra.mrb[0].mxu0 %v3224
        %v3296 = vpop.f32.mrb[0].mxu0
        %v3297 = vadd.f32 0.0, %v3296
        %v3298 = vpop.f32.mrb[0].mxu0
        %v3299 = vpop.f32.mrb[0].mxu0
        %v3300 = vadd.f32 0.0, %v3299
        %v3301 = vpop.f32.mrb[0].mxu0
        %3302 = vmatprep.mubr.bf16.mxu0 %v3227
        %3303 = vmatmul.mubr.bf16.gmra.mrb[0].mxu0 %v3226
        %v3304 = vpop.f32.mrb[0].mxu0
        %v3305 = vadd.f32 0.0, %v3304
        %v3306 = vpop.f32.mrb[0].mxu0
        %v3307 = vpop.f32.mrb[0].mxu0
        %v3308 = vadd.f32 0.0, %v3307
        %v3309 = vpop.f32.mrb[0].mxu0
        %3310 = vmatprep.mubr.bf16.mxu0 %v3229
        %3311 = vmatmul.mubr.bf16.gmra.mrb[0].mxu0 %v3228
        %v3312 = vpop.f32.mrb[0].mxu0
        %v3313 = vadd.f32 0.0, %v3312
        %v3314 = vpop.f32.mrb[0].mxu0
        %v3315 = vpop.f32.mrb[0].mxu0
        %v3316 = vadd.f32 0.0, %v3315
        %v3317 = vpop.f32.mrb[0].mxu0
        %3318 = vmatprep.mubr.bf16.mxu0 %v3231
        %3319 = vmatmul.mubr.bf16.gmra.mrb[0].mxu0 %v3230
        %v3320 = vpop.f32.mrb[0].mxu0
        %v3321 = vadd.f32 0.0, %v3320
        %v3322 = vpop.f32.mrb[0].mxu0
        %v3323 = vpop.f32.mrb[0].mxu0
        %v3324 = vadd.f32 0.0, %v3323
        %v3325 = vpop.f32.mrb[0].mxu0
        %3326 = vmatprep.mubr.bf16.mxu0 %v3233
        %3327 = vmatmul.mubr.bf16.gmra.mrb[0].mxu0 %v3232
        %v3328 = vpop.f32.mrb[0].mxu0
        %v3329 = vadd.f32 0.0, %v3328
        %v3330 = vpop.f32.mrb[0].mxu0
        %v3331 = vpop.f32.mrb[0].mxu0
        %v3332 = vadd.f32 0.0, %v3331
        %v3333 = vpop.f32.mrb[0].mxu0
        %3334 = vmatprep.mubr.bf16.mxu0 %v3235
        %3335 = vmatmul.mubr.bf16.gmra.mrb[0].mxu0 %v3234
        %v3336 = vpop.f32.mrb[0].mxu0
        %v3337 = vadd.f32 0.0, %v3336
        %v3338 = vpop.f32.mrb[0].mxu0
        %v3339 = vpop.f32.mrb[0].mxu0
        %v3340 = vadd.f32 0.0, %v3339
        %v3341 = vpop.f32.mrb[0].mxu0
        %3342 = vmatprep.mubr.bf16.mxu0 %v3237
        %3343 = vmatmul.mubr.bf16.gmra.mrb[0].mxu0 %v3236
        %v3344 = vpop.f32.mrb[0].mxu0
        %v3345 = vadd.f32 0.0, %v3344
        %v3346 = vpop.f32.mrb[0].mxu0
        %v3347 = vpop.f32.mrb[0].mxu0
        %v3348 = vadd.f32 0.0, %v3347
        %v3349 = vpop.f32.mrb[0].mxu0
        %3350 = vmatprep.mubr.bf16.mxu0 %v3239
        %3351 = vmatmul.mubr.bf16.gmra.mrb[0].mxu0 %v3238
        %v3352 = vpop.f32.mrb[0].mxu0
        %v3353 = vadd.f32 0.0, %v3352
        %v3354 = vpop.f32.mrb[0].mxu0
        %v3355 = vpop.f32.mrb[0].mxu0
        %v3356 = vadd.f32 0.0, %v3355
        %v3357 = vpop.f32.mrb[0].mxu0
        %3358 = vmatprep.mubr.bf16.mxu0 %v3241
        %3359 = vmatmul.mubr.bf16.gmra.mrb[0].mxu0 %v3240
        %v3360 = vpop.f32.mrb[0].mxu0
        %v3361 = vadd.f32 0.0, %v3360
        %v3362 = vpop.f32.mrb[0].mxu0
        %v3363 = vpop.f32.mrb[0].mxu0
        %v3364 = vadd.f32 0.0, %v3363
        %v3365 = vpop.f32.mrb[0].mxu0
        %3366 = vmatprep.mubr.bf16.mxu0 %v3243
        %3367 = vmatmul.mubr.bf16.gmra.mrb[0].mxu0 %v3242
        %v3368 = vpop.f32.mrb[0].mxu0
        %v3369 = vadd.f32 0.0, %v3368
        %v3370 = vpop.f32.mrb[0].mxu0
        %v3371 = vpop.f32.mrb[0].mxu0
        %v3372 = vadd.f32 0.0, %v3371
        %v3373 = vpop.f32.mrb[0].mxu0
        %3374 = vmatprep.mubr.bf16.mxu0 %v3245
        %3375 = vmatmul.mubr.bf16.gmra.mrb[0].mxu0 %v3244
        %v3376 = vpop.f32.mrb[0].mxu0
        %v3377 = vadd.f32 0.0, %v3376
        %v3378 = vpop.f32.mrb[0].mxu0
        %v3379 = vpop.f32.mrb[0].mxu0
        %v3380 = vadd.f32 0.0, %v3379
        %v3381 = vpop.f32.mrb[0].mxu0
        %3382 = vmatprep.mubr.bf16.mxu0 %v3247
        %3383 = vmatmul.mubr.bf16.gmra.mrb[0].mxu0 %v3246
        %v3384 = vpop.f32.mrb[0].mxu0
        %v3385 = vadd.f32 0.0, %v3384
        %v3386 = vpop.f32.mrb[0].mxu0
        %v3387 = vpop.f32.mrb[0].mxu0
        %v3388 = vadd.f32 0.0, %v3387
        %v3389 = vpop.f32.mrb[0].mxu0
        %3390 = vmatprep.mubr.bf16.mxu0 %v3249
        %3391 = vmatmul.mubr.bf16.gmra.mrb[0].mxu0 %v3248
        %v3392 = vpop.f32.mrb[0].mxu0
        %v3393 = vadd.f32 0.0, %v3392
        %v3394 = vpop.f32.mrb[0].mxu0
        %v3395 = vpop.f32.mrb[0].mxu0
        %v3396 = vadd.f32 0.0, %v3395
        %v3397 = vpop.f32.mrb[0].mxu0
        %3398 = vmatprep.mubr.bf16.mxu0 %v3251
        %3399 = vmatmul.mubr.bf16.gmra.mrb[0].mxu0 %v3250
        %v3400 = vpop.f32.mrb[0].mxu0
        %v3401 = vadd.f32 0.0, %v3400
        %v3402 = vpop.f32.mrb[0].mxu0
        %v3403 = vpop.f32.mrb[0].mxu0
        %v3404 = vadd.f32 0.0, %v3403
        %v3405 = vpop.f32.mrb[0].mxu0
        %3406 = vmatprep.mubr.bf16.mxu0 %v3253
        %3407 = vmatmul.mubr.bf16.gmra.mrb[0].mxu0 %v3252
        %v3408 = vpop.f32.mrb[0].mxu0
        %v3409 = vadd.f32 0.0, %v3408
        %v3410 = vpop.f32.mrb[0].mxu0
        %v3411 = vpop.f32.mrb[0].mxu0
        %v3412 = vadd.f32 0.0, %v3411
        %v3413 = vpop.f32.mrb[0].mxu0
        %3414 = vdwg.mxu0
        %v3415 = vrcp.pop %v3128
        %v3416 = vrcp.pop %v3131
        %v3417 = vrcp.pop %v3134
        %v3418 = vrcp.pop %v3137
        %v3419 = vrcp.pop %v3140
        %v3420 = vrcp.pop %v3143
        %v3421 = vrcp.pop %v3146
        %v3422 = vrcp.pop %v3149
        %v3423 = vrcp.pop %v3152
        %v3424 = vrcp.pop %v3155
        %v3425 = vrcp.pop %v3158
        %v3426 = vrcp.pop %v3161
        %v3427 = vrcp.pop %v3164
        %v3428 = vrcp.pop %v3167
        %v3429 = vrcp.pop %v3170
        %v3430 = vrcp.pop %v3173
        %v3431 = vrcp.pop %v3176
        %v3432 = vrcp.pop %v3179
        %v3433 = vrcp.pop %v3182
        %v3434 = vrcp.pop %v3185
        %v3435 = vrcp.pop %v3188
        %v3436 = vrcp.pop %v3191
        %v3437 = vrcp.pop %v3194
        %v3438 = vrcp.pop %v3197
        %v3439 = vrcp.pop %v3200
        %v3440 = vrcp.pop %v3203
        %v3441 = vrcp.pop %v3206
        %v3442 = vrcp.pop %v3209
        %v3443 = vrcp.pop %v3212
        %v3444 = vrcp.pop %v3215
        %v3445 = vrcp.pop %v3218
        %v3446 = vrcp.pop %v3221
        %v3447 = vmul.f32 %v3289, %v3415
        %v3448 = vmul.f32 %v3292, %v3416
        %v3449 = vmul.f32 %v3297, %v3417
        %v3450 = vmul.f32 %v3300, %v3418
        %v3451 = vmul.f32 %v3305, %v3419
        %v3452 = vmul.f32 %v3308, %v3420
        %v3453 = vmul.f32 %v3313, %v3421
        %v3454 = vmul.f32 %v3316, %v3422
        %v3455 = vmul.f32 %v3321, %v3423
        %v3456 = vmul.f32 %v3324, %v3424
        %v3457 = vmul.f32 %v3329, %v3425
        %v3458 = vmul.f32 %v3332, %v3426
        %v3459 = vmul.f32 %v3337, %v3427
        %v3460 = vmul.f32 %v3340, %v3428
        %v3461 = vmul.f32 %v3345, %v3429
        %v3462 = vmul.f32 %v3348, %v3430
        %v3463 = vmul.f32 %v3353, %v3431
        %v3464 = vmul.f32 %v3356, %v3432
        %v3465 = vmul.f32 %v3361, %v3433
        %v3466 = vmul.f32 %v3364, %v3434
        %v3467 = vmul.f32 %v3369, %v3435
        %v3468 = vmul.f32 %v3372, %v3436
        %v3469 = vmul.f32 %v3377, %v3437
        %v3470 = vmul.f32 %v3380, %v3438
        %v3471 = vmul.f32 %v3385, %v3439
        %v3472 = vmul.f32 %v3388, %v3440
        %v3473 = vmul.f32 %v3393, %v3441
        %v3474 = vmul.f32 %v3396, %v3442
        %v3475 = vmul.f32 %v3401, %v3443
        %v3476 = vmul.f32 %v3404, %v3444
        %v3477 = vmul.f32 %v3409, %v3445
        %v3478 = vmul.f32 %v3412, %v3446
        %3479 = vxpose.xlu0.b32.start [1/16] %v3447, 128
        %3480 = vxpose.xlu0.b32.cont [2/16] %v3448, 128
        %3481 = vxpose.xlu0.b32.cont [3/16] %v3449, 128
        %3482 = vxpose.xlu0.b32.cont [4/16] %v3450, 128
        %3483 = vxpose.xlu0.b32.cont [5/16] %v3451, 128
        %3484 = vxpose.xlu0.b32.cont [6/16] %v3452, 128
        %3485 = vxpose.xlu0.b32.cont [7/16] %v3453, 128
        %3486 = vxpose.xlu0.b32.cont [8/16] %v3454, 128
        %3487 = vxpose.xlu0.b32.cont [9/16] %v3455, 128
        %3488 = vxpose.xlu0.b32.cont [10/16] %v3456, 128
        %3489 = vxpose.xlu0.b32.cont [11/16] %v3457, 128
        %3490 = vxpose.xlu0.b32.cont [12/16] %v3458, 128
        %3491 = vxpose.xlu0.b32.cont [13/16] %v3459, 128
        %3492 = vxpose.xlu0.b32.cont [14/16] %v3460, 128
        %3493 = vxpose.xlu0.b32.cont [15/16] %v3461, 128
        %3494 = vxpose.xlu0.b32.end [16/16] %v3462, 128
        %v3495 = vpop.trf.xlu0
        %v3496 = vpop.trf.xlu0
        %v3497 = vpop.trf.xlu0
        %v3498 = vpop.trf.xlu0
        %v3499 = vpop.trf.xlu0
        %v3500 = vpop.trf.xlu0
        %v3501 = vpop.trf.xlu0
        %v3502 = vpop.trf.xlu0
        %v3503 = vpop.trf.xlu0
        %v3504 = vpop.trf.xlu0
        %v3505 = vpop.trf.xlu0
        %v3506 = vpop.trf.xlu0
        %v3507 = vpop.trf.xlu0
        %v3508 = vpop.trf.xlu0
        %v3509 = vpop.trf.xlu0
        %v3510 = vpop.trf.xlu0
        %3511 = vxpose.xlu0.b32.start [1/16] %v3463, 128
        %3512 = vxpose.xlu0.b32.cont [2/16] %v3464, 128
        %3513 = vxpose.xlu0.b32.cont [3/16] %v3465, 128
        %3514 = vxpose.xlu0.b32.cont [4/16] %v3466, 128
        %3515 = vxpose.xlu0.b32.cont [5/16] %v3467, 128
        %3516 = vxpose.xlu0.b32.cont [6/16] %v3468, 128
        %3517 = vxpose.xlu0.b32.cont [7/16] %v3469, 128
        %3518 = vxpose.xlu0.b32.cont [8/16] %v3470, 128
        %3519 = vxpose.xlu0.b32.cont [9/16] %v3471, 128
        %3520 = vxpose.xlu0.b32.cont [10/16] %v3472, 128
        %3521 = vxpose.xlu0.b32.cont [11/16] %v3473, 128
        %3522 = vxpose.xlu0.b32.cont [12/16] %v3474, 128
        %3523 = vxpose.xlu0.b32.cont [13/16] %v3475, 128
        %3524 = vxpose.xlu0.b32.cont [14/16] %v3476, 128
        %3525 = vxpose.xlu0.b32.cont [15/16] %v3477, 128
        %3526 = vxpose.xlu0.b32.end [16/16] %v3478, 128
        %v3527 = vpop.trf.xlu0
        %v3528 = vpop.trf.xlu0
        %v3529 = vpop.trf.xlu0
        %v3530 = vpop.trf.xlu0
        %v3531 = vpop.trf.xlu0
        %v3532 = vpop.trf.xlu0
        %v3533 = vpop.trf.xlu0
        %v3534 = vpop.trf.xlu0
        %v3535 = vpop.trf.xlu0
        %v3536 = vpop.trf.xlu0
        %v3537 = vpop.trf.xlu0
        %v3538 = vpop.trf.xlu0
        %v3539 = vpop.trf.xlu0
        %v3540 = vpop.trf.xlu0
        %v3541 = vpop.trf.xlu0
        %v3542 = vpop.trf.xlu0
        %v3543 = vpack.c.bf16 %v3496, %v3495
        %v3544 = vpack.c.bf16 %v3528, %v3527
        %v3545 = vpack.c.bf16 %v3498, %v3497
        %v3546 = vpack.c.bf16 %v3530, %v3529
        %3547 = vst [vmem:[#allocation2 + $0x20] sm:$0xff] %v3543
        %3548 = vst [vmem:[#allocation2 + $0x28] sm:$0xff] %v3544
        %3549 = vst [vmem:[#allocation2 + $0x30] sm:$0xff] %v3545
        %3550 = vst [vmem:[#allocation2 + $0x38] sm:$0xff] %v3546
        %v3551 = vld [vmem:[%s7] sm:$0xf]
        %v3552 = vld [vmem:[%s7 + $0x4] sm:$0xf]
        %v3553 = vld [vmem:[%s7 + $0x8] sm:$0xf]
        %v3554 = vld [vmem:[%s7 + $0xc] sm:$0xf]
        %v3555 = vld [vmem:[%s7 + $0x10] sm:$0xf]
        %v3556 = vld [vmem:[%s7 + $0x14] sm:$0xf]
        %v3557 = vld [vmem:[%s7 + $0x18] sm:$0xf]
        %v3558 = vld [vmem:[%s7 + $0x1c] sm:$0xf]
        %v3559 = vld [vmem:[#allocation2] sm:$0xff]
        %v3560 = vld [vmem:[#allocation2 + $0x8] sm:$0xff]
        %v3561 = vld [vmem:[#allocation2 + $0x10] sm:$0xff]
        %v3562 = vld [vmem:[#allocation2 + $0x18] sm:$0xff]
        %v3563 = vld [vmem:[#allocation2 + $0x20] sm:$0xff]
        %v3564 = vld [vmem:[#allocation2 + $0x28] sm:$0xff]
        %v3565 = vld [vmem:[#allocation2 + $0x30] sm:$0xff]
        %v3566 = vld [vmem:[#allocation2 + $0x38] sm:$0xff]
        %v3567 = vld [vmem:[%s8] sm:$0xff]
        %v3568 = vld [vmem:[%s8 + $0x8] sm:$0xff]
        %v3569 = vld [vmem:[%s8 + $0x10] sm:$0xff]
        %v3570 = vld [vmem:[%s8 + $0x18] sm:$0xff]
        %v3571 = vld [vmem:[%s8 + $0x20] sm:$0xff]
        %v3572 = vld [vmem:[%s8 + $0x28] sm:$0xff]
        %v3573 = vld [vmem:[%s8 + $0x30] sm:$0xff]
        %v3574 = vld [vmem:[%s8 + $0x38] sm:$0xff]
        %3576 = vset.pattern.permute.xlu0 0
        %3577 = vperm.xlu0 %3576, %v3567
        %v3578 = vpop.permute.xlu0 %3577
        %3581 = vset.pattern.permute.xlu0 0
        %3582 = vperm.xlu0 %3581, %v3568
        %v3583 = vpop.permute.xlu0 %3582
        %3586 = vset.pattern.permute.xlu0 0
        %3587 = vperm.xlu0 %3586, %v3569
        %v3588 = vpop.permute.xlu0 %3587
        %3591 = vset.pattern.permute.xlu0 0
        %3592 = vperm.xlu0 %3591, %v3570
        %v3593 = vpop.permute.xlu0 %3592
        %3596 = vset.pattern.permute.xlu0 0
        %3597 = vperm.xlu0 %3596, %v3571
        %v3598 = vpop.permute.xlu0 %3597
        %3601 = vset.pattern.permute.xlu0 0
        %3602 = vperm.xlu0 %3601, %v3572
        %v3603 = vpop.permute.xlu0 %3602
        %3606 = vset.pattern.permute.xlu0 0
        %3607 = vperm.xlu0 %3606, %v3573
        %v3608 = vpop.permute.xlu0 %3607
        %3611 = vset.pattern.permute.xlu0 0
        %3612 = vperm.xlu0 %3611, %v3574
        %v3613 = vpop.permute.xlu0 %3612
        %v3623 = vunpack.c.l.b16 %v3551
        %v3624 = vunpack.c.l.b16 %v3552
        %v3625 = vunpack.c.l.b16 %v3553
        %v3626 = vunpack.c.l.b16 %v3554
        %v3627 = vunpack.c.l.b16 %v3555
        %v3628 = vunpack.c.l.b16 %v3556
        %v3629 = vunpack.c.l.b16 %v3557
        %v3630 = vunpack.c.l.b16 %v3558
        %v3631 = vpack.c.b16 %v3624, %v3623
        %v3632 = vpack.c.b16 %v3626, %v3625
        %v3633 = vpack.c.b16 %v3628, %v3627
        %v3634 = vpack.c.b16 %v3630, %v3629
        %v3636 = vsel %vm425, %v3631, 0
        %v3639 = vsel %vm425, %v3632, 0
        %v3642 = vsel %vm425, %v3633, 0
        %v3645 = vsel %vm425, %v3634, 0
        %3647 = vmatprep.subr.bf16.mxu0 %v3560
        %3648 = vmatpush1.bf16.msra.mxu0 %v3559
        %3649 = vmatprep.subr.bf16.mxu0 %v3562
        %3650 = vmatpush1.bf16.msra.mxu0 %v3561
        %3651 = vmatprep.subr.bf16.mxu0 %v3564
        %3652 = vmatpush1.bf16.msra.mxu0 %v3563
        %3653 = vmatprep.subr.bf16.mxu0 %v3566
        %3654 = vmatpush1.bf16.msra.mxu0 %v3565
        %3655 = vmatprep.subr.bf16.mxu0 0
        %3656 = vmatpush1.bf16.msra.mxu0 0
        %3657 = vmatprep.subr.bf16.mxu0 0
        %3658 = vmatpush1.bf16.msra.mxu0 0
        %3659 = vmatprep.subr.bf16.mxu0 0
        %3660 = vmatpush1.bf16.msra.mxu0 0
        %3661 = vmatprep.subr.bf16.mxu0 0
        %3662 = vmatpush1.bf16.msra.mxu0 0
        %3663 = vmatprep.subr.bf16.mxu0 0
        %3664 = vmatpush1.bf16.msra.mxu0 0
        %3665 = vmatprep.subr.bf16.mxu0 0
        %3666 = vmatpush1.bf16.msra.mxu0 0
        %3667 = vmatprep.subr.bf16.mxu0 0
        %3668 = vmatpush1.bf16.msra.mxu0 0
        %3669 = vmatprep.subr.bf16.mxu0 0
        %3670 = vmatpush1.bf16.msra.mxu0 0
        %3671 = vmatprep.subr.bf16.mxu0 0
        %3672 = vmatpush1.bf16.msra.mxu0 0
        %3673 = vmatprep.subr.bf16.mxu0 0
        %3674 = vmatpush1.bf16.msra.mxu0 0
        %3675 = vmatprep.subr.bf16.mxu0 0
        %3676 = vmatpush1.bf16.msra.mxu0 0
        %3677 = vmatprep.subr.bf16.mxu0 0
        %3678 = vmatpush1.bf16.msra.mxu0 0
        %3679 = vmatprep.mubr.bf16.mxu0 0
        %3680 = vmatmul.mubr.bf16.gmra.mrb[0].mxu0 %v3636
        %v3681 = vpop.f32.mrb[0].mxu0
        %v3682 = vadd.f32 %v3578, %v3681
        %v3683 = vpop.f32.mrb[0].mxu0
        %v3684 = vadd.f32 %v3578, %v3683
        %v3685 = vpop.f32.mrb[0].mxu0
        %v3686 = vadd.f32 %v3583, %v3685
        %v3687 = vpop.f32.mrb[0].mxu0
        %v3688 = vadd.f32 %v3583, %v3687
        %3689 = vmatprep.mubr.bf16.mxu0 0
        %3690 = vmatmul.mubr.bf16.gmra.mrb[0].mxu0 %v3639
        %v3691 = vpop.f32.mrb[0].mxu0
        %v3692 = vadd.f32 %v3588, %v3691
        %v3693 = vpop.f32.mrb[0].mxu0
        %v3694 = vadd.f32 %v3588, %v3693
        %v3695 = vpop.f32.mrb[0].mxu0
        %v3696 = vadd.f32 %v3593, %v3695
        %v3697 = vpop.f32.mrb[0].mxu0
        %v3698 = vadd.f32 %v3593, %v3697
        %3699 = vmatprep.mubr.bf16.mxu0 0
        %3700 = vmatmul.mubr.bf16.gmra.mrb[0].mxu0 %v3642
        %v3701 = vpop.f32.mrb[0].mxu0
        %v3702 = vadd.f32 %v3598, %v3701
        %v3703 = vpop.f32.mrb[0].mxu0
        %v3704 = vadd.f32 %v3598, %v3703
        %v3705 = vpop.f32.mrb[0].mxu0
        %v3706 = vadd.f32 %v3603, %v3705
        %v3707 = vpop.f32.mrb[0].mxu0
        %v3708 = vadd.f32 %v3603, %v3707
        %3709 = vmatprep.mubr.bf16.mxu0 0
        %3710 = vmatmul.mubr.bf16.gmra.mrb[0].mxu0 %v3645
        %v3711 = vpop.f32.mrb[0].mxu0
        %v3712 = vadd.f32 %v3608, %v3711
        %v3713 = vpop.f32.mrb[0].mxu0
        %v3714 = vadd.f32 %v3608, %v3713
        %v3715 = vpop.f32.mrb[0].mxu0
        %v3716 = vadd.f32 %v3613, %v3715
        %v3717 = vpop.f32.mrb[0].mxu0
        %v3718 = vadd.f32 %v3613, %v3717
        %3719 = vdwg.mxu0
        %v3720 = vadd.f32 %v332, %v3682
        %v3721 = vadd.f32 %v333, %v3684
        %v3722 = vadd.f32 %v334, %v3686
        %v3723 = vadd.f32 %v335, %v3688
        %v3724 = vadd.f32 %v336, %v3692
        %v3725 = vadd.f32 %v337, %v3694
        %v3726 = vadd.f32 %v338, %v3696
        %v3727 = vadd.f32 %v339, %v3698
        %v3728 = vadd.f32 %v340, %v3702
        %v3729 = vadd.f32 %v341, %v3704
        %v3730 = vadd.f32 %v342, %v3706
        %v3731 = vadd.f32 %v343, %v3708
        %v3732 = vadd.f32 %v344, %v3712
        %v3733 = vadd.f32 %v345, %v3714
        %v3734 = vadd.f32 %v346, %v3716
        %v3735 = vadd.f32 %v347, %v3718
        %3736 = vst [vmem:[%s325] sm:$0xff] %v3720
        %3737 = vst [vmem:[%s325 + $0x8] sm:$0xff] %v3721
        %3738 = vst [vmem:[%s325 + $0x10] sm:$0xff] %v3722
        %3739 = vst [vmem:[%s325 + $0x18] sm:$0xff] %v3723
        %3740 = vst [vmem:[%s325 + $0x20] sm:$0xff] %v3724
        %3741 = vst [vmem:[%s325 + $0x28] sm:$0xff] %v3725
        %3742 = vst [vmem:[%s325 + $0x30] sm:$0xff] %v3726
        %3743 = vst [vmem:[%s325 + $0x38] sm:$0xff] %v3727
        %3744 = vst [vmem:[%s325 + $0x40] sm:$0xff] %v3728
        %3745 = vst [vmem:[%s325 + $0x48] sm:$0xff] %v3729
        %3746 = vst [vmem:[%s325 + $0x50] sm:$0xff] %v3730
        %3747 = vst [vmem:[%s325 + $0x58] sm:$0xff] %v3731
        %3748 = vst [vmem:[%s325 + $0x60] sm:$0xff] %v3732
        %3749 = vst [vmem:[%s325 + $0x68] sm:$0xff] %v3733
        %3750 = vst [vmem:[%s325 + $0x70] sm:$0xff] %v3734
        %3751 = vst [vmem:[%s325 + $0x78] sm:$0xff] %v3735
        %s3752 = sand.u32 %s225, 1
        %s3753 = scalar_lea.sflag [#allocation4], %s3752
        %s3754 = sand.u32 %s225, 1
        %s3755 = smul.addr %s3754, 128
        %s3756 = scalar_lea.vmem [#allocation3], %s3755
        // Predicated region
        $region57: #{tpu_custom_call.1} parent=55 // pred_check
          %p3757 = pneg %p235
        $region58: #{tpu_custom_call.1} parent=55 // pred_check_branch
          %3759 = sbr.rel (%p3757) target = $region60
        $region59: #{tpu_custom_call.1} parent=55 // pred_region
          %s3761 = ssub.s32 2048, 2048
          %3762 = vsyncadd %s3753, %s3761
          %s3763 = smul.addr %s23, 16
          %s3764 = smul.addr %s3763, 128
          %s3765 = scalar_lea.hbm %s9, %s3764
          %s3766 = sshll.u32 %s3756, 4
          %s3767 = int_to_ptr.vmem [resolvable:$true] %s3766
          %3772 = dma.vmem_to_hbm [thread:$0]  %s3767, 2048, %s3765, %s3753, 256, 256, 16
        $region60: #{tpu_custom_call.1} parent=55 // pred_fallthru
          _
      $region56: #{tpu_custom_call.1} parent=5 // pred_fallthru
        _
      %p3773 = scmp.le.s32.totalorder 2, %s18
      // Predicated region
      $region61: #{tpu_custom_call.1} parent=5 // pred_check
        %p3774 = pneg %p3773
      $region62: #{tpu_custom_call.1} parent=5 // pred_check_branch
        %3776 = sbr.rel (%p3774) target = $region64
      $region63: #{tpu_custom_call.1} parent=5 // pred_region
        %s3777 = ssub.s32 %s18, 2
        // Predicated region
        $region65: #{tpu_custom_call.1} parent=63 // pred_check
          %p3778 = pneg %p241
        $region66: #{tpu_custom_call.1} parent=63 // pred_check_branch
          %3780 = sbr.rel (%p3778) target = $region68
        $region67: #{tpu_custom_call.1} parent=63 // pred_region
          %s3781 = sand.u32 %s226, 1
          %s3782 = scalar_lea.sflag [#allocation4], %s3781
          %s3783 = sand.u32 %s226, 1
          %s3784 = smul.addr %s3783, 128
          %s3785 = scalar_lea.vmem [#allocation3], %s3784
          %3786 = dma.done %s3782, 2048
        $region68: #{tpu_custom_call.1} parent=63 // pred_fallthru
          _
      $region64: #{tpu_custom_call.1} parent=5 // pred_fallthru
        _
    $region6: #{tpu_custom_call.1} parent=1 // loop_footer
      %s22 = sadd.s32 1, %s18
    $region7: #{tpu_custom_call.1} parent=1 // loop_footer_branch
      %17 = sbr.rel target = $region3
    $region8: #{tpu_custom_call.1} parent=1 // loop_exit
      _
    %3787 = vsyncpa [#allocation4], 1
    %s3788 = scalar_lea.sflag [#allocation4], 1
    %3789 = vsyncpa %s3788, 1

</llo_original>
